<compile_context>
chip_gen: v7x
topology: tpu7x:2x2x1
jax: 0.10.0
libtpu: 0.0.40
codegen_flags: <defaults>
</compile_context>

<pallas_src>
import functools

import jax
import jax.numpy as jnp
import numpy as np
from jax.experimental import pallas as pl
from jax.experimental.pallas import tpu as pltpu


def _decoder_kernel(xg_ref, wh_ref, out_ref, h_scr, c_scr, *,
                    hidden_size, chunk_steps):
    """One grid step == `chunk_steps` LSTM time steps.

    xg_ref : (Bp, 4H)     precomputed x @ Wx + b (constant over time), f32.
                          The candidate-gate (last H) columns are pre-scaled
                          by 2 in the wrapper (tanh-via-sigmoid identity).
    wh_ref : (H, 4H)      stacked hidden->gate weights [Whi^T|Whf^T|Who^T|2*Whc^T]
    out_ref: (Bp, Tc, H)  output tile for this time chunk (PyTorch layout)
    h_scr, c_scr : (Bp, H) recurrent state, persists across grid iterations
    """
    H = hidden_size

    @pl.when(pl.program_id(0) == 0)
    def _init():
        h_scr[...] = jnp.zeros_like(h_scr)
        c_scr[...] = jnp.zeros_like(c_scr)

    xg = xg_ref[...]          # (Bp, 4H) f32, constant over time
    wh = wh_ref[...]          # (H, 4H)
    h = h_scr[...]            # recurrent state lives in vregs inside the chunk
    c = c_scr[...]

    # Unrolled recurrence with static store indices; chunk_steps is bounded
    # (<= 64) so unrolling stays cheap to compile.
    for s in range(chunk_steps):
        gates = xg + jnp.dot(h.astype(wh.dtype), wh,
                             preferred_element_type=jnp.float32)   # (Bp, 4H)
        # Single EUP dispatch over all four gates. Candidate pre-activation was
        # pre-scaled by 2, so tanh(g) == 2*sigmoid(2g) - 1 exactly.
        act = jax.nn.sigmoid(gates)
        i_t = act[:, 0 * H:1 * H]
        f_t = act[:, 1 * H:2 * H]
        o_t = act[:, 2 * H:3 * H]
        g_t = 2.0 * act[:, 3 * H:4 * H] - 1.0

        c = f_t * c + i_t * g_t
        h = o_t * jnp.tanh(c)            # second (unavoidable) EUP dispatch
        out_ref[:, s, :] = h.astype(out_ref.dtype)

    h_scr[...] = h
    c_scr[...] = c


def _pick_time_chunk(T, cap=64):
    """Return (Tc, Tp): per-grid-step chunk and padded sequence length.

    Tc <= cap, Tc is either == Tp (single block) or a multiple of 8 (so the
    second-minor block dim satisfies the (8,128) rule), and Tp % Tc == 0.
    Extra padded steps compute valid-but-discarded LSTM steps and are sliced
    off in the wrapper.
    """
    if T <= cap:
        return T, T
    steps = -(-T // cap)                 # ceil(T / cap)
    tc = -(-T // steps)                  # ceil(T / steps)
    tc = ((tc + 7) // 8) * 8             # round up to a multiple of 8 (<= cap)
    return tc, steps * tc


def _device_vmem_capacity():
    """Physical VMEM bytes of the attached TPU (conservative fallback: 64 MiB)."""
    try:
        info = pltpu.get_tpu_info()
        cap = getattr(info, "vmem_capacity_bytes", None)
        if cap:
            return int(cap)
    except Exception:
        pass
    return 64 << 20


def decoder_forward(x, params, expected_seq_len, *, weight_dtype=None):
    """Runs the Decoder forward pass. Returns (B, T, H) like PyTorch."""
    B, H = x.shape
    T = int(expected_seq_len)

    # Fuse the 8 Linear layers: y = x @ W.T + b  ->  stacked (H, 4H) weights,
    # gate order i, f, o, c, and one combined bias (b_x + b_h).
    gate_order = ("i", "f", "o", "c")
    wx = jnp.concatenate([params[f"W_x{g}"]["w"].T for g in gate_order], axis=1)
    wh = jnp.concatenate([params[f"W_h{g}"]["w"].T for g in gate_order], axis=1)
    b = jnp.concatenate(
        [params[f"W_x{g}"]["b"] + params[f"W_h{g}"]["b"] for g in gate_order],
        axis=0,
    )[None, :]  # (1, 4H)

    # Fold the tanh-via-sigmoid factor of 2 into the candidate-gate columns of
    # the weights / bias (one-time wrapper op, zero in-kernel cost).
    gate_scale = jnp.concatenate(
        [jnp.ones((3 * H,), jnp.float32), jnp.full((H,), 2.0, jnp.float32)]
    )[None, :]  # (1, 4H)
    wh = wh * gate_scale

    # Pad batch to full sublanes (multiple of 8) so per-step work is unmasked.
    Bp = ((B + 7) // 8) * 8
    x_p = jnp.pad(x.astype(jnp.float32), ((0, Bp - B), (0, 0)))

    # x is identical at every time step -> project once with XLA, outside the
    # kernel. Wx and the bias never enter the kernel's VMEM.
    xg = (x_p @ wx + b) * gate_scale       # (Bp, 4H), f32

    # Recurrent-weight dtype: bf16 automatically once a f32 Wh would exceed
    # ~16 MiB (H >= 1024); keep exact f32 otherwise (validation path).
    if weight_dtype is None:
        weight_dtype = jnp.bfloat16 if (4 * H * H * 4) > (16 << 20) else jnp.float32
    wh = wh.astype(weight_dtype)

    Tc, Tp = _pick_time_chunk(T)
    grid = (Tp // Tc,)

    kernel = functools.partial(_decoder_kernel, hidden_size=H, chunk_steps=Tc)

    # VMEM budget (conservative: assumes double-buffered invariants so the
    # limit is valid even on the non-Buffered(1) fallback path), clamped to the
    # physical capacity of the attached device minus 8 MiB headroom.
    f32_b = 4
    w_b = jnp.dtype(weight_dtype).itemsize
    vmem_needed = (
        2 * Bp * 4 * H * f32_b          # xg (<= 2 buffers)
        + 2 * H * 4 * H * w_b           # Wh (<= 2 buffers)
        + 2 * Bp * Tc * H * f32_b       # output tile (double-buffered)
        + 2 * Bp * H * f32_b            # h / c scratch (single-buffered)
        + (4 << 20)                     # headroom
    )
    device_vmem = _device_vmem_capacity()
    vmem_limit = int(max(32 << 20, min(device_vmem - (8 << 20), vmem_needed)))

    def build(single_buffer_invariants):
        if single_buffer_invariants:
            xg_spec = pl.BlockSpec((Bp, 4 * H), lambda t: (0, 0),
                                   pipeline_mode=pl.Buffered(1))
            wh_spec = pl.BlockSpec((H, 4 * H), lambda t: (0, 0),
                                   pipeline_mode=pl.Buffered(1))
        else:
            xg_spec = pl.BlockSpec((Bp, 4 * H), lambda t: (0, 0))
            wh_spec = pl.BlockSpec((H, 4 * H), lambda t: (0, 0))
        return pl.pallas_call(
            kernel,
            out_shape=jax.ShapeDtypeStruct((Bp, Tp, H), jnp.float32),
            grid_spec=pltpu.PrefetchScalarGridSpec(
                num_scalar_prefetch=0,
                grid=grid,
                in_specs=[xg_spec, wh_spec],
                out_specs=pl.BlockSpec((Bp, Tc, H), lambda t: (0, t, 0)),
                scratch_shapes=[
                    pltpu.VMEM((Bp, H), jnp.float32),   # h_t
                    pltpu.VMEM((Bp, H), jnp.float32),   # c_t
                ],
            ),
            compiler_params=pltpu.CompilerParams(
                dimension_semantics=("arbitrary",),     # sequential recurrence in T
                vmem_limit_bytes=vmem_limit,
            ),
        )

    try:
        out_p = build(True)(xg, wh)
    except Exception:
        # Fallback for runtimes that reject single-buffered invariant inputs.
        out_p = build(False)(xg, wh)

    return out_p[:B, :T]                 # drop batch/time padding; (B, T, H)


def init_decoder_params(key, hidden_size):
    """Deterministic synthetic parameters matching the module's __init__ shapes."""
    names = ["W_xi", "W_hi", "W_xf", "W_hf", "W_xo", "W_ho", "W_xc", "W_hc"]
    params = {}
    keys = jax.random.split(key, 2 * len(names))
    for idx, name in enumerate(names):
        wk, bk = keys[2 * idx], keys[2 * idx + 1]
        params[name] = {
            "w": jax.random.normal(wk, (hidden_size, hidden_size), jnp.float32) * 0.1,
            "b": jax.random.normal(bk, (hidden_size,), jnp.float32) * 0.1,
        }
    return params


def decoder_reference(x, params, expected_seq_len):
    """Pure-JAX reference mirroring the PyTorch loop exactly."""
    B, H = x.shape
    h = jnp.zeros((B, H), jnp.float32)
    c = jnp.zeros((B, H), jnp.float32)

    def lin(name, v):
        p = params[name]
        return v @ p["w"].T + p["b"]

    outs = []
    for _ in range(expected_seq_len):
        i_t = jax.nn.sigmoid(lin("W_xi", x) + lin("W_hi", h))
        f_t = jax.nn.sigmoid(lin("W_xf", x) + lin("W_hf", h))
        o_t = jax.nn.sigmoid(lin("W_xo", x) + lin("W_ho", h))
        g_t = jnp.tanh(lin("W_xc", x) + lin("W_hc", h))
        c = f_t * c + i_t * g_t
        h = o_t * jnp.tanh(c)
        outs.append(h[:, None, :])
    return jnp.concatenate(outs, axis=1)


if __name__ == "__main__":
    batch = 2
    hidden = 32
    seq_len = 8

    key = jax.random.PRNGKey(0)
    pkey, xkey = jax.random.split(key)
    params = init_decoder_params(pkey, hidden)
    x = jax.random.normal(xkey, (batch, hidden), jnp.float32)

    out = decoder_forward(x, params, seq_len)
    out = jax.block_until_ready(out)

    ref = decoder_reference(x, params, seq_len)
    np.testing.assert_allclose(np.asarray(out), np.asarray(ref), rtol=1e-5, atol=1e-5)
    assert out.shape == (batch, seq_len, hidden)

    print("KERNEL_OK")
</pallas_src>

<mosaic_0001>
module attributes {stable_mosaic.version = 11 : i64} {
  func.func @_decoder_kernel(%arg0: i32, %arg1: memref<8x128xf32, #tpu.memory_space<vmem>>, %arg2: memref<32x128xf32, #tpu.memory_space<vmem>>, %arg3: memref<8x8x32xf32, #tpu.memory_space<vmem>>, %arg4: memref<8x32xf32, #tpu.memory_space<vmem>>, %arg5: memref<8x32xf32, #tpu.memory_space<vmem>>) attributes {dimension_semantics = [#tpu.dimension_semantics<arbitrary>], iteration_bounds = array<i64: 1>, scalar_prefetch = 0 : i64, scratch_operands = 2 : i64, tpu.core_type = #tpu.core_type<tc>, window_params = [{pipeline_mode = #tpu.pipeline_mode<synchronous>, transform_indices = @transform_0, window_bounds = array<i64: 8, 128>}, {pipeline_mode = #tpu.pipeline_mode<synchronous>, transform_indices = @transform_1, window_bounds = array<i64: 32, 128>}, {transform_indices = @transform_2, window_bounds = array<i64: 8, 8, 32>}]} {
    %c0_i32 = arith.constant 0 : i32
    %0 = arith.cmpi eq, %arg0, %c0_i32 : i32
    %1 = arith.extui %0 : i1 to i32
    %c0_i32_0 = arith.constant 0 : i32
    %2 = arith.cmpi ne, %1, %c0_i32_0 : i32
    scf.if %2 {
      %cst_60 = arith.constant 0.000000e+00 : f32
      %193 = vector.broadcast %cst_60 : f32 to vector<8x32xf32>
      %c0_61 = arith.constant 0 : index
      %c0_62 = arith.constant 0 : index
      %194 = vector.load %arg4[%c0_61, %c0_62] : memref<8x32xf32, #tpu.memory_space<vmem>>, vector<8x32xf32>
      tpu.vector_store %arg4[%c0_61, %c0_62], %193 {strides = array<i32>} : memref<8x32xf32, #tpu.memory_space<vmem>>, vector<8x32xf32>,
      %cst_63 = arith.constant 0.000000e+00 : f32
      %195 = vector.broadcast %cst_63 : f32 to vector<8x32xf32>
      %c0_64 = arith.constant 0 : index
      %c0_65 = arith.constant 0 : index
      %196 = vector.load %arg5[%c0_64, %c0_65] : memref<8x32xf32, #tpu.memory_space<vmem>>, vector<8x32xf32>
      tpu.vector_store %arg5[%c0_64, %c0_65], %195 {strides = array<i32>} : memref<8x32xf32, #tpu.memory_space<vmem>>, vector<8x32xf32>,
    } else {
    }
    %c0 = arith.constant 0 : index
    %c0_1 = arith.constant 0 : index
    %3 = vector.load %arg1[%c0, %c0_1] : memref<8x128xf32, #tpu.memory_space<vmem>>, vector<8x128xf32>
    %c0_2 = arith.constant 0 : index
    %c0_3 = arith.constant 0 : index
    %4 = vector.load %arg2[%c0_2, %c0_3] : memref<32x128xf32, #tpu.memory_space<vmem>>, vector<32x128xf32>
    %c0_4 = arith.constant 0 : index
    %c0_5 = arith.constant 0 : index
    %5 = vector.load %arg4[%c0_4, %c0_5] : memref<8x32xf32, #tpu.memory_space<vmem>>, vector<8x32xf32>
    %c0_6 = arith.constant 0 : index
    %c0_7 = arith.constant 0 : index
    %6 = vector.load %arg5[%c0_6, %c0_7] : memref<8x32xf32, #tpu.memory_space<vmem>>, vector<8x32xf32>
    %cst = arith.constant dense<0.000000e+00> : vector<8x128xf32>
    %7 = tpu.matmul %5, %4, %cst {dimension_numbers = #tpu.dot_dimension_numbers<[1], [0], [0], [1], [0, 0, 1, 1], [], []>} : vector<8x32xf32>, vector<32x128xf32>, vector<8x128xf32> -> vector<8x128xf32>
    %8 = arith.addf %3, %7 : vector<8x128xf32>
    %9 = arith.negf %8 : vector<8x128xf32>
    %10 = math.exp %9 : vector<8x128xf32>
    %cst_8 = arith.constant 1.000000e+00 : f32
    %11 = vector.broadcast %cst_8 : f32 to vector<8x128xf32>
    %12 = arith.addf %11, %10 : vector<8x128xf32>
    %13 = arith.divf %11, %12 : vector<8x128xf32>
    %14 = vector.extract_strided_slice %13 {offsets = [0, 0], sizes = [8, 32], strides = [1, 1]} : vector<8x128xf32> to vector<8x32xf32>
    %15 = vector.extract_strided_slice %13 {offsets = [0, 32], sizes = [8, 32], strides = [1, 1]} : vector<8x128xf32> to vector<8x32xf32>
    %16 = vector.extract_strided_slice %13 {offsets = [0, 64], sizes = [8, 32], strides = [1, 1]} : vector<8x128xf32> to vector<8x32xf32>
    %17 = vector.extract_strided_slice %13 {offsets = [0, 96], sizes = [8, 32], strides = [1, 1]} : vector<8x128xf32> to vector<8x32xf32>
    %cst_9 = arith.constant 2.000000e+00 : f32
    %18 = vector.broadcast %cst_9 : f32 to vector<8x32xf32>
    %19 = arith.mulf %18, %17 : vector<8x32xf32>
    %cst_10 = arith.constant 1.000000e+00 : f32
    %20 = vector.broadcast %cst_10 : f32 to vector<8x32xf32>
    %21 = arith.subf %19, %20 : vector<8x32xf32>
    %22 = arith.mulf %15, %6 : vector<8x32xf32>
    %23 = arith.mulf %14, %21 : vector<8x32xf32>
    %24 = arith.addf %22, %23 : vector<8x32xf32>
    %25 = math.tanh %24 : vector<8x32xf32>
    %26 = arith.mulf %16, %25 : vector<8x32xf32>
    %c0_11 = arith.constant 0 : index
    %c0_12 = arith.constant 0 : index
    %c0_13 = arith.constant 0 : index
    %27 = vector.load %arg3[%c0_11, %c0_12, %c0_13] : memref<8x8x32xf32, #tpu.memory_space<vmem>>, vector<8x1x32xf32>
    %28 = vector.shape_cast %27 : vector<8x1x32xf32> to vector<8x32xf32>
    %29 = vector.shape_cast %26 : vector<8x32xf32> to vector<8x1x32xf32>
    tpu.vector_store %arg3[%c0_11, %c0_12, %c0_13], %29 {strides = array<i32>} : memref<8x8x32xf32, #tpu.memory_space<vmem>>, vector<8x1x32xf32>,
    %cst_14 = arith.constant dense<0.000000e+00> : vector<8x128xf32>
    %30 = tpu.matmul %26, %4, %cst_14 {dimension_numbers = #tpu.dot_dimension_numbers<[1], [0], [0], [1], [0, 0, 1, 1], [], []>} : vector<8x32xf32>, vector<32x128xf32>, vector<8x128xf32> -> vector<8x128xf32>
    %31 = arith.addf %3, %30 : vector<8x128xf32>
    %32 = arith.negf %31 : vector<8x128xf32>
    %33 = math.exp %32 : vector<8x128xf32>
    %cst_15 = arith.constant 1.000000e+00 : f32
    %34 = vector.broadcast %cst_15 : f32 to vector<8x128xf32>
    %35 = arith.addf %34, %33 : vector<8x128xf32>
    %36 = arith.divf %34, %35 : vector<8x128xf32>
    %37 = vector.extract_strided_slice %36 {offsets = [0, 0], sizes = [8, 32], strides = [1, 1]} : vector<8x128xf32> to vector<8x32xf32>
    %38 = vector.extract_strided_slice %36 {offsets = [0, 32], sizes = [8, 32], strides = [1, 1]} : vector<8x128xf32> to vector<8x32xf32>
    %39 = vector.extract_strided_slice %36 {offsets = [0, 64], sizes = [8, 32], strides = [1, 1]} : vector<8x128xf32> to vector<8x32xf32>
    %40 = vector.extract_strided_slice %36 {offsets = [0, 96], sizes = [8, 32], strides = [1, 1]} : vector<8x128xf32> to vector<8x32xf32>
    %cst_16 = arith.constant 2.000000e+00 : f32
    %41 = vector.broadcast %cst_16 : f32 to vector<8x32xf32>
    %42 = arith.mulf %41, %40 : vector<8x32xf32>
    %cst_17 = arith.constant 1.000000e+00 : f32
    %43 = vector.broadcast %cst_17 : f32 to vector<8x32xf32>
    %44 = arith.subf %42, %43 : vector<8x32xf32>
    %45 = arith.mulf %38, %24 : vector<8x32xf32>
    %46 = arith.mulf %37, %44 : vector<8x32xf32>
    %47 = arith.addf %45, %46 : vector<8x32xf32>
    %48 = math.tanh %47 : vector<8x32xf32>
    %49 = arith.mulf %39, %48 : vector<8x32xf32>
    %c0_18 = arith.constant 0 : index
    %c1 = arith.constant 1 : index
    %c0_19 = arith.constant 0 : index
    %50 = vector.load %arg3[%c0_18, %c1, %c0_19] : memref<8x8x32xf32, #tpu.memory_space<vmem>>, vector<8x1x32xf32>
    %51 = vector.shape_cast %50 : vector<8x1x32xf32> to vector<8x32xf32>
    %52 = vector.shape_cast %49 : vector<8x32xf32> to vector<8x1x32xf32>
    tpu.vector_store %arg3[%c0_18, %c1, %c0_19], %52 {strides = array<i32>} : memref<8x8x32xf32, #tpu.memory_space<vmem>>, vector<8x1x32xf32>,
    %cst_20 = arith.constant dense<0.000000e+00> : vector<8x128xf32>
    %53 = tpu.matmul %49, %4, %cst_20 {dimension_numbers = #tpu.dot_dimension_numbers<[1], [0], [0], [1], [0, 0, 1, 1], [], []>} : vector<8x32xf32>, vector<32x128xf32>, vector<8x128xf32> -> vector<8x128xf32>
    %54 = arith.addf %3, %53 : vector<8x128xf32>
    %55 = arith.negf %54 : vector<8x128xf32>
    %56 = math.exp %55 : vector<8x128xf32>
    %cst_21 = arith.constant 1.000000e+00 : f32
    %57 = vector.broadcast %cst_21 : f32 to vector<8x128xf32>
    %58 = arith.addf %57, %56 : vector<8x128xf32>
    %59 = arith.divf %57, %58 : vector<8x128xf32>
    %60 = vector.extract_strided_slice %59 {offsets = [0, 0], sizes = [8, 32], strides = [1, 1]} : vector<8x128xf32> to vector<8x32xf32>
    %61 = vector.extract_strided_slice %59 {offsets = [0, 32], sizes = [8, 32], strides = [1, 1]} : vector<8x128xf32> to vector<8x32xf32>
    %62 = vector.extract_strided_slice %59 {offsets = [0, 64], sizes = [8, 32], strides = [1, 1]} : vector<8x128xf32> to vector<8x32xf32>
    %63 = vector.extract_strided_slice %59 {offsets = [0, 96], sizes = [8, 32], strides = [1, 1]} : vector<8x128xf32> to vector<8x32xf32>
    %cst_22 = arith.constant 2.000000e+00 : f32
    %64 = vector.broadcast %cst_22 : f32 to vector<8x32xf32>
    %65 = arith.mulf %64, %63 : vector<8x32xf32>
    %cst_23 = arith.constant 1.000000e+00 : f32
    %66 = vector.broadcast %cst_23 : f32 to vector<8x32xf32>
    %67 = arith.subf %65, %66 : vector<8x32xf32>
    %68 = arith.mulf %61, %47 : vector<8x32xf32>
    %69 = arith.mulf %60, %67 : vector<8x32xf32>
    %70 = arith.addf %68, %69 : vector<8x32xf32>
    %71 = math.tanh %70 : vector<8x32xf32>
    %72 = arith.mulf %62, %71 : vector<8x32xf32>
    %c0_24 = arith.constant 0 : index
    %c2 = arith.constant 2 : index
    %c0_25 = arith.constant 0 : index
    %73 = vector.load %arg3[%c0_24, %c2, %c0_25] : memref<8x8x32xf32, #tpu.memory_space<vmem>>, vector<8x1x32xf32>
    %74 = vector.shape_cast %73 : vector<8x1x32xf32> to vector<8x32xf32>
    %75 = vector.shape_cast %72 : vector<8x32xf32> to vector<8x1x32xf32>
    tpu.vector_store %arg3[%c0_24, %c2, %c0_25], %75 {strides = array<i32>} : memref<8x8x32xf32, #tpu.memory_space<vmem>>, vector<8x1x32xf32>,
    %cst_26 = arith.constant dense<0.000000e+00> : vector<8x128xf32>
    %76 = tpu.matmul %72, %4, %cst_26 {dimension_numbers = #tpu.dot_dimension_numbers<[1], [0], [0], [1], [0, 0, 1, 1], [], []>} : vector<8x32xf32>, vector<32x128xf32>, vector<8x128xf32> -> vector<8x128xf32>
    %77 = arith.addf %3, %76 : vector<8x128xf32>
    %78 = arith.negf %77 : vector<8x128xf32>
    %79 = math.exp %78 : vector<8x128xf32>
    %cst_27 = arith.constant 1.000000e+00 : f32
    %80 = vector.broadcast %cst_27 : f32 to vector<8x128xf32>
    %81 = arith.addf %80, %79 : vector<8x128xf32>
    %82 = arith.divf %80, %81 : vector<8x128xf32>
    %83 = vector.extract_strided_slice %82 {offsets = [0, 0], sizes = [8, 32], strides = [1, 1]} : vector<8x128xf32> to vector<8x32xf32>
    %84 = vector.extract_strided_slice %82 {offsets = [0, 32], sizes = [8, 32], strides = [1, 1]} : vector<8x128xf32> to vector<8x32xf32>
    %85 = vector.extract_strided_slice %82 {offsets = [0, 64], sizes = [8, 32], strides = [1, 1]} : vector<8x128xf32> to vector<8x32xf32>
    %86 = vector.extract_strided_slice %82 {offsets = [0, 96], sizes = [8, 32], strides = [1, 1]} : vector<8x128xf32> to vector<8x32xf32>
    %cst_28 = arith.constant 2.000000e+00 : f32
    %87 = vector.broadcast %cst_28 : f32 to vector<8x32xf32>
    %88 = arith.mulf %87, %86 : vector<8x32xf32>
    %cst_29 = arith.constant 1.000000e+00 : f32
    %89 = vector.broadcast %cst_29 : f32 to vector<8x32xf32>
    %90 = arith.subf %88, %89 : vector<8x32xf32>
    %91 = arith.mulf %84, %70 : vector<8x32xf32>
    %92 = arith.mulf %83, %90 : vector<8x32xf32>
    %93 = arith.addf %91, %92 : vector<8x32xf32>
    %94 = math.tanh %93 : vector<8x32xf32>
    %95 = arith.mulf %85, %94 : vector<8x32xf32>
    %c0_30 = arith.constant 0 : index
    %c3 = arith.constant 3 : index
    %c0_31 = arith.constant 0 : index
    %96 = vector.load %arg3[%c0_30, %c3, %c0_31] : memref<8x8x32xf32, #tpu.memory_space<vmem>>, vector<8x1x32xf32>
    %97 = vector.shape_cast %96 : vector<8x1x32xf32> to vector<8x32xf32>
    %98 = vector.shape_cast %95 : vector<8x32xf32> to vector<8x1x32xf32>
    tpu.vector_store %arg3[%c0_30, %c3, %c0_31], %98 {strides = array<i32>} : memref<8x8x32xf32, #tpu.memory_space<vmem>>, vector<8x1x32xf32>,
    %cst_32 = arith.constant dense<0.000000e+00> : vector<8x128xf32>
    %99 = tpu.matmul %95, %4, %cst_32 {dimension_numbers = #tpu.dot_dimension_numbers<[1], [0], [0], [1], [0, 0, 1, 1], [], []>} : vector<8x32xf32>, vector<32x128xf32>, vector<8x128xf32> -> vector<8x128xf32>
    %100 = arith.addf %3, %99 : vector<8x128xf32>
    %101 = arith.negf %100 : vector<8x128xf32>
    %102 = math.exp %101 : vector<8x128xf32>
    %cst_33 = arith.constant 1.000000e+00 : f32
    %103 = vector.broadcast %cst_33 : f32 to vector<8x128xf32>
    %104 = arith.addf %103, %102 : vector<8x128xf32>
    %105 = arith.divf %103, %104 : vector<8x128xf32>
    %106 = vector.extract_strided_slice %105 {offsets = [0, 0], sizes = [8, 32], strides = [1, 1]} : vector<8x128xf32> to vector<8x32xf32>
    %107 = vector.extract_strided_slice %105 {offsets = [0, 32], sizes = [8, 32], strides = [1, 1]} : vector<8x128xf32> to vector<8x32xf32>
    %108 = vector.extract_strided_slice %105 {offsets = [0, 64], sizes = [8, 32], strides = [1, 1]} : vector<8x128xf32> to vector<8x32xf32>
    %109 = vector.extract_strided_slice %105 {offsets = [0, 96], sizes = [8, 32], strides = [1, 1]} : vector<8x128xf32> to vector<8x32xf32>
    %cst_34 = arith.constant 2.000000e+00 : f32
    %110 = vector.broadcast %cst_34 : f32 to vector<8x32xf32>
    %111 = arith.mulf %110, %109 : vector<8x32xf32>
    %cst_35 = arith.constant 1.000000e+00 : f32
    %112 = vector.broadcast %cst_35 : f32 to vector<8x32xf32>
    %113 = arith.subf %111, %112 : vector<8x32xf32>
    %114 = arith.mulf %107, %93 : vector<8x32xf32>
    %115 = arith.mulf %106, %113 : vector<8x32xf32>
    %116 = arith.addf %114, %115 : vector<8x32xf32>
    %117 = math.tanh %116 : vector<8x32xf32>
    %118 = arith.mulf %108, %117 : vector<8x32xf32>
    %c0_36 = arith.constant 0 : index
    %c4 = arith.constant 4 : index
    %c0_37 = arith.constant 0 : index
    %119 = vector.load %arg3[%c0_36, %c4, %c0_37] : memref<8x8x32xf32, #tpu.memory_space<vmem>>, vector<8x1x32xf32>
    %120 = vector.shape_cast %119 : vector<8x1x32xf32> to vector<8x32xf32>
    %121 = vector.shape_cast %118 : vector<8x32xf32> to vector<8x1x32xf32>
    tpu.vector_store %arg3[%c0_36, %c4, %c0_37], %121 {strides = array<i32>} : memref<8x8x32xf32, #tpu.memory_space<vmem>>, vector<8x1x32xf32>,
    %cst_38 = arith.constant dense<0.000000e+00> : vector<8x128xf32>
    %122 = tpu.matmul %118, %4, %cst_38 {dimension_numbers = #tpu.dot_dimension_numbers<[1], [0], [0], [1], [0, 0, 1, 1], [], []>} : vector<8x32xf32>, vector<32x128xf32>, vector<8x128xf32> -> vector<8x128xf32>
    %123 = arith.addf %3, %122 : vector<8x128xf32>
    %124 = arith.negf %123 : vector<8x128xf32>
    %125 = math.exp %124 : vector<8x128xf32>
    %cst_39 = arith.constant 1.000000e+00 : f32
    %126 = vector.broadcast %cst_39 : f32 to vector<8x128xf32>
    %127 = arith.addf %126, %125 : vector<8x128xf32>
    %128 = arith.divf %126, %127 : vector<8x128xf32>
    %129 = vector.extract_strided_slice %128 {offsets = [0, 0], sizes = [8, 32], strides = [1, 1]} : vector<8x128xf32> to vector<8x32xf32>
    %130 = vector.extract_strided_slice %128 {offsets = [0, 32], sizes = [8, 32], strides = [1, 1]} : vector<8x128xf32> to vector<8x32xf32>
    %131 = vector.extract_strided_slice %128 {offsets = [0, 64], sizes = [8, 32], strides = [1, 1]} : vector<8x128xf32> to vector<8x32xf32>
    %132 = vector.extract_strided_slice %128 {offsets = [0, 96], sizes = [8, 32], strides = [1, 1]} : vector<8x128xf32> to vector<8x32xf32>
    %cst_40 = arith.constant 2.000000e+00 : f32
    %133 = vector.broadcast %cst_40 : f32 to vector<8x32xf32>
    %134 = arith.mulf %133, %132 : vector<8x32xf32>
    %cst_41 = arith.constant 1.000000e+00 : f32
    %135 = vector.broadcast %cst_41 : f32 to vector<8x32xf32>
    %136 = arith.subf %134, %135 : vector<8x32xf32>
    %137 = arith.mulf %130, %116 : vector<8x32xf32>
    %138 = arith.mulf %129, %136 : vector<8x32xf32>
    %139 = arith.addf %137, %138 : vector<8x32xf32>
    %140 = math.tanh %139 : vector<8x32xf32>
    %141 = arith.mulf %131, %140 : vector<8x32xf32>
    %c0_42 = arith.constant 0 : index
    %c5 = arith.constant 5 : index
    %c0_43 = arith.constant 0 : index
    %142 = vector.load %arg3[%c0_42, %c5, %c0_43] : memref<8x8x32xf32, #tpu.memory_space<vmem>>, vector<8x1x32xf32>
    %143 = vector.shape_cast %142 : vector<8x1x32xf32> to vector<8x32xf32>
    %144 = vector.shape_cast %141 : vector<8x32xf32> to vector<8x1x32xf32>
    tpu.vector_store %arg3[%c0_42, %c5, %c0_43], %144 {strides = array<i32>} : memref<8x8x32xf32, #tpu.memory_space<vmem>>, vector<8x1x32xf32>,
    %cst_44 = arith.constant dense<0.000000e+00> : vector<8x128xf32>
    %145 = tpu.matmul %141, %4, %cst_44 {dimension_numbers = #tpu.dot_dimension_numbers<[1], [0], [0], [1], [0, 0, 1, 1], [], []>} : vector<8x32xf32>, vector<32x128xf32>, vector<8x128xf32> -> vector<8x128xf32>
    %146 = arith.addf %3, %145 : vector<8x128xf32>
    %147 = arith.negf %146 : vector<8x128xf32>
    %148 = math.exp %147 : vector<8x128xf32>
    %cst_45 = arith.constant 1.000000e+00 : f32
    %149 = vector.broadcast %cst_45 : f32 to vector<8x128xf32>
    %150 = arith.addf %149, %148 : vector<8x128xf32>
    %151 = arith.divf %149, %150 : vector<8x128xf32>
    %152 = vector.extract_strided_slice %151 {offsets = [0, 0], sizes = [8, 32], strides = [1, 1]} : vector<8x128xf32> to vector<8x32xf32>
    %153 = vector.extract_strided_slice %151 {offsets = [0, 32], sizes = [8, 32], strides = [1, 1]} : vector<8x128xf32> to vector<8x32xf32>
    %154 = vector.extract_strided_slice %151 {offsets = [0, 64], sizes = [8, 32], strides = [1, 1]} : vector<8x128xf32> to vector<8x32xf32>
    %155 = vector.extract_strided_slice %151 {offsets = [0, 96], sizes = [8, 32], strides = [1, 1]} : vector<8x128xf32> to vector<8x32xf32>
    %cst_46 = arith.constant 2.000000e+00 : f32
    %156 = vector.broadcast %cst_46 : f32 to vector<8x32xf32>
    %157 = arith.mulf %156, %155 : vector<8x32xf32>
    %cst_47 = arith.constant 1.000000e+00 : f32
    %158 = vector.broadcast %cst_47 : f32 to vector<8x32xf32>
    %159 = arith.subf %157, %158 : vector<8x32xf32>
    %160 = arith.mulf %153, %139 : vector<8x32xf32>
    %161 = arith.mulf %152, %159 : vector<8x32xf32>
    %162 = arith.addf %160, %161 : vector<8x32xf32>
    %163 = math.tanh %162 : vector<8x32xf32>
    %164 = arith.mulf %154, %163 : vector<8x32xf32>
    %c0_48 = arith.constant 0 : index
    %c6 = arith.constant 6 : index
    %c0_49 = arith.constant 0 : index
    %165 = vector.load %arg3[%c0_48, %c6, %c0_49] : memref<8x8x32xf32, #tpu.memory_space<vmem>>, vector<8x1x32xf32>
    %166 = vector.shape_cast %165 : vector<8x1x32xf32> to vector<8x32xf32>
    %167 = vector.shape_cast %164 : vector<8x32xf32> to vector<8x1x32xf32>
    tpu.vector_store %arg3[%c0_48, %c6, %c0_49], %167 {strides = array<i32>} : memref<8x8x32xf32, #tpu.memory_space<vmem>>, vector<8x1x32xf32>,
    %cst_50 = arith.constant dense<0.000000e+00> : vector<8x128xf32>
    %168 = tpu.matmul %164, %4, %cst_50 {dimension_numbers = #tpu.dot_dimension_numbers<[1], [0], [0], [1], [0, 0, 1, 1], [], []>} : vector<8x32xf32>, vector<32x128xf32>, vector<8x128xf32> -> vector<8x128xf32>
    %169 = arith.addf %3, %168 : vector<8x128xf32>
    %170 = arith.negf %169 : vector<8x128xf32>
    %171 = math.exp %170 : vector<8x128xf32>
    %cst_51 = arith.constant 1.000000e+00 : f32
    %172 = vector.broadcast %cst_51 : f32 to vector<8x128xf32>
    %173 = arith.addf %172, %171 : vector<8x128xf32>
    %174 = arith.divf %172, %173 : vector<8x128xf32>
    %175 = vector.extract_strided_slice %174 {offsets = [0, 0], sizes = [8, 32], strides = [1, 1]} : vector<8x128xf32> to vector<8x32xf32>
    %176 = vector.extract_strided_slice %174 {offsets = [0, 32], sizes = [8, 32], strides = [1, 1]} : vector<8x128xf32> to vector<8x32xf32>
    %177 = vector.extract_strided_slice %174 {offsets = [0, 64], sizes = [8, 32], strides = [1, 1]} : vector<8x128xf32> to vector<8x32xf32>
    %178 = vector.extract_strided_slice %174 {offsets = [0, 96], sizes = [8, 32], strides = [1, 1]} : vector<8x128xf32> to vector<8x32xf32>
    %cst_52 = arith.constant 2.000000e+00 : f32
    %179 = vector.broadcast %cst_52 : f32 to vector<8x32xf32>
    %180 = arith.mulf %179, %178 : vector<8x32xf32>
    %cst_53 = arith.constant 1.000000e+00 : f32
    %181 = vector.broadcast %cst_53 : f32 to vector<8x32xf32>
    %182 = arith.subf %180, %181 : vector<8x32xf32>
    %183 = arith.mulf %176, %162 : vector<8x32xf32>
    %184 = arith.mulf %175, %182 : vector<8x32xf32>
    %185 = arith.addf %183, %184 : vector<8x32xf32>
    %186 = math.tanh %185 : vector<8x32xf32>
    %187 = arith.mulf %177, %186 : vector<8x32xf32>
    %c0_54 = arith.constant 0 : index
    %c7 = arith.constant 7 : index
    %c0_55 = arith.constant 0 : index
    %188 = vector.load %arg3[%c0_54, %c7, %c0_55] : memref<8x8x32xf32, #tpu.memory_space<vmem>>, vector<8x1x32xf32>
    %189 = vector.shape_cast %188 : vector<8x1x32xf32> to vector<8x32xf32>
    %190 = vector.shape_cast %187 : vector<8x32xf32> to vector<8x1x32xf32>
    tpu.vector_store %arg3[%c0_54, %c7, %c0_55], %190 {strides = array<i32>} : memref<8x8x32xf32, #tpu.memory_space<vmem>>, vector<8x1x32xf32>,
    %c0_56 = arith.constant 0 : index
    %c0_57 = arith.constant 0 : index
    %191 = vector.load %arg4[%c0_56, %c0_57] : memref<8x32xf32, #tpu.memory_space<vmem>>, vector<8x32xf32>
    tpu.vector_store %arg4[%c0_56, %c0_57], %187 {strides = array<i32>} : memref<8x32xf32, #tpu.memory_space<vmem>>, vector<8x32xf32>,
    %c0_58 = arith.constant 0 : index
    %c0_59 = arith.constant 0 : index
    %192 = vector.load %arg5[%c0_58, %c0_59] : memref<8x32xf32, #tpu.memory_space<vmem>>, vector<8x32xf32>
    tpu.vector_store %arg5[%c0_58, %c0_59], %185 {strides = array<i32>} : memref<8x32xf32, #tpu.memory_space<vmem>>, vector<8x32xf32>,
    return
  }
  func.func @transform_0(%arg0: i32) -> (i32, i32) {
    %c0_i32 = arith.constant 0 : i32
    %c0_i32_0 = arith.constant 0 : i32
    %c0_i32_1 = arith.constant 0 : i32
    return %c0_i32, %c0_i32_0 : i32, i32
  }
  func.func @transform_1(%arg0: i32) -> (i32, i32) {
    %c0_i32 = arith.constant 0 : i32
    %c0_i32_0 = arith.constant 0 : i32
    %c0_i32_1 = arith.constant 0 : i32
    return %c0_i32, %c0_i32_0 : i32, i32
  }
  func.func @transform_2(%arg0: i32) -> (i32, i32, i32) {
    %c0_i32 = arith.constant 0 : i32
    %c0_i32_0 = arith.constant 0 : i32
    %c0_i32_1 = arith.constant 0 : i32
    return %c0_i32, %arg0, %c0_i32_0 : i32, i32, i32
  }
}

module attributes {stable_mosaic.version = 11 : i64} {
  func.func @_decoder_kernel(%arg0: i32, %arg1: memref<8x128xf32, #tpu.memory_space<vmem>>, %arg2: memref<32x128xf32, #tpu.memory_space<vmem>>, %arg3: memref<8x8x32xf32, #tpu.memory_space<vmem>>, %arg4: memref<8x32xf32, #tpu.memory_space<vmem>>, %arg5: memref<8x32xf32, #tpu.memory_space<vmem>>) attributes {dimension_semantics = [#tpu.dimension_semantics<arbitrary>], iteration_bounds = array<i64: 1>, scalar_prefetch = 0 : i64, scratch_operands = 2 : i64, tpu.core_type = #tpu.core_type<tc>, window_params = [{pipeline_mode = #tpu.pipeline_mode<synchronous>, transform_indices = @transform_0, window_bounds = array<i64: 8, 128>}, {pipeline_mode = #tpu.pipeline_mode<synchronous>, transform_indices = @transform_1, window_bounds = array<i64: 32, 128>}, {transform_indices = @transform_2, window_bounds = array<i64: 8, 8, 32>}]} {
    %c0_i32 = arith.constant 0 : i32
    %0 = arith.cmpi eq, %arg0, %c0_i32 : i32
    %1 = arith.extui %0 : i1 to i32
    %c0_i32_0 = arith.constant 0 : i32
    %2 = arith.cmpi ne, %1, %c0_i32_0 : i32
    scf.if %2 {
      %cst_60 = arith.constant 0.000000e+00 : f32
      %193 = vector.broadcast %cst_60 : f32 to vector<8x32xf32>
      %c0_61 = arith.constant 0 : index
      %c0_62 = arith.constant 0 : index
      %194 = vector.load %arg4[%c0_61, %c0_62] : memref<8x32xf32, #tpu.memory_space<vmem>>, vector<8x32xf32>
      tpu.vector_store %arg4[%c0_61, %c0_62], %193 {strides = array<i32>} : memref<8x32xf32, #tpu.memory_space<vmem>>, vector<8x32xf32>,
      %cst_63 = arith.constant 0.000000e+00 : f32
      %195 = vector.broadcast %cst_63 : f32 to vector<8x32xf32>
      %c0_64 = arith.constant 0 : index
      %c0_65 = arith.constant 0 : index
      %196 = vector.load %arg5[%c0_64, %c0_65] : memref<8x32xf32, #tpu.memory_space<vmem>>, vector<8x32xf32>
      tpu.vector_store %arg5[%c0_64, %c0_65], %195 {strides = array<i32>} : memref<8x32xf32, #tpu.memory_space<vmem>>, vector<8x32xf32>,
    } else {
    }
    %c0 = arith.constant 0 : index
    %c0_1 = arith.constant 0 : index
    %3 = vector.load %arg1[%c0, %c0_1] : memref<8x128xf32, #tpu.memory_space<vmem>>, vector<8x128xf32>
    %c0_2 = arith.constant 0 : index
    %c0_3 = arith.constant 0 : index
    %4 = vector.load %arg2[%c0_2, %c0_3] : memref<32x128xf32, #tpu.memory_space<vmem>>, vector<32x128xf32>
    %c0_4 = arith.constant 0 : index
    %c0_5 = arith.constant 0 : index
    %5 = vector.load %arg4[%c0_4, %c0_5] : memref<8x32xf32, #tpu.memory_space<vmem>>, vector<8x32xf32>
    %c0_6 = arith.constant 0 : index
    %c0_7 = arith.constant 0 : index
    %6 = vector.load %arg5[%c0_6, %c0_7] : memref<8x32xf32, #tpu.memory_space<vmem>>, vector<8x32xf32>
    %cst = arith.constant dense<0.000000e+00> : vector<8x128xf32>
    %7 = tpu.matmul %5, %4, %cst {dimension_numbers = #tpu.dot_dimension_numbers<[1], [0], [0], [1], [0, 0, 1, 1], [], []>} : vector<8x32xf32>, vector<32x128xf32>, vector<8x128xf32> -> vector<8x128xf32>
    %8 = arith.addf %3, %7 : vector<8x128xf32>
    %9 = arith.negf %8 : vector<8x128xf32>
    %10 = math.exp %9 : vector<8x128xf32>
    %cst_8 = arith.constant 1.000000e+00 : f32
    %11 = vector.broadcast %cst_8 : f32 to vector<8x128xf32>
    %12 = arith.addf %11, %10 : vector<8x128xf32>
    %13 = arith.divf %11, %12 : vector<8x128xf32>
    %14 = vector.extract_strided_slice %13 {offsets = [0, 0], sizes = [8, 32], strides = [1, 1]} : vector<8x128xf32> to vector<8x32xf32>
    %15 = vector.extract_strided_slice %13 {offsets = [0, 32], sizes = [8, 32], strides = [1, 1]} : vector<8x128xf32> to vector<8x32xf32>
    %16 = vector.extract_strided_slice %13 {offsets = [0, 64], sizes = [8, 32], strides = [1, 1]} : vector<8x128xf32> to vector<8x32xf32>
    %17 = vector.extract_strided_slice %13 {offsets = [0, 96], sizes = [8, 32], strides = [1, 1]} : vector<8x128xf32> to vector<8x32xf32>
    %cst_9 = arith.constant 2.000000e+00 : f32
    %18 = vector.broadcast %cst_9 : f32 to vector<8x32xf32>
    %19 = arith.mulf %18, %17 : vector<8x32xf32>
    %cst_10 = arith.constant 1.000000e+00 : f32
    %20 = vector.broadcast %cst_10 : f32 to vector<8x32xf32>
    %21 = arith.subf %19, %20 : vector<8x32xf32>
    %22 = arith.mulf %15, %6 : vector<8x32xf32>
    %23 = arith.mulf %14, %21 : vector<8x32xf32>
    %24 = arith.addf %22, %23 : vector<8x32xf32>
    %25 = math.tanh %24 : vector<8x32xf32>
    %26 = arith.mulf %16, %25 : vector<8x32xf32>
    %c0_11 = arith.constant 0 : index
    %c0_12 = arith.constant 0 : index
    %c0_13 = arith.constant 0 : index
    %27 = vector.load %arg3[%c0_11, %c0_12, %c0_13] : memref<8x8x32xf32, #tpu.memory_space<vmem>>, vector<8x1x32xf32>
    %28 = vector.shape_cast %27 : vector<8x1x32xf32> to vector<8x32xf32>
    %29 = vector.shape_cast %26 : vector<8x32xf32> to vector<8x1x32xf32>
    tpu.vector_store %arg3[%c0_11, %c0_12, %c0_13], %29 {strides = array<i32>} : memref<8x8x32xf32, #tpu.memory_space<vmem>>, vector<8x1x32xf32>,
    %cst_14 = arith.constant dense<0.000000e+00> : vector<8x128xf32>
    %30 = tpu.matmul %26, %4, %cst_14 {dimension_numbers = #tpu.dot_dimension_numbers<[1], [0], [0], [1], [0, 0, 1, 1], [], []>} : vector<8x32xf32>, vector<32x128xf32>, vector<8x128xf32> -> vector<8x128xf32>
    %31 = arith.addf %3, %30 : vector<8x128xf32>
    %32 = arith.negf %31 : vector<8x128xf32>
    %33 = math.exp %32 : vector<8x128xf32>
    %cst_15 = arith.constant 1.000000e+00 : f32
    %34 = vector.broadcast %cst_15 : f32 to vector<8x128xf32>
    %35 = arith.addf %34, %33 : vector<8x128xf32>
    %36 = arith.divf %34, %35 : vector<8x128xf32>
    %37 = vector.extract_strided_slice %36 {offsets = [0, 0], sizes = [8, 32], strides = [1, 1]} : vector<8x128xf32> to vector<8x32xf32>
    %38 = vector.extract_strided_slice %36 {offsets = [0, 32], sizes = [8, 32], strides = [1, 1]} : vector<8x128xf32> to vector<8x32xf32>
    %39 = vector.extract_strided_slice %36 {offsets = [0, 64], sizes = [8, 32], strides = [1, 1]} : vector<8x128xf32> to vector<8x32xf32>
    %40 = vector.extract_strided_slice %36 {offsets = [0, 96], sizes = [8, 32], strides = [1, 1]} : vector<8x128xf32> to vector<8x32xf32>
    %cst_16 = arith.constant 2.000000e+00 : f32
    %41 = vector.broadcast %cst_16 : f32 to vector<8x32xf32>
    %42 = arith.mulf %41, %40 : vector<8x32xf32>
    %cst_17 = arith.constant 1.000000e+00 : f32
    %43 = vector.broadcast %cst_17 : f32 to vector<8x32xf32>
    %44 = arith.subf %42, %43 : vector<8x32xf32>
    %45 = arith.mulf %38, %24 : vector<8x32xf32>
    %46 = arith.mulf %37, %44 : vector<8x32xf32>
    %47 = arith.addf %45, %46 : vector<8x32xf32>
    %48 = math.tanh %47 : vector<8x32xf32>
    %49 = arith.mulf %39, %48 : vector<8x32xf32>
    %c0_18 = arith.constant 0 : index
    %c1 = arith.constant 1 : index
    %c0_19 = arith.constant 0 : index
    %50 = vector.load %arg3[%c0_18, %c1, %c0_19] : memref<8x8x32xf32, #tpu.memory_space<vmem>>, vector<8x1x32xf32>
    %51 = vector.shape_cast %50 : vector<8x1x32xf32> to vector<8x32xf32>
    %52 = vector.shape_cast %49 : vector<8x32xf32> to vector<8x1x32xf32>
    tpu.vector_store %arg3[%c0_18, %c1, %c0_19], %52 {strides = array<i32>} : memref<8x8x32xf32, #tpu.memory_space<vmem>>, vector<8x1x32xf32>,
    %cst_20 = arith.constant dense<0.000000e+00> : vector<8x128xf32>
    %53 = tpu.matmul %49, %4, %cst_20 {dimension_numbers = #tpu.dot_dimension_numbers<[1], [0], [0], [1], [0, 0, 1, 1], [], []>} : vector<8x32xf32>, vector<32x128xf32>, vector<8x128xf32> -> vector<8x128xf32>
    %54 = arith.addf %3, %53 : vector<8x128xf32>
    %55 = arith.negf %54 : vector<8x128xf32>
    %56 = math.exp %55 : vector<8x128xf32>
    %cst_21 = arith.constant 1.000000e+00 : f32
    %57 = vector.broadcast %cst_21 : f32 to vector<8x128xf32>
    %58 = arith.addf %57, %56 : vector<8x128xf32>
    %59 = arith.divf %57, %58 : vector<8x128xf32>
    %60 = vector.extract_strided_slice %59 {offsets = [0, 0], sizes = [8, 32], strides = [1, 1]} : vector<8x128xf32> to vector<8x32xf32>
    %61 = vector.extract_strided_slice %59 {offsets = [0, 32], sizes = [8, 32], strides = [1, 1]} : vector<8x128xf32> to vector<8x32xf32>
    %62 = vector.extract_strided_slice %59 {offsets = [0, 64], sizes = [8, 32], strides = [1, 1]} : vector<8x128xf32> to vector<8x32xf32>
    %63 = vector.extract_strided_slice %59 {offsets = [0, 96], sizes = [8, 32], strides = [1, 1]} : vector<8x128xf32> to vector<8x32xf32>
    %cst_22 = arith.constant 2.000000e+00 : f32
    %64 = vector.broadcast %cst_22 : f32 to vector<8x32xf32>
    %65 = arith.mulf %64, %63 : vector<8x32xf32>
    %cst_23 = arith.constant 1.000000e+00 : f32
    %66 = vector.broadcast %cst_23 : f32 to vector<8x32xf32>
    %67 = arith.subf %65, %66 : vector<8x32xf32>
    %68 = arith.mulf %61, %47 : vector<8x32xf32>
    %69 = arith.mulf %60, %67 : vector<8x32xf32>
    %70 = arith.addf %68, %69 : vector<8x32xf32>
    %71 = math.tanh %70 : vector<8x32xf32>
    %72 = arith.mulf %62, %71 : vector<8x32xf32>
    %c0_24 = arith.constant 0 : index
    %c2 = arith.constant 2 : index
    %c0_25 = arith.constant 0 : index
    %73 = vector.load %arg3[%c0_24, %c2, %c0_25] : memref<8x8x32xf32, #tpu.memory_space<vmem>>, vector<8x1x32xf32>
    %74 = vector.shape_cast %73 : vector<8x1x32xf32> to vector<8x32xf32>
    %75 = vector.shape_cast %72 : vector<8x32xf32> to vector<8x1x32xf32>
    tpu.vector_store %arg3[%c0_24, %c2, %c0_25], %75 {strides = array<i32>} : memref<8x8x32xf32, #tpu.memory_space<vmem>>, vector<8x1x32xf32>,
    %cst_26 = arith.constant dense<0.000000e+00> : vector<8x128xf32>
    %76 = tpu.matmul %72, %4, %cst_26 {dimension_numbers = #tpu.dot_dimension_numbers<[1], [0], [0], [1], [0, 0, 1, 1], [], []>} : vector<8x32xf32>, vector<32x128xf32>, vector<8x128xf32> -> vector<8x128xf32>
    %77 = arith.addf %3, %76 : vector<8x128xf32>
    %78 = arith.negf %77 : vector<8x128xf32>
    %79 = math.exp %78 : vector<8x128xf32>
    %cst_27 = arith.constant 1.000000e+00 : f32
    %80 = vector.broadcast %cst_27 : f32 to vector<8x128xf32>
    %81 = arith.addf %80, %79 : vector<8x128xf32>
    %82 = arith.divf %80, %81 : vector<8x128xf32>
    %83 = vector.extract_strided_slice %82 {offsets = [0, 0], sizes = [8, 32], strides = [1, 1]} : vector<8x128xf32> to vector<8x32xf32>
    %84 = vector.extract_strided_slice %82 {offsets = [0, 32], sizes = [8, 32], strides = [1, 1]} : vector<8x128xf32> to vector<8x32xf32>
    %85 = vector.extract_strided_slice %82 {offsets = [0, 64], sizes = [8, 32], strides = [1, 1]} : vector<8x128xf32> to vector<8x32xf32>
    %86 = vector.extract_strided_slice %82 {offsets = [0, 96], sizes = [8, 32], strides = [1, 1]} : vector<8x128xf32> to vector<8x32xf32>
    %cst_28 = arith.constant 2.000000e+00 : f32
    %87 = vector.broadcast %cst_28 : f32 to vector<8x32xf32>
    %88 = arith.mulf %87, %86 : vector<8x32xf32>
    %cst_29 = arith.constant 1.000000e+00 : f32
    %89 = vector.broadcast %cst_29 : f32 to vector<8x32xf32>
    %90 = arith.subf %88, %89 : vector<8x32xf32>
    %91 = arith.mulf %84, %70 : vector<8x32xf32>
    %92 = arith.mulf %83, %90 : vector<8x32xf32>
    %93 = arith.addf %91, %92 : vector<8x32xf32>
    %94 = math.tanh %93 : vector<8x32xf32>
    %95 = arith.mulf %85, %94 : vector<8x32xf32>
    %c0_30 = arith.constant 0 : index
    %c3 = arith.constant 3 : index
    %c0_31 = arith.constant 0 : index
    %96 = vector.load %arg3[%c0_30, %c3, %c0_31] : memref<8x8x32xf32, #tpu.memory_space<vmem>>, vector<8x1x32xf32>
    %97 = vector.shape_cast %96 : vector<8x1x32xf32> to vector<8x32xf32>
    %98 = vector.shape_cast %95 : vector<8x32xf32> to vector<8x1x32xf32>
    tpu.vector_store %arg3[%c0_30, %c3, %c0_31], %98 {strides = array<i32>} : memref<8x8x32xf32, #tpu.memory_space<vmem>>, vector<8x1x32xf32>,
    %cst_32 = arith.constant dense<0.000000e+00> : vector<8x128xf32>
    %99 = tpu.matmul %95, %4, %cst_32 {dimension_numbers = #tpu.dot_dimension_numbers<[1], [0], [0], [1], [0, 0, 1, 1], [], []>} : vector<8x32xf32>, vector<32x128xf32>, vector<8x128xf32> -> vector<8x128xf32>
    %100 = arith.addf %3, %99 : vector<8x128xf32>
    %101 = arith.negf %100 : vector<8x128xf32>
    %102 = math.exp %101 : vector<8x128xf32>
    %cst_33 = arith.constant 1.000000e+00 : f32
    %103 = vector.broadcast %cst_33 : f32 to vector<8x128xf32>
    %104 = arith.addf %103, %102 : vector<8x128xf32>
    %105 = arith.divf %103, %104 : vector<8x128xf32>
    %106 = vector.extract_strided_slice %105 {offsets = [0, 0], sizes = [8, 32], strides = [1, 1]} : vector<8x128xf32> to vector<8x32xf32>
    %107 = vector.extract_strided_slice %105 {offsets = [0, 32], sizes = [8, 32], strides = [1, 1]} : vector<8x128xf32> to vector<8x32xf32>
    %108 = vector.extract_strided_slice %105 {offsets = [0, 64], sizes = [8, 32], strides = [1, 1]} : vector<8x128xf32> to vector<8x32xf32>
    %109 = vector.extract_strided_slice %105 {offsets = [0, 96], sizes = [8, 32], strides = [1, 1]} : vector<8x128xf32> to vector<8x32xf32>
    %cst_34 = arith.constant 2.000000e+00 : f32
    %110 = vector.broadcast %cst_34 : f32 to vector<8x32xf32>
    %111 = arith.mulf %110, %109 : vector<8x32xf32>
    %cst_35 = arith.constant 1.000000e+00 : f32
    %112 = vector.broadcast %cst_35 : f32 to vector<8x32xf32>
    %113 = arith.subf %111, %112 : vector<8x32xf32>
    %114 = arith.mulf %107, %93 : vector<8x32xf32>
    %115 = arith.mulf %106, %113 : vector<8x32xf32>
    %116 = arith.addf %114, %115 : vector<8x32xf32>
    %117 = math.tanh %116 : vector<8x32xf32>
    %118 = arith.mulf %108, %117 : vector<8x32xf32>
    %c0_36 = arith.constant 0 : index
    %c4 = arith.constant 4 : index
    %c0_37 = arith.constant 0 : index
    %119 = vector.load %arg3[%c0_36, %c4, %c0_37] : memref<8x8x32xf32, #tpu.memory_space<vmem>>, vector<8x1x32xf32>
    %120 = vector.shape_cast %119 : vector<8x1x32xf32> to vector<8x32xf32>
    %121 = vector.shape_cast %118 : vector<8x32xf32> to vector<8x1x32xf32>
    tpu.vector_store %arg3[%c0_36, %c4, %c0_37], %121 {strides = array<i32>} : memref<8x8x32xf32, #tpu.memory_space<vmem>>, vector<8x1x32xf32>,
    %cst_38 = arith.constant dense<0.000000e+00> : vector<8x128xf32>
    %122 = tpu.matmul %118, %4, %cst_38 {dimension_numbers = #tpu.dot_dimension_numbers<[1], [0], [0], [1], [0, 0, 1, 1], [], []>} : vector<8x32xf32>, vector<32x128xf32>, vector<8x128xf32> -> vector<8x128xf32>
    %123 = arith.addf %3, %122 : vector<8x128xf32>
    %124 = arith.negf %123 : vector<8x128xf32>
    %125 = math.exp %124 : vector<8x128xf32>
    %cst_39 = arith.constant 1.000000e+00 : f32
    %126 = vector.broadcast %cst_39 : f32 to vector<8x128xf32>
    %127 = arith.addf %126, %125 : vector<8x128xf32>
    %128 = arith.divf %126, %127 : vector<8x128xf32>
    %129 = vector.extract_strided_slice %128 {offsets = [0, 0], sizes = [8, 32], strides = [1, 1]} : vector<8x128xf32> to vector<8x32xf32>
    %130 = vector.extract_strided_slice %128 {offsets = [0, 32], sizes = [8, 32], strides = [1, 1]} : vector<8x128xf32> to vector<8x32xf32>
    %131 = vector.extract_strided_slice %128 {offsets = [0, 64], sizes = [8, 32], strides = [1, 1]} : vector<8x128xf32> to vector<8x32xf32>
    %132 = vector.extract_strided_slice %128 {offsets = [0, 96], sizes = [8, 32], strides = [1, 1]} : vector<8x128xf32> to vector<8x32xf32>
    %cst_40 = arith.constant 2.000000e+00 : f32
    %133 = vector.broadcast %cst_40 : f32 to vector<8x32xf32>
    %134 = arith.mulf %133, %132 : vector<8x32xf32>
    %cst_41 = arith.constant 1.000000e+00 : f32
    %135 = vector.broadcast %cst_41 : f32 to vector<8x32xf32>
    %136 = arith.subf %134, %135 : vector<8x32xf32>
    %137 = arith.mulf %130, %116 : vector<8x32xf32>
    %138 = arith.mulf %129, %136 : vector<8x32xf32>
    %139 = arith.addf %137, %138 : vector<8x32xf32>
    %140 = math.tanh %139 : vector<8x32xf32>
    %141 = arith.mulf %131, %140 : vector<8x32xf32>
    %c0_42 = arith.constant 0 : index
    %c5 = arith.constant 5 : index
    %c0_43 = arith.constant 0 : index
    %142 = vector.load %arg3[%c0_42, %c5, %c0_43] : memref<8x8x32xf32, #tpu.memory_space<vmem>>, vector<8x1x32xf32>
    %143 = vector.shape_cast %142 : vector<8x1x32xf32> to vector<8x32xf32>
    %144 = vector.shape_cast %141 : vector<8x32xf32> to vector<8x1x32xf32>
    tpu.vector_store %arg3[%c0_42, %c5, %c0_43], %144 {strides = array<i32>} : memref<8x8x32xf32, #tpu.memory_space<vmem>>, vector<8x1x32xf32>,
    %cst_44 = arith.constant dense<0.000000e+00> : vector<8x128xf32>
    %145 = tpu.matmul %141, %4, %cst_44 {dimension_numbers = #tpu.dot_dimension_numbers<[1], [0], [0], [1], [0, 0, 1, 1], [], []>} : vector<8x32xf32>, vector<32x128xf32>, vector<8x128xf32> -> vector<8x128xf32>
    %146 = arith.addf %3, %145 : vector<8x128xf32>
    %147 = arith.negf %146 : vector<8x128xf32>
    %148 = math.exp %147 : vector<8x128xf32>
    %cst_45 = arith.constant 1.000000e+00 : f32
    %149 = vector.broadcast %cst_45 : f32 to vector<8x128xf32>
    %150 = arith.addf %149, %148 : vector<8x128xf32>
    %151 = arith.divf %149, %150 : vector<8x128xf32>
    %152 = vector.extract_strided_slice %151 {offsets = [0, 0], sizes = [8, 32], strides = [1, 1]} : vector<8x128xf32> to vector<8x32xf32>
    %153 = vector.extract_strided_slice %151 {offsets = [0, 32], sizes = [8, 32], strides = [1, 1]} : vector<8x128xf32> to vector<8x32xf32>
    %154 = vector.extract_strided_slice %151 {offsets = [0, 64], sizes = [8, 32], strides = [1, 1]} : vector<8x128xf32> to vector<8x32xf32>
    %155 = vector.extract_strided_slice %151 {offsets = [0, 96], sizes = [8, 32], strides = [1, 1]} : vector<8x128xf32> to vector<8x32xf32>
    %cst_46 = arith.constant 2.000000e+00 : f32
    %156 = vector.broadcast %cst_46 : f32 to vector<8x32xf32>
    %157 = arith.mulf %156, %155 : vector<8x32xf32>
    %cst_47 = arith.constant 1.000000e+00 : f32
    %158 = vector.broadcast %cst_47 : f32 to vector<8x32xf32>
    %159 = arith.subf %157, %158 : vector<8x32xf32>
    %160 = arith.mulf %153, %139 : vector<8x32xf32>
    %161 = arith.mulf %152, %159 : vector<8x32xf32>
    %162 = arith.addf %160, %161 : vector<8x32xf32>
    %163 = math.tanh %162 : vector<8x32xf32>
    %164 = arith.mulf %154, %163 : vector<8x32xf32>
    %c0_48 = arith.constant 0 : index
    %c6 = arith.constant 6 : index
    %c0_49 = arith.constant 0 : index
    %165 = vector.load %arg3[%c0_48, %c6, %c0_49] : memref<8x8x32xf32, #tpu.memory_space<vmem>>, vector<8x1x32xf32>
    %166 = vector.shape_cast %165 : vector<8x1x32xf32> to vector<8x32xf32>
    %167 = vector.shape_cast %164 : vector<8x32xf32> to vector<8x1x32xf32>
    tpu.vector_store %arg3[%c0_48, %c6, %c0_49], %167 {strides = array<i32>} : memref<8x8x32xf32, #tpu.memory_space<vmem>>, vector<8x1x32xf32>,
    %cst_50 = arith.constant dense<0.000000e+00> : vector<8x128xf32>
    %168 = tpu.matmul %164, %4, %cst_50 {dimension_numbers = #tpu.dot_dimension_numbers<[1], [0], [0], [1], [0, 0, 1, 1], [], []>} : vector<8x32xf32>, vector<32x128xf32>, vector<8x128xf32> -> vector<8x128xf32>
    %169 = arith.addf %3, %168 : vector<8x128xf32>
    %170 = arith.negf %169 : vector<8x128xf32>
    %171 = math.exp %170 : vector<8x128xf32>
    %cst_51 = arith.constant 1.000000e+00 : f32
    %172 = vector.broadcast %cst_51 : f32 to vector<8x128xf32>
    %173 = arith.addf %172, %171 : vector<8x128xf32>
    %174 = arith.divf %172, %173 : vector<8x128xf32>
    %175 = vector.extract_strided_slice %174 {offsets = [0, 0], sizes = [8, 32], strides = [1, 1]} : vector<8x128xf32> to vector<8x32xf32>
    %176 = vector.extract_strided_slice %174 {offsets = [0, 32], sizes = [8, 32], strides = [1, 1]} : vector<8x128xf32> to vector<8x32xf32>
    %177 = vector.extract_strided_slice %174 {offsets = [0, 64], sizes = [8, 32], strides = [1, 1]} : vector<8x128xf32> to vector<8x32xf32>
    %178 = vector.extract_strided_slice %174 {offsets = [0, 96], sizes = [8, 32], strides = [1, 1]} : vector<8x128xf32> to vector<8x32xf32>
    %cst_52 = arith.constant 2.000000e+00 : f32
    %179 = vector.broadcast %cst_52 : f32 to vector<8x32xf32>
    %180 = arith.mulf %179, %178 : vector<8x32xf32>
    %cst_53 = arith.constant 1.000000e+00 : f32
    %181 = vector.broadcast %cst_53 : f32 to vector<8x32xf32>
    %182 = arith.subf %180, %181 : vector<8x32xf32>
    %183 = arith.mulf %176, %162 : vector<8x32xf32>
    %184 = arith.mulf %175, %182 : vector<8x32xf32>
    %185 = arith.addf %183, %184 : vector<8x32xf32>
    %186 = math.tanh %185 : vector<8x32xf32>
    %187 = arith.mulf %177, %186 : vector<8x32xf32>
    %c0_54 = arith.constant 0 : index
    %c7 = arith.constant 7 : index
    %c0_55 = arith.constant 0 : index
    %188 = vector.load %arg3[%c0_54, %c7, %c0_55] : memref<8x8x32xf32, #tpu.memory_space<vmem>>, vector<8x1x32xf32>
    %189 = vector.shape_cast %188 : vector<8x1x32xf32> to vector<8x32xf32>
    %190 = vector.shape_cast %187 : vector<8x32xf32> to vector<8x1x32xf32>
    tpu.vector_store %arg3[%c0_54, %c7, %c0_55], %190 {strides = array<i32>} : memref<8x8x32xf32, #tpu.memory_space<vmem>>, vector<8x1x32xf32>,
    %c0_56 = arith.constant 0 : index
    %c0_57 = arith.constant 0 : index
    %191 = vector.load %arg4[%c0_56, %c0_57] : memref<8x32xf32, #tpu.memory_space<vmem>>, vector<8x32xf32>
    tpu.vector_store %arg4[%c0_56, %c0_57], %187 {strides = array<i32>} : memref<8x32xf32, #tpu.memory_space<vmem>>, vector<8x32xf32>,
    %c0_58 = arith.constant 0 : index
    %c0_59 = arith.constant 0 : index
    %192 = vector.load %arg5[%c0_58, %c0_59] : memref<8x32xf32, #tpu.memory_space<vmem>>, vector<8x32xf32>
    tpu.vector_store %arg5[%c0_58, %c0_59], %185 {strides = array<i32>} : memref<8x32xf32, #tpu.memory_space<vmem>>, vector<8x32xf32>,
    return
  }
  func.func @transform_0(%arg0: i32) -> (i32, i32) {
    %c0_i32 = arith.constant 0 : i32
    %c0_i32_0 = arith.constant 0 : i32
    %c0_i32_1 = arith.constant 0 : i32
    return %c0_i32, %c0_i32_0 : i32, i32
  }
  func.func @transform_1(%arg0: i32) -> (i32, i32) {
    %c0_i32 = arith.constant 0 : i32
    %c0_i32_0 = arith.constant 0 : i32
    %c0_i32_1 = arith.constant 0 : i32
    return %c0_i32, %c0_i32_0 : i32, i32
  }
  func.func @transform_2(%arg0: i32) -> (i32, i32, i32) {
    %c0_i32 = arith.constant 0 : i32
    %c0_i32_0 = arith.constant 0 : i32
    %c0_i32_1 = arith.constant 0 : i32
    return %c0_i32, %arg0, %c0_i32_0 : i32, i32, i32
  }
}

</mosaic_0001>

<llo_original>
// kernel: tpu_custom_call.1
$region0: #{tpu_custom_call.1}
  #allocation0 [shape = 'u32[]', space=smem, size = 0x4, offset = 0x4, fixed_abs, tag = 'smem constant byte address 0x4 - core index']
  #allocation1 [shape = 'u32[144,128]{1,0:T(1,128)}', space=vmem, size = 0x12000, scoped, tag = 'internal scratch']
  #allocation2 [shape = 'f32[8,32]{1,0:T(8,128)}', space=vmem, size = 0x1000, scoped, tag = 'scratch operand']
  #allocation3 [shape = 'f32[8,32]{1,0:T(8,128)}', space=vmem, size = 0x1000, scoped, tag = 'scratch operand']
  %s0 = inlined_call_operand.hbm [shape: f32[8,128], index: 0, kind: input, shape index: {}]
  %s1 = inlined_call_operand.hbm [shape: f32[32,128], index: 1, kind: input, shape index: {}]
  %s2 = inlined_call_operand.hbm [shape: f32[8,8,32], index: 2, kind: output, shape index: {}]
  %s3 = sld [smem:[#allocation0]]
  $region30: #{tpu_custom_call.1} parent=0
    _
  %s5 = ssub.s32 1, %s3
  %s6 = scalar_select 0, %s5, %s3
  $region1: #{tpu_custom_call.1} parent=0
    #allocation4 [shape = 'u8[4096]{0}', space=vmem, size = 0x1000, scoped, tag = 'input window, operand 0, single buffered']
    #allocation5 [shape = 's32[1]{0}', space=sflag, size = 0x4, scoped, tag = 'scoped memory for tpu_custom_call.1']
    #allocation6 [shape = 's32[1]{0}', space=sflag, size = 0x4, scoped, tag = 'scoped memory for tpu_custom_call.1']
    #allocation7 [shape = 'u8[16384]{0}', space=vmem, size = 0x4000, scoped, tag = 'input window, operand 1, single buffered']
    #allocation8 [shape = 's32[1]{0}', space=sflag, size = 0x4, scoped, tag = 'scoped memory for tpu_custom_call.1']
    #allocation9 [shape = 'u8[32768]{0}', space=vmem, size = 0x8000, scoped, tag = 'output window, operand 0, single buffered']
    %7 = vsyncpa [#allocation5], 0
    %8 = vsyncpa [#allocation8], 0
    %9 = vsyncpa [#allocation6], 0
    // Predicated region
    $region2: #{tpu_custom_call.1} parent=1 // pred_check
      _
    $region3: #{tpu_custom_call.1} parent=1 // pred_check_branch
      %11 = sbr.rel (0) target = $region5
    $region4: #{tpu_custom_call.1} parent=1 // pred_region
      %s13 = ssub.s32 128, 128
      %14 = vsyncadd [#allocation5], %s13
      %s16 = sshll.u32 [#allocation4], 4
      %s17 = int_to_ptr.vmem [resolvable:$true] %s16
      %19 = dma.hbm_to_vmem [thread:$0]  %s0, 128, %s17, [#allocation5]
    $region5: #{tpu_custom_call.1} parent=1 // pred_fallthru
      _
    // Predicated region
    $region6: #{tpu_custom_call.1} parent=1 // pred_check
      _
    $region7: #{tpu_custom_call.1} parent=1 // pred_check_branch
      %21 = sbr.rel (0) target = $region9
    $region8: #{tpu_custom_call.1} parent=1 // pred_region
      %s23 = ssub.s32 512, 512
      %24 = vsyncadd [#allocation8], %s23
      %s25 = sshll.u32 [#allocation7], 4
      %s26 = int_to_ptr.vmem [resolvable:$true] %s25
      %31 = dma.hbm_to_vmem [thread:$0]  %s1, 512, %s26, [#allocation8], 128, 128, 8
    $region9: #{tpu_custom_call.1} parent=1 // pred_fallthru
      _
    // Predicated region
    $region10: #{tpu_custom_call.1} parent=1 // pred_check
      _
    $region11: #{tpu_custom_call.1} parent=1 // pred_check_branch
      %33 = sbr.rel (0) target = $region13
    $region12: #{tpu_custom_call.1} parent=1 // pred_region
      %34 = dma.done [#allocation5], 128
    $region13: #{tpu_custom_call.1} parent=1 // pred_fallthru
      _
    // Predicated region
    $region14: #{tpu_custom_call.1} parent=1 // pred_check
      _
    $region15: #{tpu_custom_call.1} parent=1 // pred_check_branch
      %36 = sbr.rel (0) target = $region17
    $region16: #{tpu_custom_call.1} parent=1 // pred_region
      %37 = dma.done [#allocation8], 512
    $region17: #{tpu_custom_call.1} parent=1 // pred_fallthru
      _
    %p38 = scmp.eq.s32.totalorder 0, 0
    // Predicated region
    $region18: #{tpu_custom_call.1} parent=1 // pred_check
      %p39 = pneg %p38
    $region19: #{tpu_custom_call.1} parent=1 // pred_check_branch
      %41 = sbr.rel (%p39) target = $region21
    $region20: #{tpu_custom_call.1} parent=1 // pred_region
      %vm42 = vcmask 261120
      %43 = vst.msk [vmem:[#allocation2] sm:$0xff] %vm42, 0.0
      %44 = vst.msk [vmem:[#allocation3] sm:$0xff] %vm42, 0.0
    $region21: #{tpu_custom_call.1} parent=1 // pred_fallthru
      _
    %v45 = vld [vmem:[#allocation4] sm:$0xff]
    %v46 = vld [vmem:[#allocation7] sm:$0xff]
    %v47 = vld [vmem:[#allocation7 + $0x8] sm:$0xff]
    %v48 = vld [vmem:[#allocation7 + $0x10] sm:$0xff]
    %v49 = vld [vmem:[#allocation7 + $0x18] sm:$0xff]
    %v50 = vld [vmem:[#allocation2] sm:$0xff]
    %v51 = vld [vmem:[#allocation3] sm:$0xff]
    %vm52 = vcmask 261120
    %v54 = vsel %vm52, %v50, 0
    %56 = vmatprep.subr.mxu0 0.0
    %57 = vmatpush1.msra.mxu0 %v46
    %58 = vmatprep.subr.mxu0 0.0
    %59 = vmatpush1.msra.mxu0 %v47
    %60 = vmatprep.subr.mxu0 0.0
    %61 = vmatpush1.msra.mxu0 %v48
    %62 = vmatprep.subr.mxu0 0.0
    %63 = vmatpush1.msra.mxu0 %v49
    %64 = vmatprep.subr.mxu0 0.0
    %65 = vmatpush1.msra.mxu0 0.0
    %66 = vmatprep.subr.mxu0 0.0
    %67 = vmatpush1.msra.mxu0 0.0
    %68 = vmatprep.subr.mxu0 0.0
    %69 = vmatpush1.msra.mxu0 0.0
    %70 = vmatprep.subr.mxu0 0.0
    %71 = vmatpush1.msra.mxu0 0.0
    %72 = vmatprep.subr.mxu0 0.0
    %73 = vmatpush1.msra.mxu0 0.0
    %74 = vmatprep.subr.mxu0 0.0
    %75 = vmatpush1.msra.mxu0 0.0
    %76 = vmatprep.subr.mxu0 0.0
    %77 = vmatpush1.msra.mxu0 0.0
    %78 = vmatprep.subr.mxu0 0.0
    %79 = vmatpush1.msra.mxu0 0.0
    %80 = vmatprep.subr.mxu0 0.0
    %81 = vmatpush1.msra.mxu0 0.0
    %82 = vmatprep.subr.mxu0 0.0
    %83 = vmatpush1.msra.mxu0 0.0
    %84 = vmatprep.subr.mxu0 0.0
    %85 = vmatpush1.msra.mxu0 0.0
    %86 = vmatprep.subr.mxu0 0.0
    %87 = vmatpush1.msra.mxu0 0.0
    %88 = vmatprep.subr.mxu0 0.0
    %89 = vmatpush1.msra.mxu0 0.0
    %90 = vmatprep.subr.mxu0 0.0
    %91 = vmatpush1.msra.mxu0 0.0
    %92 = vmatprep.subr.mxu0 0.0
    %93 = vmatpush1.msra.mxu0 0.0
    %94 = vmatprep.subr.mxu0 0.0
    %95 = vmatpush1.msra.mxu0 0.0
    %96 = vmatprep.subr.mxu0 0.0
    %97 = vmatpush1.msra.mxu0 0.0
    %98 = vmatprep.subr.mxu0 0.0
    %99 = vmatpush1.msra.mxu0 0.0
    %100 = vmatprep.subr.mxu0 0.0
    %101 = vmatpush1.msra.mxu0 0.0
    %102 = vmatprep.subr.mxu0 0.0
    %103 = vmatpush1.msra.mxu0 0.0
    %104 = vmatprep.subr.mxu0 0.0
    %105 = vmatpush1.msra.mxu0 0.0
    %106 = vmatprep.subr.mxu0 0.0
    %107 = vmatpush1.msra.mxu0 0.0
    %108 = vmatprep.subr.mxu0 0.0
    %109 = vmatpush1.msra.mxu0 0.0
    %110 = vmatprep.subr.mxu0 0.0
    %111 = vmatpush1.msra.mxu0 0.0
    %112 = vmatprep.subr.mxu0 0.0
    %113 = vmatpush1.msra.mxu0 0.0
    %114 = vmatprep.subr.mxu0 0.0
    %115 = vmatpush1.msra.mxu0 0.0
    %116 = vmatprep.subr.mxu0 0.0
    %117 = vmatpush1.msra.mxu0 0.0
    %118 = vmatprep.subr.mxu0 0.0
    %119 = vmatpush1.msra.mxu0 0.0
    %120 = vmatprep.mubr.f32.mxu0 0.0
    %121 = vmatmul.mubr.f32.gmra.mrb[0].mxu0 %v54
    %v122 = vpop.f32.mrb[0].mxu0
    %v123 = vadd.f32 0.0, %v122
    %v124 = vpop.f32.mrb[0].mxu0
    %125 = vdwg.mxu0
    %v126 = vadd.f32 %v45, %v123
    %v127 = vxor.u32 %v126, 2147483648
    %v128 = vmul.f32 %v127, 1.442695
    %v129 = vpow.pop %v128
    %v130 = vadd.f32 %v129, 1.0
    %v131 = vrcp.pop %v130
    %v132 = vmul.f32 1.0, %v131
    %v133 = vmul.f32 %v132, 2.0
    %v134 = vsub.f32 %v133, 1.0
    %136 = vrot.lane.b32.xlu0 %v51, 32
    %v137 = vpop.permute.xlu0 %136
    %v139 = vmul.f32 %v132, %v137
    %141 = vrot.lane.b32.xlu0 %v134, 32
    %v142 = vpop.permute.xlu0 %141
    %v144 = vmul.f32 %v132, %v142
    %146 = vrot.lane.b32.xlu0 %v144, 32
    %v147 = vpop.permute.xlu0 %146
    %v149 = vadd.f32 %v139, %v147
    %v150 = vtanh.pop %v149
    %152 = vrot.lane.b32.xlu0 %v150, 32
    %v153 = vpop.permute.xlu0 %152
    %v155 = vmul.f32 %v132, %v153
    %v157 = vcombine.high %v155, %v155
    %v159 = vunpack.c.l.s4 1966171168
    %v160 = vunpack.c.0.s8 %v159
    %v161 = vlaneseq
    %v162 = vshrl.u32 %v161, 7
    %v163 = vsub.s32 %v160, %v162
    %v164 = vrot.slane %v155, %v163
    %v166 = vunpack.c.l.s4 1966171168
    %v167 = vunpack.c.0.s8 %v166
    %v168 = vlaneseq
    %v169 = vshrl.u32 %v168, 7
    %v170 = vsub.s32 %v167, %v169
    %v171 = vrot.slane %v157, %v170
    %v172 = vcombine.high %v164, %v164
    %v173 = vcombine.high %v171, %v171
    %v175 = vunpack.c.l.s4 1966171168
    %v176 = vunpack.c.0.s8 %v175
    %v177 = vlaneseq
    %v178 = vshrl.u32 %v177, 7
    %v179 = vsub.s32 %v176, %v178
    %v180 = vrot.slane %v164, %v179
    %v182 = vunpack.c.l.s4 1966171168
    %v183 = vunpack.c.0.s8 %v182
    %v184 = vlaneseq
    %v185 = vshrl.u32 %v184, 7
    %v186 = vsub.s32 %v183, %v185
    %v187 = vrot.slane %v171, %v186
    %v189 = vunpack.c.l.s4 1966171168
    %v190 = vunpack.c.0.s8 %v189
    %v191 = vlaneseq
    %v192 = vshrl.u32 %v191, 7
    %v193 = vsub.s32 %v190, %v192
    %v194 = vrot.slane %v172, %v193
    %v196 = vunpack.c.l.s4 1966171168
    %v197 = vunpack.c.0.s8 %v196
    %v198 = vlaneseq
    %v199 = vshrl.u32 %v198, 7
    %v200 = vsub.s32 %v197, %v199
    %v201 = vrot.slane %v173, %v200
    %v202 = vcombine.high %v180, %v180
    %v203 = vcombine.high %v187, %v187
    %v204 = vcombine.high %v194, %v194
    %v205 = vcombine.high %v201, %v201
    %v206 = vlaneseq
    %v207 = vshrl.u32 %v206, 7
    %v208 = vsub.s32 0, %v207
    %v209 = vrot.slane %v180, %v208
    %v210 = vlaneseq
    %v211 = vshrl.u32 %v210, 7
    %v212 = vsub.s32 0, %v211
    %v213 = vrot.slane %v194, %v212
    %v214 = vlaneseq
    %v215 = vshrl.u32 %v214, 7
    %v216 = vsub.s32 0, %v215
    %v217 = vrot.slane %v202, %v216
    %v218 = vlaneseq
    %v219 = vshrl.u32 %v218, 7
    %v220 = vsub.s32 0, %v219
    %v221 = vrot.slane %v204, %v220
    %v222 = vlaneseq
    %v223 = vshrl.u32 %v222, 7
    %v224 = vsub.s32 0, %v223
    %v225 = vrot.slane %v187, %v224
    %v226 = vlaneseq
    %v227 = vshrl.u32 %v226, 7
    %v228 = vsub.s32 0, %v227
    %v229 = vrot.slane %v201, %v228
    %v230 = vlaneseq
    %v231 = vshrl.u32 %v230, 7
    %v232 = vsub.s32 0, %v231
    %v233 = vrot.slane %v203, %v232
    %v234 = vlaneseq
    %v235 = vshrl.u32 %v234, 7
    %v236 = vsub.s32 0, %v235
    %v237 = vrot.slane %v205, %v236
    %238 = vrot.lane.b32.xlu0 %v209, 64
    %v239 = vpop.permute.xlu0 %238
    %240 = vrot.lane.b32.xlu0 %v213, 64
    %v241 = vpop.permute.xlu0 %240
    %242 = vrot.lane.b32.xlu0 %v217, 64
    %v243 = vpop.permute.xlu0 %242
    %244 = vrot.lane.b32.xlu0 %v221, 64
    %v245 = vpop.permute.xlu0 %244
    %246 = vrot.lane.b32.xlu0 %v225, 64
    %v247 = vpop.permute.xlu0 %246
    %248 = vrot.lane.b32.xlu0 %v229, 64
    %v249 = vpop.permute.xlu0 %248
    %250 = vrot.lane.b32.xlu0 %v233, 64
    %v251 = vpop.permute.xlu0 %250
    %252 = vrot.lane.b32.xlu0 %v237, 64
    %v253 = vpop.permute.xlu0 %252
    %vm262 = vcmask 253952
    %263 = vst.msk [vmem:[#allocation9] sm:$0x1] %vm262, %v239
    %264 = vst.msk [vmem:[#allocation9 + $0x8] sm:$0x1] %vm262, %v241
    %265 = vst.msk [vmem:[#allocation9 + $0x10] sm:$0x1] %vm262, %v243
    %266 = vst.msk [vmem:[#allocation9 + $0x18] sm:$0x1] %vm262, %v245
    %267 = vst.msk [vmem:[#allocation9 + $0x20] sm:$0x1] %vm262, %v247
    %268 = vst.msk [vmem:[#allocation9 + $0x28] sm:$0x1] %vm262, %v249
    %269 = vst.msk [vmem:[#allocation9 + $0x30] sm:$0x1] %vm262, %v251
    %270 = vst.msk [vmem:[#allocation9 + $0x38] sm:$0x1] %vm262, %v253
    %271 = vrot.lane.b32.xlu0 %v155, 64
    %v272 = vpop.permute.xlu0 %271
    %v273 = vsel %vm52, %v272, 0
    %275 = vmatprep.subr.mxu0 0.0
    %276 = vmatpush1.msra.mxu0 %v46
    %277 = vmatprep.subr.mxu0 0.0
    %278 = vmatpush1.msra.mxu0 %v47
    %279 = vmatprep.subr.mxu0 0.0
    %280 = vmatpush1.msra.mxu0 %v48
    %281 = vmatprep.subr.mxu0 0.0
    %282 = vmatpush1.msra.mxu0 %v49
    %283 = vmatprep.subr.mxu0 0.0
    %284 = vmatpush1.msra.mxu0 0.0
    %285 = vmatprep.subr.mxu0 0.0
    %286 = vmatpush1.msra.mxu0 0.0
    %287 = vmatprep.subr.mxu0 0.0
    %288 = vmatpush1.msra.mxu0 0.0
    %289 = vmatprep.subr.mxu0 0.0
    %290 = vmatpush1.msra.mxu0 0.0
    %291 = vmatprep.subr.mxu0 0.0
    %292 = vmatpush1.msra.mxu0 0.0
    %293 = vmatprep.subr.mxu0 0.0
    %294 = vmatpush1.msra.mxu0 0.0
    %295 = vmatprep.subr.mxu0 0.0
    %296 = vmatpush1.msra.mxu0 0.0
    %297 = vmatprep.subr.mxu0 0.0
    %298 = vmatpush1.msra.mxu0 0.0
    %299 = vmatprep.subr.mxu0 0.0
    %300 = vmatpush1.msra.mxu0 0.0
    %301 = vmatprep.subr.mxu0 0.0
    %302 = vmatpush1.msra.mxu0 0.0
    %303 = vmatprep.subr.mxu0 0.0
    %304 = vmatpush1.msra.mxu0 0.0
    %305 = vmatprep.subr.mxu0 0.0
    %306 = vmatpush1.msra.mxu0 0.0
    %307 = vmatprep.subr.mxu0 0.0
    %308 = vmatpush1.msra.mxu0 0.0
    %309 = vmatprep.subr.mxu0 0.0
    %310 = vmatpush1.msra.mxu0 0.0
    %311 = vmatprep.subr.mxu0 0.0
    %312 = vmatpush1.msra.mxu0 0.0
    %313 = vmatprep.subr.mxu0 0.0
    %314 = vmatpush1.msra.mxu0 0.0
    %315 = vmatprep.subr.mxu0 0.0
    %316 = vmatpush1.msra.mxu0 0.0
    %317 = vmatprep.subr.mxu0 0.0
    %318 = vmatpush1.msra.mxu0 0.0
    %319 = vmatprep.subr.mxu0 0.0
    %320 = vmatpush1.msra.mxu0 0.0
    %321 = vmatprep.subr.mxu0 0.0
    %322 = vmatpush1.msra.mxu0 0.0
    %323 = vmatprep.subr.mxu0 0.0
    %324 = vmatpush1.msra.mxu0 0.0
    %325 = vmatprep.subr.mxu0 0.0
    %326 = vmatpush1.msra.mxu0 0.0
    %327 = vmatprep.subr.mxu0 0.0
    %328 = vmatpush1.msra.mxu0 0.0
    %329 = vmatprep.subr.mxu0 0.0
    %330 = vmatpush1.msra.mxu0 0.0
    %331 = vmatprep.subr.mxu0 0.0
    %332 = vmatpush1.msra.mxu0 0.0
    %333 = vmatprep.subr.mxu0 0.0
    %334 = vmatpush1.msra.mxu0 0.0
    %335 = vmatprep.subr.mxu0 0.0
    %336 = vmatpush1.msra.mxu0 0.0
    %337 = vmatprep.subr.mxu0 0.0
    %338 = vmatpush1.msra.mxu0 0.0
    %339 = vmatprep.mubr.f32.mxu0 0.0
    %340 = vmatmul.mubr.f32.gmra.mrb[0].mxu0 %v273
    %v341 = vpop.f32.mrb[0].mxu0
    %v342 = vadd.f32 0.0, %v341
    %v343 = vpop.f32.mrb[0].mxu0
    %344 = vdwg.mxu0
    %v345 = vadd.f32 %v45, %v342
    %v346 = vxor.u32 %v345, 2147483648
    %v347 = vmul.f32 %v346, 1.442695
    %v348 = vpow.pop %v347
    %v349 = vadd.f32 %v348, 1.0
    %v350 = vrcp.pop %v349
    %v351 = vmul.f32 1.0, %v350
    %v352 = vmul.f32 %v351, 2.0
    %v353 = vsub.f32 %v352, 1.0
    %v354 = vmul.f32 %v351, %v149
    %356 = vrot.lane.b32.xlu0 %v353, 32
    %v357 = vpop.permute.xlu0 %356
    %v359 = vmul.f32 %v351, %v357
    %361 = vrot.lane.b32.xlu0 %v359, 32
    %v362 = vpop.permute.xlu0 %361
    %v364 = vadd.f32 %v354, %v362
    %v365 = vtanh.pop %v364
    %367 = vrot.lane.b32.xlu0 %v365, 32
    %v368 = vpop.permute.xlu0 %367
    %v370 = vmul.f32 %v351, %v368
    %v372 = vcombine.high %v370, %v370
    %v374 = vunpack.c.l.s4 1966171168
    %v375 = vunpack.c.0.s8 %v374
    %v376 = vlaneseq
    %v377 = vshrl.u32 %v376, 7
    %v378 = vsub.s32 %v375, %v377
    %v379 = vrot.slane %v370, %v378
    %v381 = vunpack.c.l.s4 1966171168
    %v382 = vunpack.c.0.s8 %v381
    %v383 = vlaneseq
    %v384 = vshrl.u32 %v383, 7
    %v385 = vsub.s32 %v382, %v384
    %v386 = vrot.slane %v372, %v385
    %v387 = vcombine.high %v379, %v379
    %v388 = vcombine.high %v386, %v386
    %v390 = vunpack.c.l.s4 1966171168
    %v391 = vunpack.c.0.s8 %v390
    %v392 = vlaneseq
    %v393 = vshrl.u32 %v392, 7
    %v394 = vsub.s32 %v391, %v393
    %v395 = vrot.slane %v379, %v394
    %v397 = vunpack.c.l.s4 1966171168
    %v398 = vunpack.c.0.s8 %v397
    %v399 = vlaneseq
    %v400 = vshrl.u32 %v399, 7
    %v401 = vsub.s32 %v398, %v400
    %v402 = vrot.slane %v386, %v401
    %v404 = vunpack.c.l.s4 1966171168
    %v405 = vunpack.c.0.s8 %v404
    %v406 = vlaneseq
    %v407 = vshrl.u32 %v406, 7
    %v408 = vsub.s32 %v405, %v407
    %v409 = vrot.slane %v387, %v408
    %v411 = vunpack.c.l.s4 1966171168
    %v412 = vunpack.c.0.s8 %v411
    %v413 = vlaneseq
    %v414 = vshrl.u32 %v413, 7
    %v415 = vsub.s32 %v412, %v414
    %v416 = vrot.slane %v388, %v415
    %v417 = vcombine.high %v395, %v395
    %v418 = vcombine.high %v402, %v402
    %v419 = vcombine.high %v409, %v409
    %v420 = vcombine.high %v416, %v416
    %v421 = vlaneseq
    %v422 = vshrl.u32 %v421, 7
    %v423 = vsub.s32 0, %v422
    %v424 = vrot.slane %v395, %v423
    %v425 = vlaneseq
    %v426 = vshrl.u32 %v425, 7
    %v427 = vsub.s32 0, %v426
    %v428 = vrot.slane %v409, %v427
    %v429 = vlaneseq
    %v430 = vshrl.u32 %v429, 7
    %v431 = vsub.s32 0, %v430
    %v432 = vrot.slane %v417, %v431
    %v433 = vlaneseq
    %v434 = vshrl.u32 %v433, 7
    %v435 = vsub.s32 0, %v434
    %v436 = vrot.slane %v419, %v435
    %v437 = vlaneseq
    %v438 = vshrl.u32 %v437, 7
    %v439 = vsub.s32 0, %v438
    %v440 = vrot.slane %v402, %v439
    %v441 = vlaneseq
    %v442 = vshrl.u32 %v441, 7
    %v443 = vsub.s32 0, %v442
    %v444 = vrot.slane %v416, %v443
    %v445 = vlaneseq
    %v446 = vshrl.u32 %v445, 7
    %v447 = vsub.s32 0, %v446
    %v448 = vrot.slane %v418, %v447
    %v449 = vlaneseq
    %v450 = vshrl.u32 %v449, 7
    %v451 = vsub.s32 0, %v450
    %v452 = vrot.slane %v420, %v451
    %453 = vrot.lane.b32.xlu0 %v424, 64
    %v454 = vpop.permute.xlu0 %453
    %455 = vrot.lane.b32.xlu0 %v428, 64
    %v456 = vpop.permute.xlu0 %455
    %457 = vrot.lane.b32.xlu0 %v432, 64
    %v458 = vpop.permute.xlu0 %457
    %459 = vrot.lane.b32.xlu0 %v436, 64
    %v460 = vpop.permute.xlu0 %459
    %461 = vrot.lane.b32.xlu0 %v440, 64
    %v462 = vpop.permute.xlu0 %461
    %463 = vrot.lane.b32.xlu0 %v444, 64
    %v464 = vpop.permute.xlu0 %463
    %465 = vrot.lane.b32.xlu0 %v448, 64
    %v466 = vpop.permute.xlu0 %465
    %467 = vrot.lane.b32.xlu0 %v452, 64
    %v468 = vpop.permute.xlu0 %467
    %477 = vst.msk [vmem:[#allocation9 + $0x1] sm:$0x1] %vm262, %v454
    %478 = vst.msk [vmem:[#allocation9 + $0x9] sm:$0x1] %vm262, %v456
    %479 = vst.msk [vmem:[#allocation9 + $0x11] sm:$0x1] %vm262, %v458
    %480 = vst.msk [vmem:[#allocation9 + $0x19] sm:$0x1] %vm262, %v460
    %481 = vst.msk [vmem:[#allocation9 + $0x21] sm:$0x1] %vm262, %v462
    %482 = vst.msk [vmem:[#allocation9 + $0x29] sm:$0x1] %vm262, %v464
    %483 = vst.msk [vmem:[#allocation9 + $0x31] sm:$0x1] %vm262, %v466
    %484 = vst.msk [vmem:[#allocation9 + $0x39] sm:$0x1] %vm262, %v468
    %485 = vrot.lane.b32.xlu0 %v370, 64
    %v486 = vpop.permute.xlu0 %485
    %v487 = vsel %vm52, %v486, 0
    %489 = vmatprep.subr.mxu0 0.0
    %490 = vmatpush1.msra.mxu0 %v46
    %491 = vmatprep.subr.mxu0 0.0
    %492 = vmatpush1.msra.mxu0 %v47
    %493 = vmatprep.subr.mxu0 0.0
    %494 = vmatpush1.msra.mxu0 %v48
    %495 = vmatprep.subr.mxu0 0.0
    %496 = vmatpush1.msra.mxu0 %v49
    %497 = vmatprep.subr.mxu0 0.0
    %498 = vmatpush1.msra.mxu0 0.0
    %499 = vmatprep.subr.mxu0 0.0
    %500 = vmatpush1.msra.mxu0 0.0
    %501 = vmatprep.subr.mxu0 0.0
    %502 = vmatpush1.msra.mxu0 0.0
    %503 = vmatprep.subr.mxu0 0.0
    %504 = vmatpush1.msra.mxu0 0.0
    %505 = vmatprep.subr.mxu0 0.0
    %506 = vmatpush1.msra.mxu0 0.0
    %507 = vmatprep.subr.mxu0 0.0
    %508 = vmatpush1.msra.mxu0 0.0
    %509 = vmatprep.subr.mxu0 0.0
    %510 = vmatpush1.msra.mxu0 0.0
    %511 = vmatprep.subr.mxu0 0.0
    %512 = vmatpush1.msra.mxu0 0.0
    %513 = vmatprep.subr.mxu0 0.0
    %514 = vmatpush1.msra.mxu0 0.0
    %515 = vmatprep.subr.mxu0 0.0
    %516 = vmatpush1.msra.mxu0 0.0
    %517 = vmatprep.subr.mxu0 0.0
    %518 = vmatpush1.msra.mxu0 0.0
    %519 = vmatprep.subr.mxu0 0.0
    %520 = vmatpush1.msra.mxu0 0.0
    %521 = vmatprep.subr.mxu0 0.0
    %522 = vmatpush1.msra.mxu0 0.0
    %523 = vmatprep.subr.mxu0 0.0
    %524 = vmatpush1.msra.mxu0 0.0
    %525 = vmatprep.subr.mxu0 0.0
    %526 = vmatpush1.msra.mxu0 0.0
    %527 = vmatprep.subr.mxu0 0.0
    %528 = vmatpush1.msra.mxu0 0.0
    %529 = vmatprep.subr.mxu0 0.0
    %530 = vmatpush1.msra.mxu0 0.0
    %531 = vmatprep.subr.mxu0 0.0
    %532 = vmatpush1.msra.mxu0 0.0
    %533 = vmatprep.subr.mxu0 0.0
    %534 = vmatpush1.msra.mxu0 0.0
    %535 = vmatprep.subr.mxu0 0.0
    %536 = vmatpush1.msra.mxu0 0.0
    %537 = vmatprep.subr.mxu0 0.0
    %538 = vmatpush1.msra.mxu0 0.0
    %539 = vmatprep.subr.mxu0 0.0
    %540 = vmatpush1.msra.mxu0 0.0
    %541 = vmatprep.subr.mxu0 0.0
    %542 = vmatpush1.msra.mxu0 0.0
    %543 = vmatprep.subr.mxu0 0.0
    %544 = vmatpush1.msra.mxu0 0.0
    %545 = vmatprep.subr.mxu0 0.0
    %546 = vmatpush1.msra.mxu0 0.0
    %547 = vmatprep.subr.mxu0 0.0
    %548 = vmatpush1.msra.mxu0 0.0
    %549 = vmatprep.subr.mxu0 0.0
    %550 = vmatpush1.msra.mxu0 0.0
    %551 = vmatprep.subr.mxu0 0.0
    %552 = vmatpush1.msra.mxu0 0.0
    %553 = vmatprep.mubr.f32.mxu0 0.0
    %554 = vmatmul.mubr.f32.gmra.mrb[0].mxu0 %v487
    %v555 = vpop.f32.mrb[0].mxu0
    %v556 = vadd.f32 0.0, %v555
    %v557 = vpop.f32.mrb[0].mxu0
    %558 = vdwg.mxu0
    %v559 = vadd.f32 %v45, %v556
    %v560 = vxor.u32 %v559, 2147483648
    %v561 = vmul.f32 %v560, 1.442695
    %v562 = vpow.pop %v561
    %v563 = vadd.f32 %v562, 1.0
    %v564 = vrcp.pop %v563
    %v565 = vmul.f32 1.0, %v564
    %v566 = vmul.f32 %v565, 2.0
    %v567 = vsub.f32 %v566, 1.0
    %v568 = vmul.f32 %v565, %v364
    %570 = vrot.lane.b32.xlu0 %v567, 32
    %v571 = vpop.permute.xlu0 %570
    %v573 = vmul.f32 %v565, %v571
    %575 = vrot.lane.b32.xlu0 %v573, 32
    %v576 = vpop.permute.xlu0 %575
    %v578 = vadd.f32 %v568, %v576
    %v579 = vtanh.pop %v578
    %581 = vrot.lane.b32.xlu0 %v579, 32
    %v582 = vpop.permute.xlu0 %581
    %v584 = vmul.f32 %v565, %v582
    %v586 = vcombine.high %v584, %v584
    %v588 = vunpack.c.l.s4 1966171168
    %v589 = vunpack.c.0.s8 %v588
    %v590 = vlaneseq
    %v591 = vshrl.u32 %v590, 7
    %v592 = vsub.s32 %v589, %v591
    %v593 = vrot.slane %v584, %v592
    %v595 = vunpack.c.l.s4 1966171168
    %v596 = vunpack.c.0.s8 %v595
    %v597 = vlaneseq
    %v598 = vshrl.u32 %v597, 7
    %v599 = vsub.s32 %v596, %v598
    %v600 = vrot.slane %v586, %v599
    %v601 = vcombine.high %v593, %v593
    %v602 = vcombine.high %v600, %v600
    %v604 = vunpack.c.l.s4 1966171168
    %v605 = vunpack.c.0.s8 %v604
    %v606 = vlaneseq
    %v607 = vshrl.u32 %v606, 7
    %v608 = vsub.s32 %v605, %v607
    %v609 = vrot.slane %v593, %v608
    %v611 = vunpack.c.l.s4 1966171168
    %v612 = vunpack.c.0.s8 %v611
    %v613 = vlaneseq
    %v614 = vshrl.u32 %v613, 7
    %v615 = vsub.s32 %v612, %v614
    %v616 = vrot.slane %v600, %v615
    %v618 = vunpack.c.l.s4 1966171168
    %v619 = vunpack.c.0.s8 %v618
    %v620 = vlaneseq
    %v621 = vshrl.u32 %v620, 7
    %v622 = vsub.s32 %v619, %v621
    %v623 = vrot.slane %v601, %v622
    %v625 = vunpack.c.l.s4 1966171168
    %v626 = vunpack.c.0.s8 %v625
    %v627 = vlaneseq
    %v628 = vshrl.u32 %v627, 7
    %v629 = vsub.s32 %v626, %v628
    %v630 = vrot.slane %v602, %v629
    %v631 = vcombine.high %v609, %v609
    %v632 = vcombine.high %v616, %v616
    %v633 = vcombine.high %v623, %v623
    %v634 = vcombine.high %v630, %v630
    %v635 = vlaneseq
    %v636 = vshrl.u32 %v635, 7
    %v637 = vsub.s32 0, %v636
    %v638 = vrot.slane %v609, %v637
    %v639 = vlaneseq
    %v640 = vshrl.u32 %v639, 7
    %v641 = vsub.s32 0, %v640
    %v642 = vrot.slane %v623, %v641
    %v643 = vlaneseq
    %v644 = vshrl.u32 %v643, 7
    %v645 = vsub.s32 0, %v644
    %v646 = vrot.slane %v631, %v645
    %v647 = vlaneseq
    %v648 = vshrl.u32 %v647, 7
    %v649 = vsub.s32 0, %v648
    %v650 = vrot.slane %v633, %v649
    %v651 = vlaneseq
    %v652 = vshrl.u32 %v651, 7
    %v653 = vsub.s32 0, %v652
    %v654 = vrot.slane %v616, %v653
    %v655 = vlaneseq
    %v656 = vshrl.u32 %v655, 7
    %v657 = vsub.s32 0, %v656
    %v658 = vrot.slane %v630, %v657
    %v659 = vlaneseq
    %v660 = vshrl.u32 %v659, 7
    %v661 = vsub.s32 0, %v660
    %v662 = vrot.slane %v632, %v661
    %v663 = vlaneseq
    %v664 = vshrl.u32 %v663, 7
    %v665 = vsub.s32 0, %v664
    %v666 = vrot.slane %v634, %v665
    %667 = vrot.lane.b32.xlu0 %v638, 64
    %v668 = vpop.permute.xlu0 %667
    %669 = vrot.lane.b32.xlu0 %v642, 64
    %v670 = vpop.permute.xlu0 %669
    %671 = vrot.lane.b32.xlu0 %v646, 64
    %v672 = vpop.permute.xlu0 %671
    %673 = vrot.lane.b32.xlu0 %v650, 64
    %v674 = vpop.permute.xlu0 %673
    %675 = vrot.lane.b32.xlu0 %v654, 64
    %v676 = vpop.permute.xlu0 %675
    %677 = vrot.lane.b32.xlu0 %v658, 64
    %v678 = vpop.permute.xlu0 %677
    %679 = vrot.lane.b32.xlu0 %v662, 64
    %v680 = vpop.permute.xlu0 %679
    %681 = vrot.lane.b32.xlu0 %v666, 64
    %v682 = vpop.permute.xlu0 %681
    %691 = vst.msk [vmem:[#allocation9 + $0x2] sm:$0x1] %vm262, %v668
    %692 = vst.msk [vmem:[#allocation9 + $0xa] sm:$0x1] %vm262, %v670
    %693 = vst.msk [vmem:[#allocation9 + $0x12] sm:$0x1] %vm262, %v672
    %694 = vst.msk [vmem:[#allocation9 + $0x1a] sm:$0x1] %vm262, %v674
    %695 = vst.msk [vmem:[#allocation9 + $0x22] sm:$0x1] %vm262, %v676
    %696 = vst.msk [vmem:[#allocation9 + $0x2a] sm:$0x1] %vm262, %v678
    %697 = vst.msk [vmem:[#allocation9 + $0x32] sm:$0x1] %vm262, %v680
    %698 = vst.msk [vmem:[#allocation9 + $0x3a] sm:$0x1] %vm262, %v682
    %699 = vrot.lane.b32.xlu0 %v584, 64
    %v700 = vpop.permute.xlu0 %699
    %v701 = vsel %vm52, %v700, 0
    %703 = vmatprep.subr.mxu0 0.0
    %704 = vmatpush1.msra.mxu0 %v46
    %705 = vmatprep.subr.mxu0 0.0
    %706 = vmatpush1.msra.mxu0 %v47
    %707 = vmatprep.subr.mxu0 0.0
    %708 = vmatpush1.msra.mxu0 %v48
    %709 = vmatprep.subr.mxu0 0.0
    %710 = vmatpush1.msra.mxu0 %v49
    %711 = vmatprep.subr.mxu0 0.0
    %712 = vmatpush1.msra.mxu0 0.0
    %713 = vmatprep.subr.mxu0 0.0
    %714 = vmatpush1.msra.mxu0 0.0
    %715 = vmatprep.subr.mxu0 0.0
    %716 = vmatpush1.msra.mxu0 0.0
    %717 = vmatprep.subr.mxu0 0.0
    %718 = vmatpush1.msra.mxu0 0.0
    %719 = vmatprep.subr.mxu0 0.0
    %720 = vmatpush1.msra.mxu0 0.0
    %721 = vmatprep.subr.mxu0 0.0
    %722 = vmatpush1.msra.mxu0 0.0
    %723 = vmatprep.subr.mxu0 0.0
    %724 = vmatpush1.msra.mxu0 0.0
    %725 = vmatprep.subr.mxu0 0.0
    %726 = vmatpush1.msra.mxu0 0.0
    %727 = vmatprep.subr.mxu0 0.0
    %728 = vmatpush1.msra.mxu0 0.0
    %729 = vmatprep.subr.mxu0 0.0
    %730 = vmatpush1.msra.mxu0 0.0
    %731 = vmatprep.subr.mxu0 0.0
    %732 = vmatpush1.msra.mxu0 0.0
    %733 = vmatprep.subr.mxu0 0.0
    %734 = vmatpush1.msra.mxu0 0.0
    %735 = vmatprep.subr.mxu0 0.0
    %736 = vmatpush1.msra.mxu0 0.0
    %737 = vmatprep.subr.mxu0 0.0
    %738 = vmatpush1.msra.mxu0 0.0
    %739 = vmatprep.subr.mxu0 0.0
    %740 = vmatpush1.msra.mxu0 0.0
    %741 = vmatprep.subr.mxu0 0.0
    %742 = vmatpush1.msra.mxu0 0.0
    %743 = vmatprep.subr.mxu0 0.0
    %744 = vmatpush1.msra.mxu0 0.0
    %745 = vmatprep.subr.mxu0 0.0
    %746 = vmatpush1.msra.mxu0 0.0
    %747 = vmatprep.subr.mxu0 0.0
    %748 = vmatpush1.msra.mxu0 0.0
    %749 = vmatprep.subr.mxu0 0.0
    %750 = vmatpush1.msra.mxu0 0.0
    %751 = vmatprep.subr.mxu0 0.0
    %752 = vmatpush1.msra.mxu0 0.0
    %753 = vmatprep.subr.mxu0 0.0
    %754 = vmatpush1.msra.mxu0 0.0
    %755 = vmatprep.subr.mxu0 0.0
    %756 = vmatpush1.msra.mxu0 0.0
    %757 = vmatprep.subr.mxu0 0.0
    %758 = vmatpush1.msra.mxu0 0.0
    %759 = vmatprep.subr.mxu0 0.0
    %760 = vmatpush1.msra.mxu0 0.0
    %761 = vmatprep.subr.mxu0 0.0
    %762 = vmatpush1.msra.mxu0 0.0
    %763 = vmatprep.subr.mxu0 0.0
    %764 = vmatpush1.msra.mxu0 0.0
    %765 = vmatprep.subr.mxu0 0.0
    %766 = vmatpush1.msra.mxu0 0.0
    %767 = vmatprep.mubr.f32.mxu0 0.0
    %768 = vmatmul.mubr.f32.gmra.mrb[0].mxu0 %v701
    %v769 = vpop.f32.mrb[0].mxu0
    %v770 = vadd.f32 0.0, %v769
    %v771 = vpop.f32.mrb[0].mxu0
    %772 = vdwg.mxu0
    %v773 = vadd.f32 %v45, %v770
    %v774 = vxor.u32 %v773, 2147483648
    %v775 = vmul.f32 %v774, 1.442695
    %v776 = vpow.pop %v775
    %v777 = vadd.f32 %v776, 1.0
    %v778 = vrcp.pop %v777
    %v779 = vmul.f32 1.0, %v778
    %v780 = vmul.f32 %v779, 2.0
    %v781 = vsub.f32 %v780, 1.0
    %v782 = vmul.f32 %v779, %v578
    %784 = vrot.lane.b32.xlu0 %v781, 32
    %v785 = vpop.permute.xlu0 %784
    %v787 = vmul.f32 %v779, %v785
    %789 = vrot.lane.b32.xlu0 %v787, 32
    %v790 = vpop.permute.xlu0 %789
    %v792 = vadd.f32 %v782, %v790
    %v793 = vtanh.pop %v792
    %795 = vrot.lane.b32.xlu0 %v793, 32
    %v796 = vpop.permute.xlu0 %795
    %v798 = vmul.f32 %v779, %v796
    %v800 = vcombine.high %v798, %v798
    %v802 = vunpack.c.l.s4 1966171168
    %v803 = vunpack.c.0.s8 %v802
    %v804 = vlaneseq
    %v805 = vshrl.u32 %v804, 7
    %v806 = vsub.s32 %v803, %v805
    %v807 = vrot.slane %v798, %v806
    %v809 = vunpack.c.l.s4 1966171168
    %v810 = vunpack.c.0.s8 %v809
    %v811 = vlaneseq
    %v812 = vshrl.u32 %v811, 7
    %v813 = vsub.s32 %v810, %v812
    %v814 = vrot.slane %v800, %v813
    %v815 = vcombine.high %v807, %v807
    %v816 = vcombine.high %v814, %v814
    %v818 = vunpack.c.l.s4 1966171168
    %v819 = vunpack.c.0.s8 %v818
    %v820 = vlaneseq
    %v821 = vshrl.u32 %v820, 7
    %v822 = vsub.s32 %v819, %v821
    %v823 = vrot.slane %v807, %v822
    %v825 = vunpack.c.l.s4 1966171168
    %v826 = vunpack.c.0.s8 %v825
    %v827 = vlaneseq
    %v828 = vshrl.u32 %v827, 7
    %v829 = vsub.s32 %v826, %v828
    %v830 = vrot.slane %v814, %v829
    %v832 = vunpack.c.l.s4 1966171168
    %v833 = vunpack.c.0.s8 %v832
    %v834 = vlaneseq
    %v835 = vshrl.u32 %v834, 7
    %v836 = vsub.s32 %v833, %v835
    %v837 = vrot.slane %v815, %v836
    %v839 = vunpack.c.l.s4 1966171168
    %v840 = vunpack.c.0.s8 %v839
    %v841 = vlaneseq
    %v842 = vshrl.u32 %v841, 7
    %v843 = vsub.s32 %v840, %v842
    %v844 = vrot.slane %v816, %v843
    %v845 = vcombine.high %v823, %v823
    %v846 = vcombine.high %v830, %v830
    %v847 = vcombine.high %v837, %v837
    %v848 = vcombine.high %v844, %v844
    %v849 = vlaneseq
    %v850 = vshrl.u32 %v849, 7
    %v851 = vsub.s32 0, %v850
    %v852 = vrot.slane %v823, %v851
    %v853 = vlaneseq
    %v854 = vshrl.u32 %v853, 7
    %v855 = vsub.s32 0, %v854
    %v856 = vrot.slane %v837, %v855
    %v857 = vlaneseq
    %v858 = vshrl.u32 %v857, 7
    %v859 = vsub.s32 0, %v858
    %v860 = vrot.slane %v845, %v859
    %v861 = vlaneseq
    %v862 = vshrl.u32 %v861, 7
    %v863 = vsub.s32 0, %v862
    %v864 = vrot.slane %v847, %v863
    %v865 = vlaneseq
    %v866 = vshrl.u32 %v865, 7
    %v867 = vsub.s32 0, %v866
    %v868 = vrot.slane %v830, %v867
    %v869 = vlaneseq
    %v870 = vshrl.u32 %v869, 7
    %v871 = vsub.s32 0, %v870
    %v872 = vrot.slane %v844, %v871
    %v873 = vlaneseq
    %v874 = vshrl.u32 %v873, 7
    %v875 = vsub.s32 0, %v874
    %v876 = vrot.slane %v846, %v875
    %v877 = vlaneseq
    %v878 = vshrl.u32 %v877, 7
    %v879 = vsub.s32 0, %v878
    %v880 = vrot.slane %v848, %v879
    %881 = vrot.lane.b32.xlu0 %v852, 64
    %v882 = vpop.permute.xlu0 %881
    %883 = vrot.lane.b32.xlu0 %v856, 64
    %v884 = vpop.permute.xlu0 %883
    %885 = vrot.lane.b32.xlu0 %v860, 64
    %v886 = vpop.permute.xlu0 %885
    %887 = vrot.lane.b32.xlu0 %v864, 64
    %v888 = vpop.permute.xlu0 %887
    %889 = vrot.lane.b32.xlu0 %v868, 64
    %v890 = vpop.permute.xlu0 %889
    %891 = vrot.lane.b32.xlu0 %v872, 64
    %v892 = vpop.permute.xlu0 %891
    %893 = vrot.lane.b32.xlu0 %v876, 64
    %v894 = vpop.permute.xlu0 %893
    %895 = vrot.lane.b32.xlu0 %v880, 64
    %v896 = vpop.permute.xlu0 %895
    %905 = vst.msk [vmem:[#allocation9 + $0x3] sm:$0x1] %vm262, %v882
    %906 = vst.msk [vmem:[#allocation9 + $0xb] sm:$0x1] %vm262, %v884
    %907 = vst.msk [vmem:[#allocation9 + $0x13] sm:$0x1] %vm262, %v886
    %908 = vst.msk [vmem:[#allocation9 + $0x1b] sm:$0x1] %vm262, %v888
    %909 = vst.msk [vmem:[#allocation9 + $0x23] sm:$0x1] %vm262, %v890
    %910 = vst.msk [vmem:[#allocation9 + $0x2b] sm:$0x1] %vm262, %v892
    %911 = vst.msk [vmem:[#allocation9 + $0x33] sm:$0x1] %vm262, %v894
    %912 = vst.msk [vmem:[#allocation9 + $0x3b] sm:$0x1] %vm262, %v896
    %913 = vrot.lane.b32.xlu0 %v798, 64
    %v914 = vpop.permute.xlu0 %913
    %v915 = vsel %vm52, %v914, 0
    %917 = vmatprep.subr.mxu0 0.0
    %918 = vmatpush1.msra.mxu0 %v46
    %919 = vmatprep.subr.mxu0 0.0
    %920 = vmatpush1.msra.mxu0 %v47
    %921 = vmatprep.subr.mxu0 0.0
    %922 = vmatpush1.msra.mxu0 %v48
    %923 = vmatprep.subr.mxu0 0.0
    %924 = vmatpush1.msra.mxu0 %v49
    %925 = vmatprep.subr.mxu0 0.0
    %926 = vmatpush1.msra.mxu0 0.0
    %927 = vmatprep.subr.mxu0 0.0
    %928 = vmatpush1.msra.mxu0 0.0
    %929 = vmatprep.subr.mxu0 0.0
    %930 = vmatpush1.msra.mxu0 0.0
    %931 = vmatprep.subr.mxu0 0.0
    %932 = vmatpush1.msra.mxu0 0.0
    %933 = vmatprep.subr.mxu0 0.0
    %934 = vmatpush1.msra.mxu0 0.0
    %935 = vmatprep.subr.mxu0 0.0
    %936 = vmatpush1.msra.mxu0 0.0
    %937 = vmatprep.subr.mxu0 0.0
    %938 = vmatpush1.msra.mxu0 0.0
    %939 = vmatprep.subr.mxu0 0.0
    %940 = vmatpush1.msra.mxu0 0.0
    %941 = vmatprep.subr.mxu0 0.0
    %942 = vmatpush1.msra.mxu0 0.0
    %943 = vmatprep.subr.mxu0 0.0
    %944 = vmatpush1.msra.mxu0 0.0
    %945 = vmatprep.subr.mxu0 0.0
    %946 = vmatpush1.msra.mxu0 0.0
    %947 = vmatprep.subr.mxu0 0.0
    %948 = vmatpush1.msra.mxu0 0.0
    %949 = vmatprep.subr.mxu0 0.0
    %950 = vmatpush1.msra.mxu0 0.0
    %951 = vmatprep.subr.mxu0 0.0
    %952 = vmatpush1.msra.mxu0 0.0
    %953 = vmatprep.subr.mxu0 0.0
    %954 = vmatpush1.msra.mxu0 0.0
    %955 = vmatprep.subr.mxu0 0.0
    %956 = vmatpush1.msra.mxu0 0.0
    %957 = vmatprep.subr.mxu0 0.0
    %958 = vmatpush1.msra.mxu0 0.0
    %959 = vmatprep.subr.mxu0 0.0
    %960 = vmatpush1.msra.mxu0 0.0
    %961 = vmatprep.subr.mxu0 0.0
    %962 = vmatpush1.msra.mxu0 0.0
    %963 = vmatprep.subr.mxu0 0.0
    %964 = vmatpush1.msra.mxu0 0.0
    %965 = vmatprep.subr.mxu0 0.0
    %966 = vmatpush1.msra.mxu0 0.0
    %967 = vmatprep.subr.mxu0 0.0
    %968 = vmatpush1.msra.mxu0 0.0
    %969 = vmatprep.subr.mxu0 0.0
    %970 = vmatpush1.msra.mxu0 0.0
    %971 = vmatprep.subr.mxu0 0.0
    %972 = vmatpush1.msra.mxu0 0.0
    %973 = vmatprep.subr.mxu0 0.0
    %974 = vmatpush1.msra.mxu0 0.0
    %975 = vmatprep.subr.mxu0 0.0
    %976 = vmatpush1.msra.mxu0 0.0
    %977 = vmatprep.subr.mxu0 0.0
    %978 = vmatpush1.msra.mxu0 0.0
    %979 = vmatprep.subr.mxu0 0.0
    %980 = vmatpush1.msra.mxu0 0.0
    %981 = vmatprep.mubr.f32.mxu0 0.0
    %982 = vmatmul.mubr.f32.gmra.mrb[0].mxu0 %v915
    %v983 = vpop.f32.mrb[0].mxu0
    %v984 = vadd.f32 0.0, %v983
    %v985 = vpop.f32.mrb[0].mxu0
    %986 = vdwg.mxu0
    %v987 = vadd.f32 %v45, %v984
    %v988 = vxor.u32 %v987, 2147483648
    %v989 = vmul.f32 %v988, 1.442695
    %v990 = vpow.pop %v989
    %v991 = vadd.f32 %v990, 1.0
    %v992 = vrcp.pop %v991
    %v993 = vmul.f32 1.0, %v992
    %v994 = vmul.f32 %v993, 2.0
    %v995 = vsub.f32 %v994, 1.0
    %v996 = vmul.f32 %v993, %v792
    %998 = vrot.lane.b32.xlu0 %v995, 32
    %v999 = vpop.permute.xlu0 %998
    %v1001 = vmul.f32 %v993, %v999
    %1003 = vrot.lane.b32.xlu0 %v1001, 32
    %v1004 = vpop.permute.xlu0 %1003
    %v1006 = vadd.f32 %v996, %v1004
    %v1007 = vtanh.pop %v1006
    %1009 = vrot.lane.b32.xlu0 %v1007, 32
    %v1010 = vpop.permute.xlu0 %1009
    %v1012 = vmul.f32 %v993, %v1010
    %v1014 = vcombine.high %v1012, %v1012
    %v1016 = vunpack.c.l.s4 1966171168
    %v1017 = vunpack.c.0.s8 %v1016
    %v1018 = vlaneseq
    %v1019 = vshrl.u32 %v1018, 7
    %v1020 = vsub.s32 %v1017, %v1019
    %v1021 = vrot.slane %v1012, %v1020
    %v1023 = vunpack.c.l.s4 1966171168
    %v1024 = vunpack.c.0.s8 %v1023
    %v1025 = vlaneseq
    %v1026 = vshrl.u32 %v1025, 7
    %v1027 = vsub.s32 %v1024, %v1026
    %v1028 = vrot.slane %v1014, %v1027
    %v1029 = vcombine.high %v1021, %v1021
    %v1030 = vcombine.high %v1028, %v1028
    %v1032 = vunpack.c.l.s4 1966171168
    %v1033 = vunpack.c.0.s8 %v1032
    %v1034 = vlaneseq
    %v1035 = vshrl.u32 %v1034, 7
    %v1036 = vsub.s32 %v1033, %v1035
    %v1037 = vrot.slane %v1021, %v1036
    %v1039 = vunpack.c.l.s4 1966171168
    %v1040 = vunpack.c.0.s8 %v1039
    %v1041 = vlaneseq
    %v1042 = vshrl.u32 %v1041, 7
    %v1043 = vsub.s32 %v1040, %v1042
    %v1044 = vrot.slane %v1028, %v1043
    %v1046 = vunpack.c.l.s4 1966171168
    %v1047 = vunpack.c.0.s8 %v1046
    %v1048 = vlaneseq
    %v1049 = vshrl.u32 %v1048, 7
    %v1050 = vsub.s32 %v1047, %v1049
    %v1051 = vrot.slane %v1029, %v1050
    %v1053 = vunpack.c.l.s4 1966171168
    %v1054 = vunpack.c.0.s8 %v1053
    %v1055 = vlaneseq
    %v1056 = vshrl.u32 %v1055, 7
    %v1057 = vsub.s32 %v1054, %v1056
    %v1058 = vrot.slane %v1030, %v1057
    %v1059 = vcombine.high %v1037, %v1037
    %v1060 = vcombine.high %v1044, %v1044
    %v1061 = vcombine.high %v1051, %v1051
    %v1062 = vcombine.high %v1058, %v1058
    %v1063 = vlaneseq
    %v1064 = vshrl.u32 %v1063, 7
    %v1065 = vsub.s32 0, %v1064
    %v1066 = vrot.slane %v1037, %v1065
    %v1067 = vlaneseq
    %v1068 = vshrl.u32 %v1067, 7
    %v1069 = vsub.s32 0, %v1068
    %v1070 = vrot.slane %v1051, %v1069
    %v1071 = vlaneseq
    %v1072 = vshrl.u32 %v1071, 7
    %v1073 = vsub.s32 0, %v1072
    %v1074 = vrot.slane %v1059, %v1073
    %v1075 = vlaneseq
    %v1076 = vshrl.u32 %v1075, 7
    %v1077 = vsub.s32 0, %v1076
    %v1078 = vrot.slane %v1061, %v1077
    %v1079 = vlaneseq
    %v1080 = vshrl.u32 %v1079, 7
    %v1081 = vsub.s32 0, %v1080
    %v1082 = vrot.slane %v1044, %v1081
    %v1083 = vlaneseq
    %v1084 = vshrl.u32 %v1083, 7
    %v1085 = vsub.s32 0, %v1084
    %v1086 = vrot.slane %v1058, %v1085
    %v1087 = vlaneseq
    %v1088 = vshrl.u32 %v1087, 7
    %v1089 = vsub.s32 0, %v1088
    %v1090 = vrot.slane %v1060, %v1089
    %v1091 = vlaneseq
    %v1092 = vshrl.u32 %v1091, 7
    %v1093 = vsub.s32 0, %v1092
    %v1094 = vrot.slane %v1062, %v1093
    %1095 = vrot.lane.b32.xlu0 %v1066, 64
    %v1096 = vpop.permute.xlu0 %1095
    %1097 = vrot.lane.b32.xlu0 %v1070, 64
    %v1098 = vpop.permute.xlu0 %1097
    %1099 = vrot.lane.b32.xlu0 %v1074, 64
    %v1100 = vpop.permute.xlu0 %1099
    %1101 = vrot.lane.b32.xlu0 %v1078, 64
    %v1102 = vpop.permute.xlu0 %1101
    %1103 = vrot.lane.b32.xlu0 %v1082, 64
    %v1104 = vpop.permute.xlu0 %1103
    %1105 = vrot.lane.b32.xlu0 %v1086, 64
    %v1106 = vpop.permute.xlu0 %1105
    %1107 = vrot.lane.b32.xlu0 %v1090, 64
    %v1108 = vpop.permute.xlu0 %1107
    %1109 = vrot.lane.b32.xlu0 %v1094, 64
    %v1110 = vpop.permute.xlu0 %1109
    %1119 = vst.msk [vmem:[#allocation9 + $0x4] sm:$0x1] %vm262, %v1096
    %1120 = vst.msk [vmem:[#allocation9 + $0xc] sm:$0x1] %vm262, %v1098
    %1121 = vst.msk [vmem:[#allocation9 + $0x14] sm:$0x1] %vm262, %v1100
    %1122 = vst.msk [vmem:[#allocation9 + $0x1c] sm:$0x1] %vm262, %v1102
    %1123 = vst.msk [vmem:[#allocation9 + $0x24] sm:$0x1] %vm262, %v1104
    %1124 = vst.msk [vmem:[#allocation9 + $0x2c] sm:$0x1] %vm262, %v1106
    %1125 = vst.msk [vmem:[#allocation9 + $0x34] sm:$0x1] %vm262, %v1108
    %1126 = vst.msk [vmem:[#allocation9 + $0x3c] sm:$0x1] %vm262, %v1110
    %1127 = vrot.lane.b32.xlu0 %v1012, 64
    %v1128 = vpop.permute.xlu0 %1127
    %v1129 = vsel %vm52, %v1128, 0
    %1131 = vmatprep.subr.mxu0 0.0
    %1132 = vmatpush1.msra.mxu0 %v46
    %1133 = vmatprep.subr.mxu0 0.0
    %1134 = vmatpush1.msra.mxu0 %v47
    %1135 = vmatprep.subr.mxu0 0.0
    %1136 = vmatpush1.msra.mxu0 %v48
    %1137 = vmatprep.subr.mxu0 0.0
    %1138 = vmatpush1.msra.mxu0 %v49
    %1139 = vmatprep.subr.mxu0 0.0
    %1140 = vmatpush1.msra.mxu0 0.0
    %1141 = vmatprep.subr.mxu0 0.0
    %1142 = vmatpush1.msra.mxu0 0.0
    %1143 = vmatprep.subr.mxu0 0.0
    %1144 = vmatpush1.msra.mxu0 0.0
    %1145 = vmatprep.subr.mxu0 0.0
    %1146 = vmatpush1.msra.mxu0 0.0
    %1147 = vmatprep.subr.mxu0 0.0
    %1148 = vmatpush1.msra.mxu0 0.0
    %1149 = vmatprep.subr.mxu0 0.0
    %1150 = vmatpush1.msra.mxu0 0.0
    %1151 = vmatprep.subr.mxu0 0.0
    %1152 = vmatpush1.msra.mxu0 0.0
    %1153 = vmatprep.subr.mxu0 0.0
    %1154 = vmatpush1.msra.mxu0 0.0
    %1155 = vmatprep.subr.mxu0 0.0
    %1156 = vmatpush1.msra.mxu0 0.0
    %1157 = vmatprep.subr.mxu0 0.0
    %1158 = vmatpush1.msra.mxu0 0.0
    %1159 = vmatprep.subr.mxu0 0.0
    %1160 = vmatpush1.msra.mxu0 0.0
    %1161 = vmatprep.subr.mxu0 0.0
    %1162 = vmatpush1.msra.mxu0 0.0
    %1163 = vmatprep.subr.mxu0 0.0
    %1164 = vmatpush1.msra.mxu0 0.0
    %1165 = vmatprep.subr.mxu0 0.0
    %1166 = vmatpush1.msra.mxu0 0.0
    %1167 = vmatprep.subr.mxu0 0.0
    %1168 = vmatpush1.msra.mxu0 0.0
    %1169 = vmatprep.subr.mxu0 0.0
    %1170 = vmatpush1.msra.mxu0 0.0
    %1171 = vmatprep.subr.mxu0 0.0
    %1172 = vmatpush1.msra.mxu0 0.0
    %1173 = vmatprep.subr.mxu0 0.0
    %1174 = vmatpush1.msra.mxu0 0.0
    %1175 = vmatprep.subr.mxu0 0.0
    %1176 = vmatpush1.msra.mxu0 0.0
    %1177 = vmatprep.subr.mxu0 0.0
    %1178 = vmatpush1.msra.mxu0 0.0
    %1179 = vmatprep.subr.mxu0 0.0
    %1180 = vmatpush1.msra.mxu0 0.0
    %1181 = vmatprep.subr.mxu0 0.0
    %1182 = vmatpush1.msra.mxu0 0.0
    %1183 = vmatprep.subr.mxu0 0.0
    %1184 = vmatpush1.msra.mxu0 0.0
    %1185 = vmatprep.subr.mxu0 0.0
    %1186 = vmatpush1.msra.mxu0 0.0
    %1187 = vmatprep.subr.mxu0 0.0
    %1188 = vmatpush1.msra.mxu0 0.0
    %1189 = vmatprep.subr.mxu0 0.0
    %1190 = vmatpush1.msra.mxu0 0.0
    %1191 = vmatprep.subr.mxu0 0.0
    %1192 = vmatpush1.msra.mxu0 0.0
    %1193 = vmatprep.subr.mxu0 0.0
    %1194 = vmatpush1.msra.mxu0 0.0
    %1195 = vmatprep.mubr.f32.mxu0 0.0
    %1196 = vmatmul.mubr.f32.gmra.mrb[0].mxu0 %v1129
    %v1197 = vpop.f32.mrb[0].mxu0
    %v1198 = vadd.f32 0.0, %v1197
    %v1199 = vpop.f32.mrb[0].mxu0
    %1200 = vdwg.mxu0
    %v1201 = vadd.f32 %v45, %v1198
    %v1202 = vxor.u32 %v1201, 2147483648
    %v1203 = vmul.f32 %v1202, 1.442695
    %v1204 = vpow.pop %v1203
    %v1205 = vadd.f32 %v1204, 1.0
    %v1206 = vrcp.pop %v1205
    %v1207 = vmul.f32 1.0, %v1206
    %v1208 = vmul.f32 %v1207, 2.0
    %v1209 = vsub.f32 %v1208, 1.0
    %v1210 = vmul.f32 %v1207, %v1006
    %1212 = vrot.lane.b32.xlu0 %v1209, 32
    %v1213 = vpop.permute.xlu0 %1212
    %v1215 = vmul.f32 %v1207, %v1213
    %1217 = vrot.lane.b32.xlu0 %v1215, 32
    %v1218 = vpop.permute.xlu0 %1217
    %v1220 = vadd.f32 %v1210, %v1218
    %v1221 = vtanh.pop %v1220
    %1223 = vrot.lane.b32.xlu0 %v1221, 32
    %v1224 = vpop.permute.xlu0 %1223
    %v1226 = vmul.f32 %v1207, %v1224
    %v1228 = vcombine.high %v1226, %v1226
    %v1230 = vunpack.c.l.s4 1966171168
    %v1231 = vunpack.c.0.s8 %v1230
    %v1232 = vlaneseq
    %v1233 = vshrl.u32 %v1232, 7
    %v1234 = vsub.s32 %v1231, %v1233
    %v1235 = vrot.slane %v1226, %v1234
    %v1237 = vunpack.c.l.s4 1966171168
    %v1238 = vunpack.c.0.s8 %v1237
    %v1239 = vlaneseq
    %v1240 = vshrl.u32 %v1239, 7
    %v1241 = vsub.s32 %v1238, %v1240
    %v1242 = vrot.slane %v1228, %v1241
    %v1243 = vcombine.high %v1235, %v1235
    %v1244 = vcombine.high %v1242, %v1242
    %v1246 = vunpack.c.l.s4 1966171168
    %v1247 = vunpack.c.0.s8 %v1246
    %v1248 = vlaneseq
    %v1249 = vshrl.u32 %v1248, 7
    %v1250 = vsub.s32 %v1247, %v1249
    %v1251 = vrot.slane %v1235, %v1250
    %v1253 = vunpack.c.l.s4 1966171168
    %v1254 = vunpack.c.0.s8 %v1253
    %v1255 = vlaneseq
    %v1256 = vshrl.u32 %v1255, 7
    %v1257 = vsub.s32 %v1254, %v1256
    %v1258 = vrot.slane %v1242, %v1257
    %v1260 = vunpack.c.l.s4 1966171168
    %v1261 = vunpack.c.0.s8 %v1260
    %v1262 = vlaneseq
    %v1263 = vshrl.u32 %v1262, 7
    %v1264 = vsub.s32 %v1261, %v1263
    %v1265 = vrot.slane %v1243, %v1264
    %v1267 = vunpack.c.l.s4 1966171168
    %v1268 = vunpack.c.0.s8 %v1267
    %v1269 = vlaneseq
    %v1270 = vshrl.u32 %v1269, 7
    %v1271 = vsub.s32 %v1268, %v1270
    %v1272 = vrot.slane %v1244, %v1271
    %v1273 = vcombine.high %v1251, %v1251
    %v1274 = vcombine.high %v1258, %v1258
    %v1275 = vcombine.high %v1265, %v1265
    %v1276 = vcombine.high %v1272, %v1272
    %v1277 = vlaneseq
    %v1278 = vshrl.u32 %v1277, 7
    %v1279 = vsub.s32 0, %v1278
    %v1280 = vrot.slane %v1251, %v1279
    %v1281 = vlaneseq
    %v1282 = vshrl.u32 %v1281, 7
    %v1283 = vsub.s32 0, %v1282
    %v1284 = vrot.slane %v1265, %v1283
    %v1285 = vlaneseq
    %v1286 = vshrl.u32 %v1285, 7
    %v1287 = vsub.s32 0, %v1286
    %v1288 = vrot.slane %v1273, %v1287
    %v1289 = vlaneseq
    %v1290 = vshrl.u32 %v1289, 7
    %v1291 = vsub.s32 0, %v1290
    %v1292 = vrot.slane %v1275, %v1291
    %v1293 = vlaneseq
    %v1294 = vshrl.u32 %v1293, 7
    %v1295 = vsub.s32 0, %v1294
    %v1296 = vrot.slane %v1258, %v1295
    %v1297 = vlaneseq
    %v1298 = vshrl.u32 %v1297, 7
    %v1299 = vsub.s32 0, %v1298
    %v1300 = vrot.slane %v1272, %v1299
    %v1301 = vlaneseq
    %v1302 = vshrl.u32 %v1301, 7
    %v1303 = vsub.s32 0, %v1302
    %v1304 = vrot.slane %v1274, %v1303
    %v1305 = vlaneseq
    %v1306 = vshrl.u32 %v1305, 7
    %v1307 = vsub.s32 0, %v1306
    %v1308 = vrot.slane %v1276, %v1307
    %1309 = vrot.lane.b32.xlu0 %v1280, 64
    %v1310 = vpop.permute.xlu0 %1309
    %1311 = vrot.lane.b32.xlu0 %v1284, 64
    %v1312 = vpop.permute.xlu0 %1311
    %1313 = vrot.lane.b32.xlu0 %v1288, 64
    %v1314 = vpop.permute.xlu0 %1313
    %1315 = vrot.lane.b32.xlu0 %v1292, 64
    %v1316 = vpop.permute.xlu0 %1315
    %1317 = vrot.lane.b32.xlu0 %v1296, 64
    %v1318 = vpop.permute.xlu0 %1317
    %1319 = vrot.lane.b32.xlu0 %v1300, 64
    %v1320 = vpop.permute.xlu0 %1319
    %1321 = vrot.lane.b32.xlu0 %v1304, 64
    %v1322 = vpop.permute.xlu0 %1321
    %1323 = vrot.lane.b32.xlu0 %v1308, 64
    %v1324 = vpop.permute.xlu0 %1323
    %1333 = vst.msk [vmem:[#allocation9 + $0x5] sm:$0x1] %vm262, %v1310
    %1334 = vst.msk [vmem:[#allocation9 + $0xd] sm:$0x1] %vm262, %v1312
    %1335 = vst.msk [vmem:[#allocation9 + $0x15] sm:$0x1] %vm262, %v1314
    %1336 = vst.msk [vmem:[#allocation9 + $0x1d] sm:$0x1] %vm262, %v1316
    %1337 = vst.msk [vmem:[#allocation9 + $0x25] sm:$0x1] %vm262, %v1318
    %1338 = vst.msk [vmem:[#allocation9 + $0x2d] sm:$0x1] %vm262, %v1320
    %1339 = vst.msk [vmem:[#allocation9 + $0x35] sm:$0x1] %vm262, %v1322
    %1340 = vst.msk [vmem:[#allocation9 + $0x3d] sm:$0x1] %vm262, %v1324
    %1341 = vrot.lane.b32.xlu0 %v1226, 64
    %v1342 = vpop.permute.xlu0 %1341
    %v1343 = vsel %vm52, %v1342, 0
    %1345 = vmatprep.subr.mxu0 0.0
    %1346 = vmatpush1.msra.mxu0 %v46
    %1347 = vmatprep.subr.mxu0 0.0
    %1348 = vmatpush1.msra.mxu0 %v47
    %1349 = vmatprep.subr.mxu0 0.0
    %1350 = vmatpush1.msra.mxu0 %v48
    %1351 = vmatprep.subr.mxu0 0.0
    %1352 = vmatpush1.msra.mxu0 %v49
    %1353 = vmatprep.subr.mxu0 0.0
    %1354 = vmatpush1.msra.mxu0 0.0
    %1355 = vmatprep.subr.mxu0 0.0
    %1356 = vmatpush1.msra.mxu0 0.0
    %1357 = vmatprep.subr.mxu0 0.0
    %1358 = vmatpush1.msra.mxu0 0.0
    %1359 = vmatprep.subr.mxu0 0.0
    %1360 = vmatpush1.msra.mxu0 0.0
    %1361 = vmatprep.subr.mxu0 0.0
    %1362 = vmatpush1.msra.mxu0 0.0
    %1363 = vmatprep.subr.mxu0 0.0
    %1364 = vmatpush1.msra.mxu0 0.0
    %1365 = vmatprep.subr.mxu0 0.0
    %1366 = vmatpush1.msra.mxu0 0.0
    %1367 = vmatprep.subr.mxu0 0.0
    %1368 = vmatpush1.msra.mxu0 0.0
    %1369 = vmatprep.subr.mxu0 0.0
    %1370 = vmatpush1.msra.mxu0 0.0
    %1371 = vmatprep.subr.mxu0 0.0
    %1372 = vmatpush1.msra.mxu0 0.0
    %1373 = vmatprep.subr.mxu0 0.0
    %1374 = vmatpush1.msra.mxu0 0.0
    %1375 = vmatprep.subr.mxu0 0.0
    %1376 = vmatpush1.msra.mxu0 0.0
    %1377 = vmatprep.subr.mxu0 0.0
    %1378 = vmatpush1.msra.mxu0 0.0
    %1379 = vmatprep.subr.mxu0 0.0
    %1380 = vmatpush1.msra.mxu0 0.0
    %1381 = vmatprep.subr.mxu0 0.0
    %1382 = vmatpush1.msra.mxu0 0.0
    %1383 = vmatprep.subr.mxu0 0.0
    %1384 = vmatpush1.msra.mxu0 0.0
    %1385 = vmatprep.subr.mxu0 0.0
    %1386 = vmatpush1.msra.mxu0 0.0
    %1387 = vmatprep.subr.mxu0 0.0
    %1388 = vmatpush1.msra.mxu0 0.0
    %1389 = vmatprep.subr.mxu0 0.0
    %1390 = vmatpush1.msra.mxu0 0.0
    %1391 = vmatprep.subr.mxu0 0.0
    %1392 = vmatpush1.msra.mxu0 0.0
    %1393 = vmatprep.subr.mxu0 0.0
    %1394 = vmatpush1.msra.mxu0 0.0
    %1395 = vmatprep.subr.mxu0 0.0
    %1396 = vmatpush1.msra.mxu0 0.0
    %1397 = vmatprep.subr.mxu0 0.0
    %1398 = vmatpush1.msra.mxu0 0.0
    %1399 = vmatprep.subr.mxu0 0.0
    %1400 = vmatpush1.msra.mxu0 0.0
    %1401 = vmatprep.subr.mxu0 0.0
    %1402 = vmatpush1.msra.mxu0 0.0
    %1403 = vmatprep.subr.mxu0 0.0
    %1404 = vmatpush1.msra.mxu0 0.0
    %1405 = vmatprep.subr.mxu0 0.0
    %1406 = vmatpush1.msra.mxu0 0.0
    %1407 = vmatprep.subr.mxu0 0.0
    %1408 = vmatpush1.msra.mxu0 0.0
    %1409 = vmatprep.mubr.f32.mxu0 0.0
    %1410 = vmatmul.mubr.f32.gmra.mrb[0].mxu0 %v1343
    %v1411 = vpop.f32.mrb[0].mxu0
    %v1412 = vadd.f32 0.0, %v1411
    %v1413 = vpop.f32.mrb[0].mxu0
    %1414 = vdwg.mxu0
    %v1415 = vadd.f32 %v45, %v1412
    %v1416 = vxor.u32 %v1415, 2147483648
    %v1417 = vmul.f32 %v1416, 1.442695
    %v1418 = vpow.pop %v1417
    %v1419 = vadd.f32 %v1418, 1.0
    %v1420 = vrcp.pop %v1419
    %v1421 = vmul.f32 1.0, %v1420
    %v1422 = vmul.f32 %v1421, 2.0
    %v1423 = vsub.f32 %v1422, 1.0
    %v1424 = vmul.f32 %v1421, %v1220
    %1426 = vrot.lane.b32.xlu0 %v1423, 32
    %v1427 = vpop.permute.xlu0 %1426
    %v1429 = vmul.f32 %v1421, %v1427
    %1431 = vrot.lane.b32.xlu0 %v1429, 32
    %v1432 = vpop.permute.xlu0 %1431
    %v1434 = vadd.f32 %v1424, %v1432
    %v1435 = vtanh.pop %v1434
    %1437 = vrot.lane.b32.xlu0 %v1435, 32
    %v1438 = vpop.permute.xlu0 %1437
    %v1440 = vmul.f32 %v1421, %v1438
    %v1442 = vcombine.high %v1440, %v1440
    %v1444 = vunpack.c.l.s4 1966171168
    %v1445 = vunpack.c.0.s8 %v1444
    %v1446 = vlaneseq
    %v1447 = vshrl.u32 %v1446, 7
    %v1448 = vsub.s32 %v1445, %v1447
    %v1449 = vrot.slane %v1440, %v1448
    %v1451 = vunpack.c.l.s4 1966171168
    %v1452 = vunpack.c.0.s8 %v1451
    %v1453 = vlaneseq
    %v1454 = vshrl.u32 %v1453, 7
    %v1455 = vsub.s32 %v1452, %v1454
    %v1456 = vrot.slane %v1442, %v1455
    %v1457 = vcombine.high %v1449, %v1449
    %v1458 = vcombine.high %v1456, %v1456
    %v1460 = vunpack.c.l.s4 1966171168
    %v1461 = vunpack.c.0.s8 %v1460
    %v1462 = vlaneseq
    %v1463 = vshrl.u32 %v1462, 7
    %v1464 = vsub.s32 %v1461, %v1463
    %v1465 = vrot.slane %v1449, %v1464
    %v1467 = vunpack.c.l.s4 1966171168
    %v1468 = vunpack.c.0.s8 %v1467
    %v1469 = vlaneseq
    %v1470 = vshrl.u32 %v1469, 7
    %v1471 = vsub.s32 %v1468, %v1470
    %v1472 = vrot.slane %v1456, %v1471
    %v1474 = vunpack.c.l.s4 1966171168
    %v1475 = vunpack.c.0.s8 %v1474
    %v1476 = vlaneseq
    %v1477 = vshrl.u32 %v1476, 7
    %v1478 = vsub.s32 %v1475, %v1477
    %v1479 = vrot.slane %v1457, %v1478
    %v1481 = vunpack.c.l.s4 1966171168
    %v1482 = vunpack.c.0.s8 %v1481
    %v1483 = vlaneseq
    %v1484 = vshrl.u32 %v1483, 7
    %v1485 = vsub.s32 %v1482, %v1484
    %v1486 = vrot.slane %v1458, %v1485
    %v1487 = vcombine.high %v1465, %v1465
    %v1488 = vcombine.high %v1472, %v1472
    %v1489 = vcombine.high %v1479, %v1479
    %v1490 = vcombine.high %v1486, %v1486
    %v1491 = vlaneseq
    %v1492 = vshrl.u32 %v1491, 7
    %v1493 = vsub.s32 0, %v1492
    %v1494 = vrot.slane %v1465, %v1493
    %v1495 = vlaneseq
    %v1496 = vshrl.u32 %v1495, 7
    %v1497 = vsub.s32 0, %v1496
    %v1498 = vrot.slane %v1479, %v1497
    %v1499 = vlaneseq
    %v1500 = vshrl.u32 %v1499, 7
    %v1501 = vsub.s32 0, %v1500
    %v1502 = vrot.slane %v1487, %v1501
    %v1503 = vlaneseq
    %v1504 = vshrl.u32 %v1503, 7
    %v1505 = vsub.s32 0, %v1504
    %v1506 = vrot.slane %v1489, %v1505
    %v1507 = vlaneseq
    %v1508 = vshrl.u32 %v1507, 7
    %v1509 = vsub.s32 0, %v1508
    %v1510 = vrot.slane %v1472, %v1509
    %v1511 = vlaneseq
    %v1512 = vshrl.u32 %v1511, 7
    %v1513 = vsub.s32 0, %v1512
    %v1514 = vrot.slane %v1486, %v1513
    %v1515 = vlaneseq
    %v1516 = vshrl.u32 %v1515, 7
    %v1517 = vsub.s32 0, %v1516
    %v1518 = vrot.slane %v1488, %v1517
    %v1519 = vlaneseq
    %v1520 = vshrl.u32 %v1519, 7
    %v1521 = vsub.s32 0, %v1520
    %v1522 = vrot.slane %v1490, %v1521
    %1523 = vrot.lane.b32.xlu0 %v1494, 64
    %v1524 = vpop.permute.xlu0 %1523
    %1525 = vrot.lane.b32.xlu0 %v1498, 64
    %v1526 = vpop.permute.xlu0 %1525
    %1527 = vrot.lane.b32.xlu0 %v1502, 64
    %v1528 = vpop.permute.xlu0 %1527
    %1529 = vrot.lane.b32.xlu0 %v1506, 64
    %v1530 = vpop.permute.xlu0 %1529
    %1531 = vrot.lane.b32.xlu0 %v1510, 64
    %v1532 = vpop.permute.xlu0 %1531
    %1533 = vrot.lane.b32.xlu0 %v1514, 64
    %v1534 = vpop.permute.xlu0 %1533
    %1535 = vrot.lane.b32.xlu0 %v1518, 64
    %v1536 = vpop.permute.xlu0 %1535
    %1537 = vrot.lane.b32.xlu0 %v1522, 64
    %v1538 = vpop.permute.xlu0 %1537
    %1547 = vst.msk [vmem:[#allocation9 + $0x6] sm:$0x1] %vm262, %v1524
    %1548 = vst.msk [vmem:[#allocation9 + $0xe] sm:$0x1] %vm262, %v1526
    %1549 = vst.msk [vmem:[#allocation9 + $0x16] sm:$0x1] %vm262, %v1528
    %1550 = vst.msk [vmem:[#allocation9 + $0x1e] sm:$0x1] %vm262, %v1530
    %1551 = vst.msk [vmem:[#allocation9 + $0x26] sm:$0x1] %vm262, %v1532
    %1552 = vst.msk [vmem:[#allocation9 + $0x2e] sm:$0x1] %vm262, %v1534
    %1553 = vst.msk [vmem:[#allocation9 + $0x36] sm:$0x1] %vm262, %v1536
    %1554 = vst.msk [vmem:[#allocation9 + $0x3e] sm:$0x1] %vm262, %v1538
    %1555 = vrot.lane.b32.xlu0 %v1440, 64
    %v1556 = vpop.permute.xlu0 %1555
    %v1557 = vsel %vm52, %v1556, 0
    %1559 = vmatprep.subr.mxu0 0.0
    %1560 = vmatpush1.msra.mxu0 %v46
    %1561 = vmatprep.subr.mxu0 0.0
    %1562 = vmatpush1.msra.mxu0 %v47
    %1563 = vmatprep.subr.mxu0 0.0
    %1564 = vmatpush1.msra.mxu0 %v48
    %1565 = vmatprep.subr.mxu0 0.0
    %1566 = vmatpush1.msra.mxu0 %v49
    %1567 = vmatprep.subr.mxu0 0.0
    %1568 = vmatpush1.msra.mxu0 0.0
    %1569 = vmatprep.subr.mxu0 0.0
    %1570 = vmatpush1.msra.mxu0 0.0
    %1571 = vmatprep.subr.mxu0 0.0
    %1572 = vmatpush1.msra.mxu0 0.0
    %1573 = vmatprep.subr.mxu0 0.0
    %1574 = vmatpush1.msra.mxu0 0.0
    %1575 = vmatprep.subr.mxu0 0.0
    %1576 = vmatpush1.msra.mxu0 0.0
    %1577 = vmatprep.subr.mxu0 0.0
    %1578 = vmatpush1.msra.mxu0 0.0
    %1579 = vmatprep.subr.mxu0 0.0
    %1580 = vmatpush1.msra.mxu0 0.0
    %1581 = vmatprep.subr.mxu0 0.0
    %1582 = vmatpush1.msra.mxu0 0.0
    %1583 = vmatprep.subr.mxu0 0.0
    %1584 = vmatpush1.msra.mxu0 0.0
    %1585 = vmatprep.subr.mxu0 0.0
    %1586 = vmatpush1.msra.mxu0 0.0
    %1587 = vmatprep.subr.mxu0 0.0
    %1588 = vmatpush1.msra.mxu0 0.0
    %1589 = vmatprep.subr.mxu0 0.0
    %1590 = vmatpush1.msra.mxu0 0.0
    %1591 = vmatprep.subr.mxu0 0.0
    %1592 = vmatpush1.msra.mxu0 0.0
    %1593 = vmatprep.subr.mxu0 0.0
    %1594 = vmatpush1.msra.mxu0 0.0
    %1595 = vmatprep.subr.mxu0 0.0
    %1596 = vmatpush1.msra.mxu0 0.0
    %1597 = vmatprep.subr.mxu0 0.0
    %1598 = vmatpush1.msra.mxu0 0.0
    %1599 = vmatprep.subr.mxu0 0.0
    %1600 = vmatpush1.msra.mxu0 0.0
    %1601 = vmatprep.subr.mxu0 0.0
    %1602 = vmatpush1.msra.mxu0 0.0
    %1603 = vmatprep.subr.mxu0 0.0
    %1604 = vmatpush1.msra.mxu0 0.0
    %1605 = vmatprep.subr.mxu0 0.0
    %1606 = vmatpush1.msra.mxu0 0.0
    %1607 = vmatprep.subr.mxu0 0.0
    %1608 = vmatpush1.msra.mxu0 0.0
    %1609 = vmatprep.subr.mxu0 0.0
    %1610 = vmatpush1.msra.mxu0 0.0
    %1611 = vmatprep.subr.mxu0 0.0
    %1612 = vmatpush1.msra.mxu0 0.0
    %1613 = vmatprep.subr.mxu0 0.0
    %1614 = vmatpush1.msra.mxu0 0.0
    %1615 = vmatprep.subr.mxu0 0.0
    %1616 = vmatpush1.msra.mxu0 0.0
    %1617 = vmatprep.subr.mxu0 0.0
    %1618 = vmatpush1.msra.mxu0 0.0
    %1619 = vmatprep.subr.mxu0 0.0
    %1620 = vmatpush1.msra.mxu0 0.0
    %1621 = vmatprep.subr.mxu0 0.0
    %1622 = vmatpush1.msra.mxu0 0.0
    %1623 = vmatprep.mubr.f32.mxu0 0.0
    %1624 = vmatmul.mubr.f32.gmra.mrb[0].mxu0 %v1557
    %v1625 = vpop.f32.mrb[0].mxu0
    %v1626 = vadd.f32 0.0, %v1625
    %v1627 = vpop.f32.mrb[0].mxu0
    %1628 = vdwg.mxu0
    %v1629 = vadd.f32 %v45, %v1626
    %v1630 = vxor.u32 %v1629, 2147483648
    %v1631 = vmul.f32 %v1630, 1.442695
    %v1632 = vpow.pop %v1631
    %v1633 = vadd.f32 %v1632, 1.0
    %v1634 = vrcp.pop %v1633
    %v1635 = vmul.f32 1.0, %v1634
    %v1636 = vmul.f32 %v1635, 2.0
    %v1637 = vsub.f32 %v1636, 1.0
    %v1638 = vmul.f32 %v1635, %v1434
    %1640 = vrot.lane.b32.xlu0 %v1637, 32
    %v1641 = vpop.permute.xlu0 %1640
    %v1643 = vmul.f32 %v1635, %v1641
    %1645 = vrot.lane.b32.xlu0 %v1643, 32
    %v1646 = vpop.permute.xlu0 %1645
    %v1648 = vadd.f32 %v1638, %v1646
    %v1649 = vtanh.pop %v1648
    %1651 = vrot.lane.b32.xlu0 %v1649, 32
    %v1652 = vpop.permute.xlu0 %1651
    %v1654 = vmul.f32 %v1635, %v1652
    %v1656 = vcombine.high %v1654, %v1654
    %v1658 = vunpack.c.l.s4 1966171168
    %v1659 = vunpack.c.0.s8 %v1658
    %v1660 = vlaneseq
    %v1661 = vshrl.u32 %v1660, 7
    %v1662 = vsub.s32 %v1659, %v1661
    %v1663 = vrot.slane %v1654, %v1662
    %v1665 = vunpack.c.l.s4 1966171168
    %v1666 = vunpack.c.0.s8 %v1665
    %v1667 = vlaneseq
    %v1668 = vshrl.u32 %v1667, 7
    %v1669 = vsub.s32 %v1666, %v1668
    %v1670 = vrot.slane %v1656, %v1669
    %v1671 = vcombine.high %v1663, %v1663
    %v1672 = vcombine.high %v1670, %v1670
    %v1674 = vunpack.c.l.s4 1966171168
    %v1675 = vunpack.c.0.s8 %v1674
    %v1676 = vlaneseq
    %v1677 = vshrl.u32 %v1676, 7
    %v1678 = vsub.s32 %v1675, %v1677
    %v1679 = vrot.slane %v1663, %v1678
    %v1681 = vunpack.c.l.s4 1966171168
    %v1682 = vunpack.c.0.s8 %v1681
    %v1683 = vlaneseq
    %v1684 = vshrl.u32 %v1683, 7
    %v1685 = vsub.s32 %v1682, %v1684
    %v1686 = vrot.slane %v1670, %v1685
    %v1688 = vunpack.c.l.s4 1966171168
    %v1689 = vunpack.c.0.s8 %v1688
    %v1690 = vlaneseq
    %v1691 = vshrl.u32 %v1690, 7
    %v1692 = vsub.s32 %v1689, %v1691
    %v1693 = vrot.slane %v1671, %v1692
    %v1695 = vunpack.c.l.s4 1966171168
    %v1696 = vunpack.c.0.s8 %v1695
    %v1697 = vlaneseq
    %v1698 = vshrl.u32 %v1697, 7
    %v1699 = vsub.s32 %v1696, %v1698
    %v1700 = vrot.slane %v1672, %v1699
    %v1701 = vcombine.high %v1679, %v1679
    %v1702 = vcombine.high %v1686, %v1686
    %v1703 = vcombine.high %v1693, %v1693
    %v1704 = vcombine.high %v1700, %v1700
    %v1705 = vlaneseq
    %v1706 = vshrl.u32 %v1705, 7
    %v1707 = vsub.s32 0, %v1706
    %v1708 = vrot.slane %v1679, %v1707
    %v1709 = vlaneseq
    %v1710 = vshrl.u32 %v1709, 7
    %v1711 = vsub.s32 0, %v1710
    %v1712 = vrot.slane %v1693, %v1711
    %v1713 = vlaneseq
    %v1714 = vshrl.u32 %v1713, 7
    %v1715 = vsub.s32 0, %v1714
    %v1716 = vrot.slane %v1701, %v1715
    %v1717 = vlaneseq
    %v1718 = vshrl.u32 %v1717, 7
    %v1719 = vsub.s32 0, %v1718
    %v1720 = vrot.slane %v1703, %v1719
    %v1721 = vlaneseq
    %v1722 = vshrl.u32 %v1721, 7
    %v1723 = vsub.s32 0, %v1722
    %v1724 = vrot.slane %v1686, %v1723
    %v1725 = vlaneseq
    %v1726 = vshrl.u32 %v1725, 7
    %v1727 = vsub.s32 0, %v1726
    %v1728 = vrot.slane %v1700, %v1727
    %v1729 = vlaneseq
    %v1730 = vshrl.u32 %v1729, 7
    %v1731 = vsub.s32 0, %v1730
    %v1732 = vrot.slane %v1702, %v1731
    %v1733 = vlaneseq
    %v1734 = vshrl.u32 %v1733, 7
    %v1735 = vsub.s32 0, %v1734
    %v1736 = vrot.slane %v1704, %v1735
    %1737 = vrot.lane.b32.xlu0 %v1708, 64
    %v1738 = vpop.permute.xlu0 %1737
    %1739 = vrot.lane.b32.xlu0 %v1712, 64
    %v1740 = vpop.permute.xlu0 %1739
    %1741 = vrot.lane.b32.xlu0 %v1716, 64
    %v1742 = vpop.permute.xlu0 %1741
    %1743 = vrot.lane.b32.xlu0 %v1720, 64
    %v1744 = vpop.permute.xlu0 %1743
    %1745 = vrot.lane.b32.xlu0 %v1724, 64
    %v1746 = vpop.permute.xlu0 %1745
    %1747 = vrot.lane.b32.xlu0 %v1728, 64
    %v1748 = vpop.permute.xlu0 %1747
    %1749 = vrot.lane.b32.xlu0 %v1732, 64
    %v1750 = vpop.permute.xlu0 %1749
    %1751 = vrot.lane.b32.xlu0 %v1736, 64
    %v1752 = vpop.permute.xlu0 %1751
    %1761 = vst.msk [vmem:[#allocation9 + $0x7] sm:$0x1] %vm262, %v1738
    %1762 = vst.msk [vmem:[#allocation9 + $0xf] sm:$0x1] %vm262, %v1740
    %1763 = vst.msk [vmem:[#allocation9 + $0x17] sm:$0x1] %vm262, %v1742
    %1764 = vst.msk [vmem:[#allocation9 + $0x1f] sm:$0x1] %vm262, %v1744
    %1765 = vst.msk [vmem:[#allocation9 + $0x27] sm:$0x1] %vm262, %v1746
    %1766 = vst.msk [vmem:[#allocation9 + $0x2f] sm:$0x1] %vm262, %v1748
    %1767 = vst.msk [vmem:[#allocation9 + $0x37] sm:$0x1] %vm262, %v1750
    %1768 = vst.msk [vmem:[#allocation9 + $0x3f] sm:$0x1] %vm262, %v1752
    %1769 = vrot.lane.b32.xlu0 %v1654, 64
    %v1770 = vpop.permute.xlu0 %1769
    %1772 = vst.msk [vmem:[#allocation2] sm:$0xff] %vm52, %v1770
    %1774 = vrot.lane.b32.xlu0 %v1648, 96
    %v1775 = vpop.permute.xlu0 %1774
    %1777 = vst.msk [vmem:[#allocation3] sm:$0xff] %vm52, %v1775
    // Predicated region
    $region22: #{tpu_custom_call.1} parent=1 // pred_check
      _
    $region23: #{tpu_custom_call.1} parent=1 // pred_check_branch
      %1779 = sbr.rel (0) target = $region25
    $region24: #{tpu_custom_call.1} parent=1 // pred_region
      %s1781 = ssub.s32 1024, 1024
      %1782 = vsyncadd [#allocation6], %s1781
      %s1783 = sshll.u32 [#allocation9], 4
      %s1784 = int_to_ptr.vmem [resolvable:$true] %s1783
      %1789 = dma.vmem_to_hbm [thread:$0]  %s1784, 1024, %s2, [#allocation6], 128, 128, 8
    $region25: #{tpu_custom_call.1} parent=1 // pred_fallthru
      _
    // Predicated region
    $region26: #{tpu_custom_call.1} parent=1 // pred_check
      _
    $region27: #{tpu_custom_call.1} parent=1 // pred_check_branch
      %1791 = sbr.rel (0) target = $region29
    $region28: #{tpu_custom_call.1} parent=1 // pred_region
      %1792 = dma.done [#allocation6], 1024
    $region29: #{tpu_custom_call.1} parent=1 // pred_fallthru
      _
    %1793 = vsyncpa [#allocation5], 1
    %1794 = vsyncpa [#allocation8], 1
    %1795 = vsyncpa [#allocation6], 1

// kernel: tpu_custom_call.1
$region0: #{tpu_custom_call.1}
  #allocation0 [shape = 'u32[]', space=smem, size = 0x4, offset = 0x4, fixed_abs, tag = 'smem constant byte address 0x4 - core index']
  #allocation1 [shape = 'u32[144,128]{1,0:T(1,128)}', space=vmem, size = 0x12000, scoped, tag = 'internal scratch']
  #allocation2 [shape = 'f32[8,32]{1,0:T(8,128)}', space=vmem, size = 0x1000, scoped, tag = 'scratch operand']
  #allocation3 [shape = 'f32[8,32]{1,0:T(8,128)}', space=vmem, size = 0x1000, scoped, tag = 'scratch operand']
  %s0 = inlined_call_operand.hbm [shape: f32[8,128], index: 0, kind: input, shape index: {}]
  %s1 = inlined_call_operand.hbm [shape: f32[32,128], index: 1, kind: input, shape index: {}]
  %s2 = inlined_call_operand.hbm [shape: f32[8,8,32], index: 2, kind: output, shape index: {}]
  %s3 = sld [smem:[#allocation0]]
  $region30: #{tpu_custom_call.1} parent=0
    _
  %s5 = ssub.s32 1, %s3
  %s6 = scalar_select 0, %s5, %s3
  $region1: #{tpu_custom_call.1} parent=0
    #allocation4 [shape = 'u8[4096]{0}', space=vmem, size = 0x1000, scoped, tag = 'input window, operand 0, single buffered']
    #allocation5 [shape = 's32[1]{0}', space=sflag, size = 0x4, scoped, tag = 'scoped memory for tpu_custom_call.1']
    #allocation6 [shape = 's32[1]{0}', space=sflag, size = 0x4, scoped, tag = 'scoped memory for tpu_custom_call.1']
    #allocation7 [shape = 'u8[16384]{0}', space=vmem, size = 0x4000, scoped, tag = 'input window, operand 1, single buffered']
    #allocation8 [shape = 's32[1]{0}', space=sflag, size = 0x4, scoped, tag = 'scoped memory for tpu_custom_call.1']
    #allocation9 [shape = 'u8[32768]{0}', space=vmem, size = 0x8000, scoped, tag = 'output window, operand 0, single buffered']
    %7 = vsyncpa [#allocation5], 0
    %8 = vsyncpa [#allocation8], 0
    %9 = vsyncpa [#allocation6], 0
    // Predicated region
    $region2: #{tpu_custom_call.1} parent=1 // pred_check
      _
    $region3: #{tpu_custom_call.1} parent=1 // pred_check_branch
      %11 = sbr.rel (0) target = $region5
    $region4: #{tpu_custom_call.1} parent=1 // pred_region
      %s13 = ssub.s32 128, 128
      %14 = vsyncadd [#allocation5], %s13
      %s16 = sshll.u32 [#allocation4], 4
      %s17 = int_to_ptr.vmem [resolvable:$true] %s16
      %19 = dma.hbm_to_vmem [thread:$0]  %s0, 128, %s17, [#allocation5]
    $region5: #{tpu_custom_call.1} parent=1 // pred_fallthru
      _
    // Predicated region
    $region6: #{tpu_custom_call.1} parent=1 // pred_check
      _
    $region7: #{tpu_custom_call.1} parent=1 // pred_check_branch
      %21 = sbr.rel (0) target = $region9
    $region8: #{tpu_custom_call.1} parent=1 // pred_region
      %s23 = ssub.s32 512, 512
      %24 = vsyncadd [#allocation8], %s23
      %s25 = sshll.u32 [#allocation7], 4
      %s26 = int_to_ptr.vmem [resolvable:$true] %s25
      %31 = dma.hbm_to_vmem [thread:$0]  %s1, 512, %s26, [#allocation8], 128, 128, 8
    $region9: #{tpu_custom_call.1} parent=1 // pred_fallthru
      _
    // Predicated region
    $region10: #{tpu_custom_call.1} parent=1 // pred_check
      _
    $region11: #{tpu_custom_call.1} parent=1 // pred_check_branch
      %33 = sbr.rel (0) target = $region13
    $region12: #{tpu_custom_call.1} parent=1 // pred_region
      %34 = dma.done [#allocation5], 128
    $region13: #{tpu_custom_call.1} parent=1 // pred_fallthru
      _
    // Predicated region
    $region14: #{tpu_custom_call.1} parent=1 // pred_check
      _
    $region15: #{tpu_custom_call.1} parent=1 // pred_check_branch
      %36 = sbr.rel (0) target = $region17
    $region16: #{tpu_custom_call.1} parent=1 // pred_region
      %37 = dma.done [#allocation8], 512
    $region17: #{tpu_custom_call.1} parent=1 // pred_fallthru
      _
    %p38 = scmp.eq.s32.totalorder 0, 0
    // Predicated region
    $region18: #{tpu_custom_call.1} parent=1 // pred_check
      %p39 = pneg %p38
    $region19: #{tpu_custom_call.1} parent=1 // pred_check_branch
      %41 = sbr.rel (%p39) target = $region21
    $region20: #{tpu_custom_call.1} parent=1 // pred_region
      %vm42 = vcmask 261120
      %43 = vst.msk [vmem:[#allocation2] sm:$0xff] %vm42, 0.0
      %44 = vst.msk [vmem:[#allocation3] sm:$0xff] %vm42, 0.0
    $region21: #{tpu_custom_call.1} parent=1 // pred_fallthru
      _
    %v45 = vld [vmem:[#allocation4] sm:$0xff]
    %v46 = vld [vmem:[#allocation7] sm:$0xff]
    %v47 = vld [vmem:[#allocation7 + $0x8] sm:$0xff]
    %v48 = vld [vmem:[#allocation7 + $0x10] sm:$0xff]
    %v49 = vld [vmem:[#allocation7 + $0x18] sm:$0xff]
    %v50 = vld [vmem:[#allocation2] sm:$0xff]
    %v51 = vld [vmem:[#allocation3] sm:$0xff]
    %vm52 = vcmask 261120
    %v54 = vsel %vm52, %v50, 0
    %56 = vmatprep.subr.mxu0 0.0
    %57 = vmatpush1.msra.mxu0 %v46
    %58 = vmatprep.subr.mxu0 0.0
    %59 = vmatpush1.msra.mxu0 %v47
    %60 = vmatprep.subr.mxu0 0.0
    %61 = vmatpush1.msra.mxu0 %v48
    %62 = vmatprep.subr.mxu0 0.0
    %63 = vmatpush1.msra.mxu0 %v49
    %64 = vmatprep.subr.mxu0 0.0
    %65 = vmatpush1.msra.mxu0 0.0
    %66 = vmatprep.subr.mxu0 0.0
    %67 = vmatpush1.msra.mxu0 0.0
    %68 = vmatprep.subr.mxu0 0.0
    %69 = vmatpush1.msra.mxu0 0.0
    %70 = vmatprep.subr.mxu0 0.0
    %71 = vmatpush1.msra.mxu0 0.0
    %72 = vmatprep.subr.mxu0 0.0
    %73 = vmatpush1.msra.mxu0 0.0
    %74 = vmatprep.subr.mxu0 0.0
    %75 = vmatpush1.msra.mxu0 0.0
    %76 = vmatprep.subr.mxu0 0.0
    %77 = vmatpush1.msra.mxu0 0.0
    %78 = vmatprep.subr.mxu0 0.0
    %79 = vmatpush1.msra.mxu0 0.0
    %80 = vmatprep.subr.mxu0 0.0
    %81 = vmatpush1.msra.mxu0 0.0
    %82 = vmatprep.subr.mxu0 0.0
    %83 = vmatpush1.msra.mxu0 0.0
    %84 = vmatprep.subr.mxu0 0.0
    %85 = vmatpush1.msra.mxu0 0.0
    %86 = vmatprep.subr.mxu0 0.0
    %87 = vmatpush1.msra.mxu0 0.0
    %88 = vmatprep.subr.mxu0 0.0
    %89 = vmatpush1.msra.mxu0 0.0
    %90 = vmatprep.subr.mxu0 0.0
    %91 = vmatpush1.msra.mxu0 0.0
    %92 = vmatprep.subr.mxu0 0.0
    %93 = vmatpush1.msra.mxu0 0.0
    %94 = vmatprep.subr.mxu0 0.0
    %95 = vmatpush1.msra.mxu0 0.0
    %96 = vmatprep.subr.mxu0 0.0
    %97 = vmatpush1.msra.mxu0 0.0
    %98 = vmatprep.subr.mxu0 0.0
    %99 = vmatpush1.msra.mxu0 0.0
    %100 = vmatprep.subr.mxu0 0.0
    %101 = vmatpush1.msra.mxu0 0.0
    %102 = vmatprep.subr.mxu0 0.0
    %103 = vmatpush1.msra.mxu0 0.0
    %104 = vmatprep.subr.mxu0 0.0
    %105 = vmatpush1.msra.mxu0 0.0
    %106 = vmatprep.subr.mxu0 0.0
    %107 = vmatpush1.msra.mxu0 0.0
    %108 = vmatprep.subr.mxu0 0.0
    %109 = vmatpush1.msra.mxu0 0.0
    %110 = vmatprep.subr.mxu0 0.0
    %111 = vmatpush1.msra.mxu0 0.0
    %112 = vmatprep.subr.mxu0 0.0
    %113 = vmatpush1.msra.mxu0 0.0
    %114 = vmatprep.subr.mxu0 0.0
    %115 = vmatpush1.msra.mxu0 0.0
    %116 = vmatprep.subr.mxu0 0.0
    %117 = vmatpush1.msra.mxu0 0.0
    %118 = vmatprep.subr.mxu0 0.0
    %119 = vmatpush1.msra.mxu0 0.0
    %120 = vmatprep.mubr.f32.mxu0 0.0
    %121 = vmatmul.mubr.f32.gmra.mrb[0].mxu0 %v54
    %v122 = vpop.f32.mrb[0].mxu0
    %v123 = vadd.f32 0.0, %v122
    %v124 = vpop.f32.mrb[0].mxu0
    %125 = vdwg.mxu0
    %v126 = vadd.f32 %v45, %v123
    %v127 = vxor.u32 %v126, 2147483648
    %v128 = vmul.f32 %v127, 1.442695
    %v129 = vpow.pop %v128
    %v130 = vadd.f32 %v129, 1.0
    %v131 = vrcp.pop %v130
    %v132 = vmul.f32 1.0, %v131
    %v133 = vmul.f32 %v132, 2.0
    %v134 = vsub.f32 %v133, 1.0
    %136 = vrot.lane.b32.xlu0 %v51, 32
    %v137 = vpop.permute.xlu0 %136
    %v139 = vmul.f32 %v132, %v137
    %141 = vrot.lane.b32.xlu0 %v134, 32
    %v142 = vpop.permute.xlu0 %141
    %v144 = vmul.f32 %v132, %v142
    %146 = vrot.lane.b32.xlu0 %v144, 32
    %v147 = vpop.permute.xlu0 %146
    %v149 = vadd.f32 %v139, %v147
    %v150 = vtanh.pop %v149
    %152 = vrot.lane.b32.xlu0 %v150, 32
    %v153 = vpop.permute.xlu0 %152
    %v155 = vmul.f32 %v132, %v153
    %v157 = vcombine.high %v155, %v155
    %v159 = vunpack.c.l.s4 1966171168
    %v160 = vunpack.c.0.s8 %v159
    %v161 = vlaneseq
    %v162 = vshrl.u32 %v161, 7
    %v163 = vsub.s32 %v160, %v162
    %v164 = vrot.slane %v155, %v163
    %v166 = vunpack.c.l.s4 1966171168
    %v167 = vunpack.c.0.s8 %v166
    %v168 = vlaneseq
    %v169 = vshrl.u32 %v168, 7
    %v170 = vsub.s32 %v167, %v169
    %v171 = vrot.slane %v157, %v170
    %v172 = vcombine.high %v164, %v164
    %v173 = vcombine.high %v171, %v171
    %v175 = vunpack.c.l.s4 1966171168
    %v176 = vunpack.c.0.s8 %v175
    %v177 = vlaneseq
    %v178 = vshrl.u32 %v177, 7
    %v179 = vsub.s32 %v176, %v178
    %v180 = vrot.slane %v164, %v179
    %v182 = vunpack.c.l.s4 1966171168
    %v183 = vunpack.c.0.s8 %v182
    %v184 = vlaneseq
    %v185 = vshrl.u32 %v184, 7
    %v186 = vsub.s32 %v183, %v185
    %v187 = vrot.slane %v171, %v186
    %v189 = vunpack.c.l.s4 1966171168
    %v190 = vunpack.c.0.s8 %v189
    %v191 = vlaneseq
    %v192 = vshrl.u32 %v191, 7
    %v193 = vsub.s32 %v190, %v192
    %v194 = vrot.slane %v172, %v193
    %v196 = vunpack.c.l.s4 1966171168
    %v197 = vunpack.c.0.s8 %v196
    %v198 = vlaneseq
    %v199 = vshrl.u32 %v198, 7
    %v200 = vsub.s32 %v197, %v199
    %v201 = vrot.slane %v173, %v200
    %v202 = vcombine.high %v180, %v180
    %v203 = vcombine.high %v187, %v187
    %v204 = vcombine.high %v194, %v194
    %v205 = vcombine.high %v201, %v201
    %v206 = vlaneseq
    %v207 = vshrl.u32 %v206, 7
    %v208 = vsub.s32 0, %v207
    %v209 = vrot.slane %v180, %v208
    %v210 = vlaneseq
    %v211 = vshrl.u32 %v210, 7
    %v212 = vsub.s32 0, %v211
    %v213 = vrot.slane %v194, %v212
    %v214 = vlaneseq
    %v215 = vshrl.u32 %v214, 7
    %v216 = vsub.s32 0, %v215
    %v217 = vrot.slane %v202, %v216
    %v218 = vlaneseq
    %v219 = vshrl.u32 %v218, 7
    %v220 = vsub.s32 0, %v219
    %v221 = vrot.slane %v204, %v220
    %v222 = vlaneseq
    %v223 = vshrl.u32 %v222, 7
    %v224 = vsub.s32 0, %v223
    %v225 = vrot.slane %v187, %v224
    %v226 = vlaneseq
    %v227 = vshrl.u32 %v226, 7
    %v228 = vsub.s32 0, %v227
    %v229 = vrot.slane %v201, %v228
    %v230 = vlaneseq
    %v231 = vshrl.u32 %v230, 7
    %v232 = vsub.s32 0, %v231
    %v233 = vrot.slane %v203, %v232
    %v234 = vlaneseq
    %v235 = vshrl.u32 %v234, 7
    %v236 = vsub.s32 0, %v235
    %v237 = vrot.slane %v205, %v236
    %238 = vrot.lane.b32.xlu0 %v209, 64
    %v239 = vpop.permute.xlu0 %238
    %240 = vrot.lane.b32.xlu0 %v213, 64
    %v241 = vpop.permute.xlu0 %240
    %242 = vrot.lane.b32.xlu0 %v217, 64
    %v243 = vpop.permute.xlu0 %242
    %244 = vrot.lane.b32.xlu0 %v221, 64
    %v245 = vpop.permute.xlu0 %244
    %246 = vrot.lane.b32.xlu0 %v225, 64
    %v247 = vpop.permute.xlu0 %246
    %248 = vrot.lane.b32.xlu0 %v229, 64
    %v249 = vpop.permute.xlu0 %248
    %250 = vrot.lane.b32.xlu0 %v233, 64
    %v251 = vpop.permute.xlu0 %250
    %252 = vrot.lane.b32.xlu0 %v237, 64
    %v253 = vpop.permute.xlu0 %252
    %vm262 = vcmask 253952
    %263 = vst.msk [vmem:[#allocation9] sm:$0x1] %vm262, %v239
    %264 = vst.msk [vmem:[#allocation9 + $0x8] sm:$0x1] %vm262, %v241
    %265 = vst.msk [vmem:[#allocation9 + $0x10] sm:$0x1] %vm262, %v243
    %266 = vst.msk [vmem:[#allocation9 + $0x18] sm:$0x1] %vm262, %v245
    %267 = vst.msk [vmem:[#allocation9 + $0x20] sm:$0x1] %vm262, %v247
    %268 = vst.msk [vmem:[#allocation9 + $0x28] sm:$0x1] %vm262, %v249
    %269 = vst.msk [vmem:[#allocation9 + $0x30] sm:$0x1] %vm262, %v251
    %270 = vst.msk [vmem:[#allocation9 + $0x38] sm:$0x1] %vm262, %v253
    %271 = vrot.lane.b32.xlu0 %v155, 64
    %v272 = vpop.permute.xlu0 %271
    %v273 = vsel %vm52, %v272, 0
    %275 = vmatprep.subr.mxu0 0.0
    %276 = vmatpush1.msra.mxu0 %v46
    %277 = vmatprep.subr.mxu0 0.0
    %278 = vmatpush1.msra.mxu0 %v47
    %279 = vmatprep.subr.mxu0 0.0
    %280 = vmatpush1.msra.mxu0 %v48
    %281 = vmatprep.subr.mxu0 0.0
    %282 = vmatpush1.msra.mxu0 %v49
    %283 = vmatprep.subr.mxu0 0.0
    %284 = vmatpush1.msra.mxu0 0.0
    %285 = vmatprep.subr.mxu0 0.0
    %286 = vmatpush1.msra.mxu0 0.0
    %287 = vmatprep.subr.mxu0 0.0
    %288 = vmatpush1.msra.mxu0 0.0
    %289 = vmatprep.subr.mxu0 0.0
    %290 = vmatpush1.msra.mxu0 0.0
    %291 = vmatprep.subr.mxu0 0.0
    %292 = vmatpush1.msra.mxu0 0.0
    %293 = vmatprep.subr.mxu0 0.0
    %294 = vmatpush1.msra.mxu0 0.0
    %295 = vmatprep.subr.mxu0 0.0
    %296 = vmatpush1.msra.mxu0 0.0
    %297 = vmatprep.subr.mxu0 0.0
    %298 = vmatpush1.msra.mxu0 0.0
    %299 = vmatprep.subr.mxu0 0.0
    %300 = vmatpush1.msra.mxu0 0.0
    %301 = vmatprep.subr.mxu0 0.0
    %302 = vmatpush1.msra.mxu0 0.0
    %303 = vmatprep.subr.mxu0 0.0
    %304 = vmatpush1.msra.mxu0 0.0
    %305 = vmatprep.subr.mxu0 0.0
    %306 = vmatpush1.msra.mxu0 0.0
    %307 = vmatprep.subr.mxu0 0.0
    %308 = vmatpush1.msra.mxu0 0.0
    %309 = vmatprep.subr.mxu0 0.0
    %310 = vmatpush1.msra.mxu0 0.0
    %311 = vmatprep.subr.mxu0 0.0
    %312 = vmatpush1.msra.mxu0 0.0
    %313 = vmatprep.subr.mxu0 0.0
    %314 = vmatpush1.msra.mxu0 0.0
    %315 = vmatprep.subr.mxu0 0.0
    %316 = vmatpush1.msra.mxu0 0.0
    %317 = vmatprep.subr.mxu0 0.0
    %318 = vmatpush1.msra.mxu0 0.0
    %319 = vmatprep.subr.mxu0 0.0
    %320 = vmatpush1.msra.mxu0 0.0
    %321 = vmatprep.subr.mxu0 0.0
    %322 = vmatpush1.msra.mxu0 0.0
    %323 = vmatprep.subr.mxu0 0.0
    %324 = vmatpush1.msra.mxu0 0.0
    %325 = vmatprep.subr.mxu0 0.0
    %326 = vmatpush1.msra.mxu0 0.0
    %327 = vmatprep.subr.mxu0 0.0
    %328 = vmatpush1.msra.mxu0 0.0
    %329 = vmatprep.subr.mxu0 0.0
    %330 = vmatpush1.msra.mxu0 0.0
    %331 = vmatprep.subr.mxu0 0.0
    %332 = vmatpush1.msra.mxu0 0.0
    %333 = vmatprep.subr.mxu0 0.0
    %334 = vmatpush1.msra.mxu0 0.0
    %335 = vmatprep.subr.mxu0 0.0
    %336 = vmatpush1.msra.mxu0 0.0
    %337 = vmatprep.subr.mxu0 0.0
    %338 = vmatpush1.msra.mxu0 0.0
    %339 = vmatprep.mubr.f32.mxu0 0.0
    %340 = vmatmul.mubr.f32.gmra.mrb[0].mxu0 %v273
    %v341 = vpop.f32.mrb[0].mxu0
    %v342 = vadd.f32 0.0, %v341
    %v343 = vpop.f32.mrb[0].mxu0
    %344 = vdwg.mxu0
    %v345 = vadd.f32 %v45, %v342
    %v346 = vxor.u32 %v345, 2147483648
    %v347 = vmul.f32 %v346, 1.442695
    %v348 = vpow.pop %v347
    %v349 = vadd.f32 %v348, 1.0
    %v350 = vrcp.pop %v349
    %v351 = vmul.f32 1.0, %v350
    %v352 = vmul.f32 %v351, 2.0
    %v353 = vsub.f32 %v352, 1.0
    %v354 = vmul.f32 %v351, %v149
    %356 = vrot.lane.b32.xlu0 %v353, 32
    %v357 = vpop.permute.xlu0 %356
    %v359 = vmul.f32 %v351, %v357
    %361 = vrot.lane.b32.xlu0 %v359, 32
    %v362 = vpop.permute.xlu0 %361
    %v364 = vadd.f32 %v354, %v362
    %v365 = vtanh.pop %v364
    %367 = vrot.lane.b32.xlu0 %v365, 32
    %v368 = vpop.permute.xlu0 %367
    %v370 = vmul.f32 %v351, %v368
    %v372 = vcombine.high %v370, %v370
    %v374 = vunpack.c.l.s4 1966171168
    %v375 = vunpack.c.0.s8 %v374
    %v376 = vlaneseq
    %v377 = vshrl.u32 %v376, 7
    %v378 = vsub.s32 %v375, %v377
    %v379 = vrot.slane %v370, %v378
    %v381 = vunpack.c.l.s4 1966171168
    %v382 = vunpack.c.0.s8 %v381
    %v383 = vlaneseq
    %v384 = vshrl.u32 %v383, 7
    %v385 = vsub.s32 %v382, %v384
    %v386 = vrot.slane %v372, %v385
    %v387 = vcombine.high %v379, %v379
    %v388 = vcombine.high %v386, %v386
    %v390 = vunpack.c.l.s4 1966171168
    %v391 = vunpack.c.0.s8 %v390
    %v392 = vlaneseq
    %v393 = vshrl.u32 %v392, 7
    %v394 = vsub.s32 %v391, %v393
    %v395 = vrot.slane %v379, %v394
    %v397 = vunpack.c.l.s4 1966171168
    %v398 = vunpack.c.0.s8 %v397
    %v399 = vlaneseq
    %v400 = vshrl.u32 %v399, 7
    %v401 = vsub.s32 %v398, %v400
    %v402 = vrot.slane %v386, %v401
    %v404 = vunpack.c.l.s4 1966171168
    %v405 = vunpack.c.0.s8 %v404
    %v406 = vlaneseq
    %v407 = vshrl.u32 %v406, 7
    %v408 = vsub.s32 %v405, %v407
    %v409 = vrot.slane %v387, %v408
    %v411 = vunpack.c.l.s4 1966171168
    %v412 = vunpack.c.0.s8 %v411
    %v413 = vlaneseq
    %v414 = vshrl.u32 %v413, 7
    %v415 = vsub.s32 %v412, %v414
    %v416 = vrot.slane %v388, %v415
    %v417 = vcombine.high %v395, %v395
    %v418 = vcombine.high %v402, %v402
    %v419 = vcombine.high %v409, %v409
    %v420 = vcombine.high %v416, %v416
    %v421 = vlaneseq
    %v422 = vshrl.u32 %v421, 7
    %v423 = vsub.s32 0, %v422
    %v424 = vrot.slane %v395, %v423
    %v425 = vlaneseq
    %v426 = vshrl.u32 %v425, 7
    %v427 = vsub.s32 0, %v426
    %v428 = vrot.slane %v409, %v427
    %v429 = vlaneseq
    %v430 = vshrl.u32 %v429, 7
    %v431 = vsub.s32 0, %v430
    %v432 = vrot.slane %v417, %v431
    %v433 = vlaneseq
    %v434 = vshrl.u32 %v433, 7
    %v435 = vsub.s32 0, %v434
    %v436 = vrot.slane %v419, %v435
    %v437 = vlaneseq
    %v438 = vshrl.u32 %v437, 7
    %v439 = vsub.s32 0, %v438
    %v440 = vrot.slane %v402, %v439
    %v441 = vlaneseq
    %v442 = vshrl.u32 %v441, 7
    %v443 = vsub.s32 0, %v442
    %v444 = vrot.slane %v416, %v443
    %v445 = vlaneseq
    %v446 = vshrl.u32 %v445, 7
    %v447 = vsub.s32 0, %v446
    %v448 = vrot.slane %v418, %v447
    %v449 = vlaneseq
    %v450 = vshrl.u32 %v449, 7
    %v451 = vsub.s32 0, %v450
    %v452 = vrot.slane %v420, %v451
    %453 = vrot.lane.b32.xlu0 %v424, 64
    %v454 = vpop.permute.xlu0 %453
    %455 = vrot.lane.b32.xlu0 %v428, 64
    %v456 = vpop.permute.xlu0 %455
    %457 = vrot.lane.b32.xlu0 %v432, 64
    %v458 = vpop.permute.xlu0 %457
    %459 = vrot.lane.b32.xlu0 %v436, 64
    %v460 = vpop.permute.xlu0 %459
    %461 = vrot.lane.b32.xlu0 %v440, 64
    %v462 = vpop.permute.xlu0 %461
    %463 = vrot.lane.b32.xlu0 %v444, 64
    %v464 = vpop.permute.xlu0 %463
    %465 = vrot.lane.b32.xlu0 %v448, 64
    %v466 = vpop.permute.xlu0 %465
    %467 = vrot.lane.b32.xlu0 %v452, 64
    %v468 = vpop.permute.xlu0 %467
    %477 = vst.msk [vmem:[#allocation9 + $0x1] sm:$0x1] %vm262, %v454
    %478 = vst.msk [vmem:[#allocation9 + $0x9] sm:$0x1] %vm262, %v456
    %479 = vst.msk [vmem:[#allocation9 + $0x11] sm:$0x1] %vm262, %v458
    %480 = vst.msk [vmem:[#allocation9 + $0x19] sm:$0x1] %vm262, %v460
    %481 = vst.msk [vmem:[#allocation9 + $0x21] sm:$0x1] %vm262, %v462
    %482 = vst.msk [vmem:[#allocation9 + $0x29] sm:$0x1] %vm262, %v464
    %483 = vst.msk [vmem:[#allocation9 + $0x31] sm:$0x1] %vm262, %v466
    %484 = vst.msk [vmem:[#allocation9 + $0x39] sm:$0x1] %vm262, %v468
    %485 = vrot.lane.b32.xlu0 %v370, 64
    %v486 = vpop.permute.xlu0 %485
    %v487 = vsel %vm52, %v486, 0
    %489 = vmatprep.subr.mxu0 0.0
    %490 = vmatpush1.msra.mxu0 %v46
    %491 = vmatprep.subr.mxu0 0.0
    %492 = vmatpush1.msra.mxu0 %v47
    %493 = vmatprep.subr.mxu0 0.0
    %494 = vmatpush1.msra.mxu0 %v48
    %495 = vmatprep.subr.mxu0 0.0
    %496 = vmatpush1.msra.mxu0 %v49
    %497 = vmatprep.subr.mxu0 0.0
    %498 = vmatpush1.msra.mxu0 0.0
    %499 = vmatprep.subr.mxu0 0.0
    %500 = vmatpush1.msra.mxu0 0.0
    %501 = vmatprep.subr.mxu0 0.0
    %502 = vmatpush1.msra.mxu0 0.0
    %503 = vmatprep.subr.mxu0 0.0
    %504 = vmatpush1.msra.mxu0 0.0
    %505 = vmatprep.subr.mxu0 0.0
    %506 = vmatpush1.msra.mxu0 0.0
    %507 = vmatprep.subr.mxu0 0.0
    %508 = vmatpush1.msra.mxu0 0.0
    %509 = vmatprep.subr.mxu0 0.0
    %510 = vmatpush1.msra.mxu0 0.0
    %511 = vmatprep.subr.mxu0 0.0
    %512 = vmatpush1.msra.mxu0 0.0
    %513 = vmatprep.subr.mxu0 0.0
    %514 = vmatpush1.msra.mxu0 0.0
    %515 = vmatprep.subr.mxu0 0.0
    %516 = vmatpush1.msra.mxu0 0.0
    %517 = vmatprep.subr.mxu0 0.0
    %518 = vmatpush1.msra.mxu0 0.0
    %519 = vmatprep.subr.mxu0 0.0
    %520 = vmatpush1.msra.mxu0 0.0
    %521 = vmatprep.subr.mxu0 0.0
    %522 = vmatpush1.msra.mxu0 0.0
    %523 = vmatprep.subr.mxu0 0.0
    %524 = vmatpush1.msra.mxu0 0.0
    %525 = vmatprep.subr.mxu0 0.0
    %526 = vmatpush1.msra.mxu0 0.0
    %527 = vmatprep.subr.mxu0 0.0
    %528 = vmatpush1.msra.mxu0 0.0
    %529 = vmatprep.subr.mxu0 0.0
    %530 = vmatpush1.msra.mxu0 0.0
    %531 = vmatprep.subr.mxu0 0.0
    %532 = vmatpush1.msra.mxu0 0.0
    %533 = vmatprep.subr.mxu0 0.0
    %534 = vmatpush1.msra.mxu0 0.0
    %535 = vmatprep.subr.mxu0 0.0
    %536 = vmatpush1.msra.mxu0 0.0
    %537 = vmatprep.subr.mxu0 0.0
    %538 = vmatpush1.msra.mxu0 0.0
    %539 = vmatprep.subr.mxu0 0.0
    %540 = vmatpush1.msra.mxu0 0.0
    %541 = vmatprep.subr.mxu0 0.0
    %542 = vmatpush1.msra.mxu0 0.0
    %543 = vmatprep.subr.mxu0 0.0
    %544 = vmatpush1.msra.mxu0 0.0
    %545 = vmatprep.subr.mxu0 0.0
    %546 = vmatpush1.msra.mxu0 0.0
    %547 = vmatprep.subr.mxu0 0.0
    %548 = vmatpush1.msra.mxu0 0.0
    %549 = vmatprep.subr.mxu0 0.0
    %550 = vmatpush1.msra.mxu0 0.0
    %551 = vmatprep.subr.mxu0 0.0
    %552 = vmatpush1.msra.mxu0 0.0
    %553 = vmatprep.mubr.f32.mxu0 0.0
    %554 = vmatmul.mubr.f32.gmra.mrb[0].mxu0 %v487
    %v555 = vpop.f32.mrb[0].mxu0
    %v556 = vadd.f32 0.0, %v555
    %v557 = vpop.f32.mrb[0].mxu0
    %558 = vdwg.mxu0
    %v559 = vadd.f32 %v45, %v556
    %v560 = vxor.u32 %v559, 2147483648
    %v561 = vmul.f32 %v560, 1.442695
    %v562 = vpow.pop %v561
    %v563 = vadd.f32 %v562, 1.0
    %v564 = vrcp.pop %v563
    %v565 = vmul.f32 1.0, %v564
    %v566 = vmul.f32 %v565, 2.0
    %v567 = vsub.f32 %v566, 1.0
    %v568 = vmul.f32 %v565, %v364
    %570 = vrot.lane.b32.xlu0 %v567, 32
    %v571 = vpop.permute.xlu0 %570
    %v573 = vmul.f32 %v565, %v571
    %575 = vrot.lane.b32.xlu0 %v573, 32
    %v576 = vpop.permute.xlu0 %575
    %v578 = vadd.f32 %v568, %v576
    %v579 = vtanh.pop %v578
    %581 = vrot.lane.b32.xlu0 %v579, 32
    %v582 = vpop.permute.xlu0 %581
    %v584 = vmul.f32 %v565, %v582
    %v586 = vcombine.high %v584, %v584
    %v588 = vunpack.c.l.s4 1966171168
    %v589 = vunpack.c.0.s8 %v588
    %v590 = vlaneseq
    %v591 = vshrl.u32 %v590, 7
    %v592 = vsub.s32 %v589, %v591
    %v593 = vrot.slane %v584, %v592
    %v595 = vunpack.c.l.s4 1966171168
    %v596 = vunpack.c.0.s8 %v595
    %v597 = vlaneseq
    %v598 = vshrl.u32 %v597, 7
    %v599 = vsub.s32 %v596, %v598
    %v600 = vrot.slane %v586, %v599
    %v601 = vcombine.high %v593, %v593
    %v602 = vcombine.high %v600, %v600
    %v604 = vunpack.c.l.s4 1966171168
    %v605 = vunpack.c.0.s8 %v604
    %v606 = vlaneseq
    %v607 = vshrl.u32 %v606, 7
    %v608 = vsub.s32 %v605, %v607
    %v609 = vrot.slane %v593, %v608
    %v611 = vunpack.c.l.s4 1966171168
    %v612 = vunpack.c.0.s8 %v611
    %v613 = vlaneseq
    %v614 = vshrl.u32 %v613, 7
    %v615 = vsub.s32 %v612, %v614
    %v616 = vrot.slane %v600, %v615
    %v618 = vunpack.c.l.s4 1966171168
    %v619 = vunpack.c.0.s8 %v618
    %v620 = vlaneseq
    %v621 = vshrl.u32 %v620, 7
    %v622 = vsub.s32 %v619, %v621
    %v623 = vrot.slane %v601, %v622
    %v625 = vunpack.c.l.s4 1966171168
    %v626 = vunpack.c.0.s8 %v625
    %v627 = vlaneseq
    %v628 = vshrl.u32 %v627, 7
    %v629 = vsub.s32 %v626, %v628
    %v630 = vrot.slane %v602, %v629
    %v631 = vcombine.high %v609, %v609
    %v632 = vcombine.high %v616, %v616
    %v633 = vcombine.high %v623, %v623
    %v634 = vcombine.high %v630, %v630
    %v635 = vlaneseq
    %v636 = vshrl.u32 %v635, 7
    %v637 = vsub.s32 0, %v636
    %v638 = vrot.slane %v609, %v637
    %v639 = vlaneseq
    %v640 = vshrl.u32 %v639, 7
    %v641 = vsub.s32 0, %v640
    %v642 = vrot.slane %v623, %v641
    %v643 = vlaneseq
    %v644 = vshrl.u32 %v643, 7
    %v645 = vsub.s32 0, %v644
    %v646 = vrot.slane %v631, %v645
    %v647 = vlaneseq
    %v648 = vshrl.u32 %v647, 7
    %v649 = vsub.s32 0, %v648
    %v650 = vrot.slane %v633, %v649
    %v651 = vlaneseq
    %v652 = vshrl.u32 %v651, 7
    %v653 = vsub.s32 0, %v652
    %v654 = vrot.slane %v616, %v653
    %v655 = vlaneseq
    %v656 = vshrl.u32 %v655, 7
    %v657 = vsub.s32 0, %v656
    %v658 = vrot.slane %v630, %v657
    %v659 = vlaneseq
    %v660 = vshrl.u32 %v659, 7
    %v661 = vsub.s32 0, %v660
    %v662 = vrot.slane %v632, %v661
    %v663 = vlaneseq
    %v664 = vshrl.u32 %v663, 7
    %v665 = vsub.s32 0, %v664
    %v666 = vrot.slane %v634, %v665
    %667 = vrot.lane.b32.xlu0 %v638, 64
    %v668 = vpop.permute.xlu0 %667
    %669 = vrot.lane.b32.xlu0 %v642, 64
    %v670 = vpop.permute.xlu0 %669
    %671 = vrot.lane.b32.xlu0 %v646, 64
    %v672 = vpop.permute.xlu0 %671
    %673 = vrot.lane.b32.xlu0 %v650, 64
    %v674 = vpop.permute.xlu0 %673
    %675 = vrot.lane.b32.xlu0 %v654, 64
    %v676 = vpop.permute.xlu0 %675
    %677 = vrot.lane.b32.xlu0 %v658, 64
    %v678 = vpop.permute.xlu0 %677
    %679 = vrot.lane.b32.xlu0 %v662, 64
    %v680 = vpop.permute.xlu0 %679
    %681 = vrot.lane.b32.xlu0 %v666, 64
    %v682 = vpop.permute.xlu0 %681
    %691 = vst.msk [vmem:[#allocation9 + $0x2] sm:$0x1] %vm262, %v668
    %692 = vst.msk [vmem:[#allocation9 + $0xa] sm:$0x1] %vm262, %v670
    %693 = vst.msk [vmem:[#allocation9 + $0x12] sm:$0x1] %vm262, %v672
    %694 = vst.msk [vmem:[#allocation9 + $0x1a] sm:$0x1] %vm262, %v674
    %695 = vst.msk [vmem:[#allocation9 + $0x22] sm:$0x1] %vm262, %v676
    %696 = vst.msk [vmem:[#allocation9 + $0x2a] sm:$0x1] %vm262, %v678
    %697 = vst.msk [vmem:[#allocation9 + $0x32] sm:$0x1] %vm262, %v680
    %698 = vst.msk [vmem:[#allocation9 + $0x3a] sm:$0x1] %vm262, %v682
    %699 = vrot.lane.b32.xlu0 %v584, 64
    %v700 = vpop.permute.xlu0 %699
    %v701 = vsel %vm52, %v700, 0
    %703 = vmatprep.subr.mxu0 0.0
    %704 = vmatpush1.msra.mxu0 %v46
    %705 = vmatprep.subr.mxu0 0.0
    %706 = vmatpush1.msra.mxu0 %v47
    %707 = vmatprep.subr.mxu0 0.0
    %708 = vmatpush1.msra.mxu0 %v48
    %709 = vmatprep.subr.mxu0 0.0
    %710 = vmatpush1.msra.mxu0 %v49
    %711 = vmatprep.subr.mxu0 0.0
    %712 = vmatpush1.msra.mxu0 0.0
    %713 = vmatprep.subr.mxu0 0.0
    %714 = vmatpush1.msra.mxu0 0.0
    %715 = vmatprep.subr.mxu0 0.0
    %716 = vmatpush1.msra.mxu0 0.0
    %717 = vmatprep.subr.mxu0 0.0
    %718 = vmatpush1.msra.mxu0 0.0
    %719 = vmatprep.subr.mxu0 0.0
    %720 = vmatpush1.msra.mxu0 0.0
    %721 = vmatprep.subr.mxu0 0.0
    %722 = vmatpush1.msra.mxu0 0.0
    %723 = vmatprep.subr.mxu0 0.0
    %724 = vmatpush1.msra.mxu0 0.0
    %725 = vmatprep.subr.mxu0 0.0
    %726 = vmatpush1.msra.mxu0 0.0
    %727 = vmatprep.subr.mxu0 0.0
    %728 = vmatpush1.msra.mxu0 0.0
    %729 = vmatprep.subr.mxu0 0.0
    %730 = vmatpush1.msra.mxu0 0.0
    %731 = vmatprep.subr.mxu0 0.0
    %732 = vmatpush1.msra.mxu0 0.0
    %733 = vmatprep.subr.mxu0 0.0
    %734 = vmatpush1.msra.mxu0 0.0
    %735 = vmatprep.subr.mxu0 0.0
    %736 = vmatpush1.msra.mxu0 0.0
    %737 = vmatprep.subr.mxu0 0.0
    %738 = vmatpush1.msra.mxu0 0.0
    %739 = vmatprep.subr.mxu0 0.0
    %740 = vmatpush1.msra.mxu0 0.0
    %741 = vmatprep.subr.mxu0 0.0
    %742 = vmatpush1.msra.mxu0 0.0
    %743 = vmatprep.subr.mxu0 0.0
    %744 = vmatpush1.msra.mxu0 0.0
    %745 = vmatprep.subr.mxu0 0.0
    %746 = vmatpush1.msra.mxu0 0.0
    %747 = vmatprep.subr.mxu0 0.0
    %748 = vmatpush1.msra.mxu0 0.0
    %749 = vmatprep.subr.mxu0 0.0
    %750 = vmatpush1.msra.mxu0 0.0
    %751 = vmatprep.subr.mxu0 0.0
    %752 = vmatpush1.msra.mxu0 0.0
    %753 = vmatprep.subr.mxu0 0.0
    %754 = vmatpush1.msra.mxu0 0.0
    %755 = vmatprep.subr.mxu0 0.0
    %756 = vmatpush1.msra.mxu0 0.0
    %757 = vmatprep.subr.mxu0 0.0
    %758 = vmatpush1.msra.mxu0 0.0
    %759 = vmatprep.subr.mxu0 0.0
    %760 = vmatpush1.msra.mxu0 0.0
    %761 = vmatprep.subr.mxu0 0.0
    %762 = vmatpush1.msra.mxu0 0.0
    %763 = vmatprep.subr.mxu0 0.0
    %764 = vmatpush1.msra.mxu0 0.0
    %765 = vmatprep.subr.mxu0 0.0
    %766 = vmatpush1.msra.mxu0 0.0
    %767 = vmatprep.mubr.f32.mxu0 0.0
    %768 = vmatmul.mubr.f32.gmra.mrb[0].mxu0 %v701
    %v769 = vpop.f32.mrb[0].mxu0
    %v770 = vadd.f32 0.0, %v769
    %v771 = vpop.f32.mrb[0].mxu0
    %772 = vdwg.mxu0
    %v773 = vadd.f32 %v45, %v770
    %v774 = vxor.u32 %v773, 2147483648
    %v775 = vmul.f32 %v774, 1.442695
    %v776 = vpow.pop %v775
    %v777 = vadd.f32 %v776, 1.0
    %v778 = vrcp.pop %v777
    %v779 = vmul.f32 1.0, %v778
    %v780 = vmul.f32 %v779, 2.0
    %v781 = vsub.f32 %v780, 1.0
    %v782 = vmul.f32 %v779, %v578
    %784 = vrot.lane.b32.xlu0 %v781, 32
    %v785 = vpop.permute.xlu0 %784
    %v787 = vmul.f32 %v779, %v785
    %789 = vrot.lane.b32.xlu0 %v787, 32
    %v790 = vpop.permute.xlu0 %789
    %v792 = vadd.f32 %v782, %v790
    %v793 = vtanh.pop %v792
    %795 = vrot.lane.b32.xlu0 %v793, 32
    %v796 = vpop.permute.xlu0 %795
    %v798 = vmul.f32 %v779, %v796
    %v800 = vcombine.high %v798, %v798
    %v802 = vunpack.c.l.s4 1966171168
    %v803 = vunpack.c.0.s8 %v802
    %v804 = vlaneseq
    %v805 = vshrl.u32 %v804, 7
    %v806 = vsub.s32 %v803, %v805
    %v807 = vrot.slane %v798, %v806
    %v809 = vunpack.c.l.s4 1966171168
    %v810 = vunpack.c.0.s8 %v809
    %v811 = vlaneseq
    %v812 = vshrl.u32 %v811, 7
    %v813 = vsub.s32 %v810, %v812
    %v814 = vrot.slane %v800, %v813
    %v815 = vcombine.high %v807, %v807
    %v816 = vcombine.high %v814, %v814
    %v818 = vunpack.c.l.s4 1966171168
    %v819 = vunpack.c.0.s8 %v818
    %v820 = vlaneseq
    %v821 = vshrl.u32 %v820, 7
    %v822 = vsub.s32 %v819, %v821
    %v823 = vrot.slane %v807, %v822
    %v825 = vunpack.c.l.s4 1966171168
    %v826 = vunpack.c.0.s8 %v825
    %v827 = vlaneseq
    %v828 = vshrl.u32 %v827, 7
    %v829 = vsub.s32 %v826, %v828
    %v830 = vrot.slane %v814, %v829
    %v832 = vunpack.c.l.s4 1966171168
    %v833 = vunpack.c.0.s8 %v832
    %v834 = vlaneseq
    %v835 = vshrl.u32 %v834, 7
    %v836 = vsub.s32 %v833, %v835
    %v837 = vrot.slane %v815, %v836
    %v839 = vunpack.c.l.s4 1966171168
    %v840 = vunpack.c.0.s8 %v839
    %v841 = vlaneseq
    %v842 = vshrl.u32 %v841, 7
    %v843 = vsub.s32 %v840, %v842
    %v844 = vrot.slane %v816, %v843
    %v845 = vcombine.high %v823, %v823
    %v846 = vcombine.high %v830, %v830
    %v847 = vcombine.high %v837, %v837
    %v848 = vcombine.high %v844, %v844
    %v849 = vlaneseq
    %v850 = vshrl.u32 %v849, 7
    %v851 = vsub.s32 0, %v850
    %v852 = vrot.slane %v823, %v851
    %v853 = vlaneseq
    %v854 = vshrl.u32 %v853, 7
    %v855 = vsub.s32 0, %v854
    %v856 = vrot.slane %v837, %v855
    %v857 = vlaneseq
    %v858 = vshrl.u32 %v857, 7
    %v859 = vsub.s32 0, %v858
    %v860 = vrot.slane %v845, %v859
    %v861 = vlaneseq
    %v862 = vshrl.u32 %v861, 7
    %v863 = vsub.s32 0, %v862
    %v864 = vrot.slane %v847, %v863
    %v865 = vlaneseq
    %v866 = vshrl.u32 %v865, 7
    %v867 = vsub.s32 0, %v866
    %v868 = vrot.slane %v830, %v867
    %v869 = vlaneseq
    %v870 = vshrl.u32 %v869, 7
    %v871 = vsub.s32 0, %v870
    %v872 = vrot.slane %v844, %v871
    %v873 = vlaneseq
    %v874 = vshrl.u32 %v873, 7
    %v875 = vsub.s32 0, %v874
    %v876 = vrot.slane %v846, %v875
    %v877 = vlaneseq
    %v878 = vshrl.u32 %v877, 7
    %v879 = vsub.s32 0, %v878
    %v880 = vrot.slane %v848, %v879
    %881 = vrot.lane.b32.xlu0 %v852, 64
    %v882 = vpop.permute.xlu0 %881
    %883 = vrot.lane.b32.xlu0 %v856, 64
    %v884 = vpop.permute.xlu0 %883
    %885 = vrot.lane.b32.xlu0 %v860, 64
    %v886 = vpop.permute.xlu0 %885
    %887 = vrot.lane.b32.xlu0 %v864, 64
    %v888 = vpop.permute.xlu0 %887
    %889 = vrot.lane.b32.xlu0 %v868, 64
    %v890 = vpop.permute.xlu0 %889
    %891 = vrot.lane.b32.xlu0 %v872, 64
    %v892 = vpop.permute.xlu0 %891
    %893 = vrot.lane.b32.xlu0 %v876, 64
    %v894 = vpop.permute.xlu0 %893
    %895 = vrot.lane.b32.xlu0 %v880, 64
    %v896 = vpop.permute.xlu0 %895
    %905 = vst.msk [vmem:[#allocation9 + $0x3] sm:$0x1] %vm262, %v882
    %906 = vst.msk [vmem:[#allocation9 + $0xb] sm:$0x1] %vm262, %v884
    %907 = vst.msk [vmem:[#allocation9 + $0x13] sm:$0x1] %vm262, %v886
    %908 = vst.msk [vmem:[#allocation9 + $0x1b] sm:$0x1] %vm262, %v888
    %909 = vst.msk [vmem:[#allocation9 + $0x23] sm:$0x1] %vm262, %v890
    %910 = vst.msk [vmem:[#allocation9 + $0x2b] sm:$0x1] %vm262, %v892
    %911 = vst.msk [vmem:[#allocation9 + $0x33] sm:$0x1] %vm262, %v894
    %912 = vst.msk [vmem:[#allocation9 + $0x3b] sm:$0x1] %vm262, %v896
    %913 = vrot.lane.b32.xlu0 %v798, 64
    %v914 = vpop.permute.xlu0 %913
    %v915 = vsel %vm52, %v914, 0
    %917 = vmatprep.subr.mxu0 0.0
    %918 = vmatpush1.msra.mxu0 %v46
    %919 = vmatprep.subr.mxu0 0.0
    %920 = vmatpush1.msra.mxu0 %v47
    %921 = vmatprep.subr.mxu0 0.0
    %922 = vmatpush1.msra.mxu0 %v48
    %923 = vmatprep.subr.mxu0 0.0
    %924 = vmatpush1.msra.mxu0 %v49
    %925 = vmatprep.subr.mxu0 0.0
    %926 = vmatpush1.msra.mxu0 0.0
    %927 = vmatprep.subr.mxu0 0.0
    %928 = vmatpush1.msra.mxu0 0.0
    %929 = vmatprep.subr.mxu0 0.0
    %930 = vmatpush1.msra.mxu0 0.0
    %931 = vmatprep.subr.mxu0 0.0
    %932 = vmatpush1.msra.mxu0 0.0
    %933 = vmatprep.subr.mxu0 0.0
    %934 = vmatpush1.msra.mxu0 0.0
    %935 = vmatprep.subr.mxu0 0.0
    %936 = vmatpush1.msra.mxu0 0.0
    %937 = vmatprep.subr.mxu0 0.0
    %938 = vmatpush1.msra.mxu0 0.0
    %939 = vmatprep.subr.mxu0 0.0
    %940 = vmatpush1.msra.mxu0 0.0
    %941 = vmatprep.subr.mxu0 0.0
    %942 = vmatpush1.msra.mxu0 0.0
    %943 = vmatprep.subr.mxu0 0.0
    %944 = vmatpush1.msra.mxu0 0.0
    %945 = vmatprep.subr.mxu0 0.0
    %946 = vmatpush1.msra.mxu0 0.0
    %947 = vmatprep.subr.mxu0 0.0
    %948 = vmatpush1.msra.mxu0 0.0
    %949 = vmatprep.subr.mxu0 0.0
    %950 = vmatpush1.msra.mxu0 0.0
    %951 = vmatprep.subr.mxu0 0.0
    %952 = vmatpush1.msra.mxu0 0.0
    %953 = vmatprep.subr.mxu0 0.0
    %954 = vmatpush1.msra.mxu0 0.0
    %955 = vmatprep.subr.mxu0 0.0
    %956 = vmatpush1.msra.mxu0 0.0
    %957 = vmatprep.subr.mxu0 0.0
    %958 = vmatpush1.msra.mxu0 0.0
    %959 = vmatprep.subr.mxu0 0.0
    %960 = vmatpush1.msra.mxu0 0.0
    %961 = vmatprep.subr.mxu0 0.0
    %962 = vmatpush1.msra.mxu0 0.0
    %963 = vmatprep.subr.mxu0 0.0
    %964 = vmatpush1.msra.mxu0 0.0
    %965 = vmatprep.subr.mxu0 0.0
    %966 = vmatpush1.msra.mxu0 0.0
    %967 = vmatprep.subr.mxu0 0.0
    %968 = vmatpush1.msra.mxu0 0.0
    %969 = vmatprep.subr.mxu0 0.0
    %970 = vmatpush1.msra.mxu0 0.0
    %971 = vmatprep.subr.mxu0 0.0
    %972 = vmatpush1.msra.mxu0 0.0
    %973 = vmatprep.subr.mxu0 0.0
    %974 = vmatpush1.msra.mxu0 0.0
    %975 = vmatprep.subr.mxu0 0.0
    %976 = vmatpush1.msra.mxu0 0.0
    %977 = vmatprep.subr.mxu0 0.0
    %978 = vmatpush1.msra.mxu0 0.0
    %979 = vmatprep.subr.mxu0 0.0
    %980 = vmatpush1.msra.mxu0 0.0
    %981 = vmatprep.mubr.f32.mxu0 0.0
    %982 = vmatmul.mubr.f32.gmra.mrb[0].mxu0 %v915
    %v983 = vpop.f32.mrb[0].mxu0
    %v984 = vadd.f32 0.0, %v983
    %v985 = vpop.f32.mrb[0].mxu0
    %986 = vdwg.mxu0
    %v987 = vadd.f32 %v45, %v984
    %v988 = vxor.u32 %v987, 2147483648
    %v989 = vmul.f32 %v988, 1.442695
    %v990 = vpow.pop %v989
    %v991 = vadd.f32 %v990, 1.0
    %v992 = vrcp.pop %v991
    %v993 = vmul.f32 1.0, %v992
    %v994 = vmul.f32 %v993, 2.0
    %v995 = vsub.f32 %v994, 1.0
    %v996 = vmul.f32 %v993, %v792
    %998 = vrot.lane.b32.xlu0 %v995, 32
    %v999 = vpop.permute.xlu0 %998
    %v1001 = vmul.f32 %v993, %v999
    %1003 = vrot.lane.b32.xlu0 %v1001, 32
    %v1004 = vpop.permute.xlu0 %1003
    %v1006 = vadd.f32 %v996, %v1004
    %v1007 = vtanh.pop %v1006
    %1009 = vrot.lane.b32.xlu0 %v1007, 32
    %v1010 = vpop.permute.xlu0 %1009
    %v1012 = vmul.f32 %v993, %v1010
    %v1014 = vcombine.high %v1012, %v1012
    %v1016 = vunpack.c.l.s4 1966171168
    %v1017 = vunpack.c.0.s8 %v1016
    %v1018 = vlaneseq
    %v1019 = vshrl.u32 %v1018, 7
    %v1020 = vsub.s32 %v1017, %v1019
    %v1021 = vrot.slane %v1012, %v1020
    %v1023 = vunpack.c.l.s4 1966171168
    %v1024 = vunpack.c.0.s8 %v1023
    %v1025 = vlaneseq
    %v1026 = vshrl.u32 %v1025, 7
    %v1027 = vsub.s32 %v1024, %v1026
    %v1028 = vrot.slane %v1014, %v1027
    %v1029 = vcombine.high %v1021, %v1021
    %v1030 = vcombine.high %v1028, %v1028
    %v1032 = vunpack.c.l.s4 1966171168
    %v1033 = vunpack.c.0.s8 %v1032
    %v1034 = vlaneseq
    %v1035 = vshrl.u32 %v1034, 7
    %v1036 = vsub.s32 %v1033, %v1035
    %v1037 = vrot.slane %v1021, %v1036
    %v1039 = vunpack.c.l.s4 1966171168
    %v1040 = vunpack.c.0.s8 %v1039
    %v1041 = vlaneseq
    %v1042 = vshrl.u32 %v1041, 7
    %v1043 = vsub.s32 %v1040, %v1042
    %v1044 = vrot.slane %v1028, %v1043
    %v1046 = vunpack.c.l.s4 1966171168
    %v1047 = vunpack.c.0.s8 %v1046
    %v1048 = vlaneseq
    %v1049 = vshrl.u32 %v1048, 7
    %v1050 = vsub.s32 %v1047, %v1049
    %v1051 = vrot.slane %v1029, %v1050
    %v1053 = vunpack.c.l.s4 1966171168
    %v1054 = vunpack.c.0.s8 %v1053
    %v1055 = vlaneseq
    %v1056 = vshrl.u32 %v1055, 7
    %v1057 = vsub.s32 %v1054, %v1056
    %v1058 = vrot.slane %v1030, %v1057
    %v1059 = vcombine.high %v1037, %v1037
    %v1060 = vcombine.high %v1044, %v1044
    %v1061 = vcombine.high %v1051, %v1051
    %v1062 = vcombine.high %v1058, %v1058
    %v1063 = vlaneseq
    %v1064 = vshrl.u32 %v1063, 7
    %v1065 = vsub.s32 0, %v1064
    %v1066 = vrot.slane %v1037, %v1065
    %v1067 = vlaneseq
    %v1068 = vshrl.u32 %v1067, 7
    %v1069 = vsub.s32 0, %v1068
    %v1070 = vrot.slane %v1051, %v1069
    %v1071 = vlaneseq
    %v1072 = vshrl.u32 %v1071, 7
    %v1073 = vsub.s32 0, %v1072
    %v1074 = vrot.slane %v1059, %v1073
    %v1075 = vlaneseq
    %v1076 = vshrl.u32 %v1075, 7
    %v1077 = vsub.s32 0, %v1076
    %v1078 = vrot.slane %v1061, %v1077
    %v1079 = vlaneseq
    %v1080 = vshrl.u32 %v1079, 7
    %v1081 = vsub.s32 0, %v1080
    %v1082 = vrot.slane %v1044, %v1081
    %v1083 = vlaneseq
    %v1084 = vshrl.u32 %v1083, 7
    %v1085 = vsub.s32 0, %v1084
    %v1086 = vrot.slane %v1058, %v1085
    %v1087 = vlaneseq
    %v1088 = vshrl.u32 %v1087, 7
    %v1089 = vsub.s32 0, %v1088
    %v1090 = vrot.slane %v1060, %v1089
    %v1091 = vlaneseq
    %v1092 = vshrl.u32 %v1091, 7
    %v1093 = vsub.s32 0, %v1092
    %v1094 = vrot.slane %v1062, %v1093
    %1095 = vrot.lane.b32.xlu0 %v1066, 64
    %v1096 = vpop.permute.xlu0 %1095
    %1097 = vrot.lane.b32.xlu0 %v1070, 64
    %v1098 = vpop.permute.xlu0 %1097
    %1099 = vrot.lane.b32.xlu0 %v1074, 64
    %v1100 = vpop.permute.xlu0 %1099
    %1101 = vrot.lane.b32.xlu0 %v1078, 64
    %v1102 = vpop.permute.xlu0 %1101
    %1103 = vrot.lane.b32.xlu0 %v1082, 64
    %v1104 = vpop.permute.xlu0 %1103
    %1105 = vrot.lane.b32.xlu0 %v1086, 64
    %v1106 = vpop.permute.xlu0 %1105
    %1107 = vrot.lane.b32.xlu0 %v1090, 64
    %v1108 = vpop.permute.xlu0 %1107
    %1109 = vrot.lane.b32.xlu0 %v1094, 64
    %v1110 = vpop.permute.xlu0 %1109
    %1119 = vst.msk [vmem:[#allocation9 + $0x4] sm:$0x1] %vm262, %v1096
    %1120 = vst.msk [vmem:[#allocation9 + $0xc] sm:$0x1] %vm262, %v1098
    %1121 = vst.msk [vmem:[#allocation9 + $0x14] sm:$0x1] %vm262, %v1100
    %1122 = vst.msk [vmem:[#allocation9 + $0x1c] sm:$0x1] %vm262, %v1102
    %1123 = vst.msk [vmem:[#allocation9 + $0x24] sm:$0x1] %vm262, %v1104
    %1124 = vst.msk [vmem:[#allocation9 + $0x2c] sm:$0x1] %vm262, %v1106
    %1125 = vst.msk [vmem:[#allocation9 + $0x34] sm:$0x1] %vm262, %v1108
    %1126 = vst.msk [vmem:[#allocation9 + $0x3c] sm:$0x1] %vm262, %v1110
    %1127 = vrot.lane.b32.xlu0 %v1012, 64
    %v1128 = vpop.permute.xlu0 %1127
    %v1129 = vsel %vm52, %v1128, 0
    %1131 = vmatprep.subr.mxu0 0.0
    %1132 = vmatpush1.msra.mxu0 %v46
    %1133 = vmatprep.subr.mxu0 0.0
    %1134 = vmatpush1.msra.mxu0 %v47
    %1135 = vmatprep.subr.mxu0 0.0
    %1136 = vmatpush1.msra.mxu0 %v48
    %1137 = vmatprep.subr.mxu0 0.0
    %1138 = vmatpush1.msra.mxu0 %v49
    %1139 = vmatprep.subr.mxu0 0.0
    %1140 = vmatpush1.msra.mxu0 0.0
    %1141 = vmatprep.subr.mxu0 0.0
    %1142 = vmatpush1.msra.mxu0 0.0
    %1143 = vmatprep.subr.mxu0 0.0
    %1144 = vmatpush1.msra.mxu0 0.0
    %1145 = vmatprep.subr.mxu0 0.0
    %1146 = vmatpush1.msra.mxu0 0.0
    %1147 = vmatprep.subr.mxu0 0.0
    %1148 = vmatpush1.msra.mxu0 0.0
    %1149 = vmatprep.subr.mxu0 0.0
    %1150 = vmatpush1.msra.mxu0 0.0
    %1151 = vmatprep.subr.mxu0 0.0
    %1152 = vmatpush1.msra.mxu0 0.0
    %1153 = vmatprep.subr.mxu0 0.0
    %1154 = vmatpush1.msra.mxu0 0.0
    %1155 = vmatprep.subr.mxu0 0.0
    %1156 = vmatpush1.msra.mxu0 0.0
    %1157 = vmatprep.subr.mxu0 0.0
    %1158 = vmatpush1.msra.mxu0 0.0
    %1159 = vmatprep.subr.mxu0 0.0
    %1160 = vmatpush1.msra.mxu0 0.0
    %1161 = vmatprep.subr.mxu0 0.0
    %1162 = vmatpush1.msra.mxu0 0.0
    %1163 = vmatprep.subr.mxu0 0.0
    %1164 = vmatpush1.msra.mxu0 0.0
    %1165 = vmatprep.subr.mxu0 0.0
    %1166 = vmatpush1.msra.mxu0 0.0
    %1167 = vmatprep.subr.mxu0 0.0
    %1168 = vmatpush1.msra.mxu0 0.0
    %1169 = vmatprep.subr.mxu0 0.0
    %1170 = vmatpush1.msra.mxu0 0.0
    %1171 = vmatprep.subr.mxu0 0.0
    %1172 = vmatpush1.msra.mxu0 0.0
    %1173 = vmatprep.subr.mxu0 0.0
    %1174 = vmatpush1.msra.mxu0 0.0
    %1175 = vmatprep.subr.mxu0 0.0
    %1176 = vmatpush1.msra.mxu0 0.0
    %1177 = vmatprep.subr.mxu0 0.0
    %1178 = vmatpush1.msra.mxu0 0.0
    %1179 = vmatprep.subr.mxu0 0.0
    %1180 = vmatpush1.msra.mxu0 0.0
    %1181 = vmatprep.subr.mxu0 0.0
    %1182 = vmatpush1.msra.mxu0 0.0
    %1183 = vmatprep.subr.mxu0 0.0
    %1184 = vmatpush1.msra.mxu0 0.0
    %1185 = vmatprep.subr.mxu0 0.0
    %1186 = vmatpush1.msra.mxu0 0.0
    %1187 = vmatprep.subr.mxu0 0.0
    %1188 = vmatpush1.msra.mxu0 0.0
    %1189 = vmatprep.subr.mxu0 0.0
    %1190 = vmatpush1.msra.mxu0 0.0
    %1191 = vmatprep.subr.mxu0 0.0
    %1192 = vmatpush1.msra.mxu0 0.0
    %1193 = vmatprep.subr.mxu0 0.0
    %1194 = vmatpush1.msra.mxu0 0.0
    %1195 = vmatprep.mubr.f32.mxu0 0.0
    %1196 = vmatmul.mubr.f32.gmra.mrb[0].mxu0 %v1129
    %v1197 = vpop.f32.mrb[0].mxu0
    %v1198 = vadd.f32 0.0, %v1197
    %v1199 = vpop.f32.mrb[0].mxu0
    %1200 = vdwg.mxu0
    %v1201 = vadd.f32 %v45, %v1198
    %v1202 = vxor.u32 %v1201, 2147483648
    %v1203 = vmul.f32 %v1202, 1.442695
    %v1204 = vpow.pop %v1203
    %v1205 = vadd.f32 %v1204, 1.0
    %v1206 = vrcp.pop %v1205
    %v1207 = vmul.f32 1.0, %v1206
    %v1208 = vmul.f32 %v1207, 2.0
    %v1209 = vsub.f32 %v1208, 1.0
    %v1210 = vmul.f32 %v1207, %v1006
    %1212 = vrot.lane.b32.xlu0 %v1209, 32
    %v1213 = vpop.permute.xlu0 %1212
    %v1215 = vmul.f32 %v1207, %v1213
    %1217 = vrot.lane.b32.xlu0 %v1215, 32
    %v1218 = vpop.permute.xlu0 %1217
    %v1220 = vadd.f32 %v1210, %v1218
    %v1221 = vtanh.pop %v1220
    %1223 = vrot.lane.b32.xlu0 %v1221, 32
    %v1224 = vpop.permute.xlu0 %1223
    %v1226 = vmul.f32 %v1207, %v1224
    %v1228 = vcombine.high %v1226, %v1226
    %v1230 = vunpack.c.l.s4 1966171168
    %v1231 = vunpack.c.0.s8 %v1230
    %v1232 = vlaneseq
    %v1233 = vshrl.u32 %v1232, 7
    %v1234 = vsub.s32 %v1231, %v1233
    %v1235 = vrot.slane %v1226, %v1234
    %v1237 = vunpack.c.l.s4 1966171168
    %v1238 = vunpack.c.0.s8 %v1237
    %v1239 = vlaneseq
    %v1240 = vshrl.u32 %v1239, 7
    %v1241 = vsub.s32 %v1238, %v1240
    %v1242 = vrot.slane %v1228, %v1241
    %v1243 = vcombine.high %v1235, %v1235
    %v1244 = vcombine.high %v1242, %v1242
    %v1246 = vunpack.c.l.s4 1966171168
    %v1247 = vunpack.c.0.s8 %v1246
    %v1248 = vlaneseq
    %v1249 = vshrl.u32 %v1248, 7
    %v1250 = vsub.s32 %v1247, %v1249
    %v1251 = vrot.slane %v1235, %v1250
    %v1253 = vunpack.c.l.s4 1966171168
    %v1254 = vunpack.c.0.s8 %v1253
    %v1255 = vlaneseq
    %v1256 = vshrl.u32 %v1255, 7
    %v1257 = vsub.s32 %v1254, %v1256
    %v1258 = vrot.slane %v1242, %v1257
    %v1260 = vunpack.c.l.s4 1966171168
    %v1261 = vunpack.c.0.s8 %v1260
    %v1262 = vlaneseq
    %v1263 = vshrl.u32 %v1262, 7
    %v1264 = vsub.s32 %v1261, %v1263
    %v1265 = vrot.slane %v1243, %v1264
    %v1267 = vunpack.c.l.s4 1966171168
    %v1268 = vunpack.c.0.s8 %v1267
    %v1269 = vlaneseq
    %v1270 = vshrl.u32 %v1269, 7
    %v1271 = vsub.s32 %v1268, %v1270
    %v1272 = vrot.slane %v1244, %v1271
    %v1273 = vcombine.high %v1251, %v1251
    %v1274 = vcombine.high %v1258, %v1258
    %v1275 = vcombine.high %v1265, %v1265
    %v1276 = vcombine.high %v1272, %v1272
    %v1277 = vlaneseq
    %v1278 = vshrl.u32 %v1277, 7
    %v1279 = vsub.s32 0, %v1278
    %v1280 = vrot.slane %v1251, %v1279
    %v1281 = vlaneseq
    %v1282 = vshrl.u32 %v1281, 7
    %v1283 = vsub.s32 0, %v1282
    %v1284 = vrot.slane %v1265, %v1283
    %v1285 = vlaneseq
    %v1286 = vshrl.u32 %v1285, 7
    %v1287 = vsub.s32 0, %v1286
    %v1288 = vrot.slane %v1273, %v1287
    %v1289 = vlaneseq
    %v1290 = vshrl.u32 %v1289, 7
    %v1291 = vsub.s32 0, %v1290
    %v1292 = vrot.slane %v1275, %v1291
    %v1293 = vlaneseq
    %v1294 = vshrl.u32 %v1293, 7
    %v1295 = vsub.s32 0, %v1294
    %v1296 = vrot.slane %v1258, %v1295
    %v1297 = vlaneseq
    %v1298 = vshrl.u32 %v1297, 7
    %v1299 = vsub.s32 0, %v1298
    %v1300 = vrot.slane %v1272, %v1299
    %v1301 = vlaneseq
    %v1302 = vshrl.u32 %v1301, 7
    %v1303 = vsub.s32 0, %v1302
    %v1304 = vrot.slane %v1274, %v1303
    %v1305 = vlaneseq
    %v1306 = vshrl.u32 %v1305, 7
    %v1307 = vsub.s32 0, %v1306
    %v1308 = vrot.slane %v1276, %v1307
    %1309 = vrot.lane.b32.xlu0 %v1280, 64
    %v1310 = vpop.permute.xlu0 %1309
    %1311 = vrot.lane.b32.xlu0 %v1284, 64
    %v1312 = vpop.permute.xlu0 %1311
    %1313 = vrot.lane.b32.xlu0 %v1288, 64
    %v1314 = vpop.permute.xlu0 %1313
    %1315 = vrot.lane.b32.xlu0 %v1292, 64
    %v1316 = vpop.permute.xlu0 %1315
    %1317 = vrot.lane.b32.xlu0 %v1296, 64
    %v1318 = vpop.permute.xlu0 %1317
    %1319 = vrot.lane.b32.xlu0 %v1300, 64
    %v1320 = vpop.permute.xlu0 %1319
    %1321 = vrot.lane.b32.xlu0 %v1304, 64
    %v1322 = vpop.permute.xlu0 %1321
    %1323 = vrot.lane.b32.xlu0 %v1308, 64
    %v1324 = vpop.permute.xlu0 %1323
    %1333 = vst.msk [vmem:[#allocation9 + $0x5] sm:$0x1] %vm262, %v1310
    %1334 = vst.msk [vmem:[#allocation9 + $0xd] sm:$0x1] %vm262, %v1312
    %1335 = vst.msk [vmem:[#allocation9 + $0x15] sm:$0x1] %vm262, %v1314
    %1336 = vst.msk [vmem:[#allocation9 + $0x1d] sm:$0x1] %vm262, %v1316
    %1337 = vst.msk [vmem:[#allocation9 + $0x25] sm:$0x1] %vm262, %v1318
    %1338 = vst.msk [vmem:[#allocation9 + $0x2d] sm:$0x1] %vm262, %v1320
    %1339 = vst.msk [vmem:[#allocation9 + $0x35] sm:$0x1] %vm262, %v1322
    %1340 = vst.msk [vmem:[#allocation9 + $0x3d] sm:$0x1] %vm262, %v1324
    %1341 = vrot.lane.b32.xlu0 %v1226, 64
    %v1342 = vpop.permute.xlu0 %1341
    %v1343 = vsel %vm52, %v1342, 0
    %1345 = vmatprep.subr.mxu0 0.0
    %1346 = vmatpush1.msra.mxu0 %v46
    %1347 = vmatprep.subr.mxu0 0.0
    %1348 = vmatpush1.msra.mxu0 %v47
    %1349 = vmatprep.subr.mxu0 0.0
    %1350 = vmatpush1.msra.mxu0 %v48
    %1351 = vmatprep.subr.mxu0 0.0
    %1352 = vmatpush1.msra.mxu0 %v49
    %1353 = vmatprep.subr.mxu0 0.0
    %1354 = vmatpush1.msra.mxu0 0.0
    %1355 = vmatprep.subr.mxu0 0.0
    %1356 = vmatpush1.msra.mxu0 0.0
    %1357 = vmatprep.subr.mxu0 0.0
    %1358 = vmatpush1.msra.mxu0 0.0
    %1359 = vmatprep.subr.mxu0 0.0
    %1360 = vmatpush1.msra.mxu0 0.0
    %1361 = vmatprep.subr.mxu0 0.0
    %1362 = vmatpush1.msra.mxu0 0.0
    %1363 = vmatprep.subr.mxu0 0.0
    %1364 = vmatpush1.msra.mxu0 0.0
    %1365 = vmatprep.subr.mxu0 0.0
    %1366 = vmatpush1.msra.mxu0 0.0
    %1367 = vmatprep.subr.mxu0 0.0
    %1368 = vmatpush1.msra.mxu0 0.0
    %1369 = vmatprep.subr.mxu0 0.0
    %1370 = vmatpush1.msra.mxu0 0.0
    %1371 = vmatprep.subr.mxu0 0.0
    %1372 = vmatpush1.msra.mxu0 0.0
    %1373 = vmatprep.subr.mxu0 0.0
    %1374 = vmatpush1.msra.mxu0 0.0
    %1375 = vmatprep.subr.mxu0 0.0
    %1376 = vmatpush1.msra.mxu0 0.0
    %1377 = vmatprep.subr.mxu0 0.0
    %1378 = vmatpush1.msra.mxu0 0.0
    %1379 = vmatprep.subr.mxu0 0.0
    %1380 = vmatpush1.msra.mxu0 0.0
    %1381 = vmatprep.subr.mxu0 0.0
    %1382 = vmatpush1.msra.mxu0 0.0
    %1383 = vmatprep.subr.mxu0 0.0
    %1384 = vmatpush1.msra.mxu0 0.0
    %1385 = vmatprep.subr.mxu0 0.0
    %1386 = vmatpush1.msra.mxu0 0.0
    %1387 = vmatprep.subr.mxu0 0.0
    %1388 = vmatpush1.msra.mxu0 0.0
    %1389 = vmatprep.subr.mxu0 0.0
    %1390 = vmatpush1.msra.mxu0 0.0
    %1391 = vmatprep.subr.mxu0 0.0
    %1392 = vmatpush1.msra.mxu0 0.0
    %1393 = vmatprep.subr.mxu0 0.0
    %1394 = vmatpush1.msra.mxu0 0.0
    %1395 = vmatprep.subr.mxu0 0.0
    %1396 = vmatpush1.msra.mxu0 0.0
    %1397 = vmatprep.subr.mxu0 0.0
    %1398 = vmatpush1.msra.mxu0 0.0
    %1399 = vmatprep.subr.mxu0 0.0
    %1400 = vmatpush1.msra.mxu0 0.0
    %1401 = vmatprep.subr.mxu0 0.0
    %1402 = vmatpush1.msra.mxu0 0.0
    %1403 = vmatprep.subr.mxu0 0.0
    %1404 = vmatpush1.msra.mxu0 0.0
    %1405 = vmatprep.subr.mxu0 0.0
    %1406 = vmatpush1.msra.mxu0 0.0
    %1407 = vmatprep.subr.mxu0 0.0
    %1408 = vmatpush1.msra.mxu0 0.0
    %1409 = vmatprep.mubr.f32.mxu0 0.0
    %1410 = vmatmul.mubr.f32.gmra.mrb[0].mxu0 %v1343
    %v1411 = vpop.f32.mrb[0].mxu0
    %v1412 = vadd.f32 0.0, %v1411
    %v1413 = vpop.f32.mrb[0].mxu0
    %1414 = vdwg.mxu0
    %v1415 = vadd.f32 %v45, %v1412
    %v1416 = vxor.u32 %v1415, 2147483648
    %v1417 = vmul.f32 %v1416, 1.442695
    %v1418 = vpow.pop %v1417
    %v1419 = vadd.f32 %v1418, 1.0
    %v1420 = vrcp.pop %v1419
    %v1421 = vmul.f32 1.0, %v1420
    %v1422 = vmul.f32 %v1421, 2.0
    %v1423 = vsub.f32 %v1422, 1.0
    %v1424 = vmul.f32 %v1421, %v1220
    %1426 = vrot.lane.b32.xlu0 %v1423, 32
    %v1427 = vpop.permute.xlu0 %1426
    %v1429 = vmul.f32 %v1421, %v1427
    %1431 = vrot.lane.b32.xlu0 %v1429, 32
    %v1432 = vpop.permute.xlu0 %1431
    %v1434 = vadd.f32 %v1424, %v1432
    %v1435 = vtanh.pop %v1434
    %1437 = vrot.lane.b32.xlu0 %v1435, 32
    %v1438 = vpop.permute.xlu0 %1437
    %v1440 = vmul.f32 %v1421, %v1438
    %v1442 = vcombine.high %v1440, %v1440
    %v1444 = vunpack.c.l.s4 1966171168
    %v1445 = vunpack.c.0.s8 %v1444
    %v1446 = vlaneseq
    %v1447 = vshrl.u32 %v1446, 7
    %v1448 = vsub.s32 %v1445, %v1447
    %v1449 = vrot.slane %v1440, %v1448
    %v1451 = vunpack.c.l.s4 1966171168
    %v1452 = vunpack.c.0.s8 %v1451
    %v1453 = vlaneseq
    %v1454 = vshrl.u32 %v1453, 7
    %v1455 = vsub.s32 %v1452, %v1454
    %v1456 = vrot.slane %v1442, %v1455
    %v1457 = vcombine.high %v1449, %v1449
    %v1458 = vcombine.high %v1456, %v1456
    %v1460 = vunpack.c.l.s4 1966171168
    %v1461 = vunpack.c.0.s8 %v1460
    %v1462 = vlaneseq
    %v1463 = vshrl.u32 %v1462, 7
    %v1464 = vsub.s32 %v1461, %v1463
    %v1465 = vrot.slane %v1449, %v1464
    %v1467 = vunpack.c.l.s4 1966171168
    %v1468 = vunpack.c.0.s8 %v1467
    %v1469 = vlaneseq
    %v1470 = vshrl.u32 %v1469, 7
    %v1471 = vsub.s32 %v1468, %v1470
    %v1472 = vrot.slane %v1456, %v1471
    %v1474 = vunpack.c.l.s4 1966171168
    %v1475 = vunpack.c.0.s8 %v1474
    %v1476 = vlaneseq
    %v1477 = vshrl.u32 %v1476, 7
    %v1478 = vsub.s32 %v1475, %v1477
    %v1479 = vrot.slane %v1457, %v1478
    %v1481 = vunpack.c.l.s4 1966171168
    %v1482 = vunpack.c.0.s8 %v1481
    %v1483 = vlaneseq
    %v1484 = vshrl.u32 %v1483, 7
    %v1485 = vsub.s32 %v1482, %v1484
    %v1486 = vrot.slane %v1458, %v1485
    %v1487 = vcombine.high %v1465, %v1465
    %v1488 = vcombine.high %v1472, %v1472
    %v1489 = vcombine.high %v1479, %v1479
    %v1490 = vcombine.high %v1486, %v1486
    %v1491 = vlaneseq
    %v1492 = vshrl.u32 %v1491, 7
    %v1493 = vsub.s32 0, %v1492
    %v1494 = vrot.slane %v1465, %v1493
    %v1495 = vlaneseq
    %v1496 = vshrl.u32 %v1495, 7
    %v1497 = vsub.s32 0, %v1496
    %v1498 = vrot.slane %v1479, %v1497
    %v1499 = vlaneseq
    %v1500 = vshrl.u32 %v1499, 7
    %v1501 = vsub.s32 0, %v1500
    %v1502 = vrot.slane %v1487, %v1501
    %v1503 = vlaneseq
    %v1504 = vshrl.u32 %v1503, 7
    %v1505 = vsub.s32 0, %v1504
    %v1506 = vrot.slane %v1489, %v1505
    %v1507 = vlaneseq
    %v1508 = vshrl.u32 %v1507, 7
    %v1509 = vsub.s32 0, %v1508
    %v1510 = vrot.slane %v1472, %v1509
    %v1511 = vlaneseq
    %v1512 = vshrl.u32 %v1511, 7
    %v1513 = vsub.s32 0, %v1512
    %v1514 = vrot.slane %v1486, %v1513
    %v1515 = vlaneseq
    %v1516 = vshrl.u32 %v1515, 7
    %v1517 = vsub.s32 0, %v1516
    %v1518 = vrot.slane %v1488, %v1517
    %v1519 = vlaneseq
    %v1520 = vshrl.u32 %v1519, 7
    %v1521 = vsub.s32 0, %v1520
    %v1522 = vrot.slane %v1490, %v1521
    %1523 = vrot.lane.b32.xlu0 %v1494, 64
    %v1524 = vpop.permute.xlu0 %1523
    %1525 = vrot.lane.b32.xlu0 %v1498, 64
    %v1526 = vpop.permute.xlu0 %1525
    %1527 = vrot.lane.b32.xlu0 %v1502, 64
    %v1528 = vpop.permute.xlu0 %1527
    %1529 = vrot.lane.b32.xlu0 %v1506, 64
    %v1530 = vpop.permute.xlu0 %1529
    %1531 = vrot.lane.b32.xlu0 %v1510, 64
    %v1532 = vpop.permute.xlu0 %1531
    %1533 = vrot.lane.b32.xlu0 %v1514, 64
    %v1534 = vpop.permute.xlu0 %1533
    %1535 = vrot.lane.b32.xlu0 %v1518, 64
    %v1536 = vpop.permute.xlu0 %1535
    %1537 = vrot.lane.b32.xlu0 %v1522, 64
    %v1538 = vpop.permute.xlu0 %1537
    %1547 = vst.msk [vmem:[#allocation9 + $0x6] sm:$0x1] %vm262, %v1524
    %1548 = vst.msk [vmem:[#allocation9 + $0xe] sm:$0x1] %vm262, %v1526
    %1549 = vst.msk [vmem:[#allocation9 + $0x16] sm:$0x1] %vm262, %v1528
    %1550 = vst.msk [vmem:[#allocation9 + $0x1e] sm:$0x1] %vm262, %v1530
    %1551 = vst.msk [vmem:[#allocation9 + $0x26] sm:$0x1] %vm262, %v1532
    %1552 = vst.msk [vmem:[#allocation9 + $0x2e] sm:$0x1] %vm262, %v1534
    %1553 = vst.msk [vmem:[#allocation9 + $0x36] sm:$0x1] %vm262, %v1536
    %1554 = vst.msk [vmem:[#allocation9 + $0x3e] sm:$0x1] %vm262, %v1538
    %1555 = vrot.lane.b32.xlu0 %v1440, 64
    %v1556 = vpop.permute.xlu0 %1555
    %v1557 = vsel %vm52, %v1556, 0
    %1559 = vmatprep.subr.mxu0 0.0
    %1560 = vmatpush1.msra.mxu0 %v46
    %1561 = vmatprep.subr.mxu0 0.0
    %1562 = vmatpush1.msra.mxu0 %v47
    %1563 = vmatprep.subr.mxu0 0.0
    %1564 = vmatpush1.msra.mxu0 %v48
    %1565 = vmatprep.subr.mxu0 0.0
    %1566 = vmatpush1.msra.mxu0 %v49
    %1567 = vmatprep.subr.mxu0 0.0
    %1568 = vmatpush1.msra.mxu0 0.0
    %1569 = vmatprep.subr.mxu0 0.0
    %1570 = vmatpush1.msra.mxu0 0.0
    %1571 = vmatprep.subr.mxu0 0.0
    %1572 = vmatpush1.msra.mxu0 0.0
    %1573 = vmatprep.subr.mxu0 0.0
    %1574 = vmatpush1.msra.mxu0 0.0
    %1575 = vmatprep.subr.mxu0 0.0
    %1576 = vmatpush1.msra.mxu0 0.0
    %1577 = vmatprep.subr.mxu0 0.0
    %1578 = vmatpush1.msra.mxu0 0.0
    %1579 = vmatprep.subr.mxu0 0.0
    %1580 = vmatpush1.msra.mxu0 0.0
    %1581 = vmatprep.subr.mxu0 0.0
    %1582 = vmatpush1.msra.mxu0 0.0
    %1583 = vmatprep.subr.mxu0 0.0
    %1584 = vmatpush1.msra.mxu0 0.0
    %1585 = vmatprep.subr.mxu0 0.0
    %1586 = vmatpush1.msra.mxu0 0.0
    %1587 = vmatprep.subr.mxu0 0.0
    %1588 = vmatpush1.msra.mxu0 0.0
    %1589 = vmatprep.subr.mxu0 0.0
    %1590 = vmatpush1.msra.mxu0 0.0
    %1591 = vmatprep.subr.mxu0 0.0
    %1592 = vmatpush1.msra.mxu0 0.0
    %1593 = vmatprep.subr.mxu0 0.0
    %1594 = vmatpush1.msra.mxu0 0.0
    %1595 = vmatprep.subr.mxu0 0.0
    %1596 = vmatpush1.msra.mxu0 0.0
    %1597 = vmatprep.subr.mxu0 0.0
    %1598 = vmatpush1.msra.mxu0 0.0
    %1599 = vmatprep.subr.mxu0 0.0
    %1600 = vmatpush1.msra.mxu0 0.0
    %1601 = vmatprep.subr.mxu0 0.0
    %1602 = vmatpush1.msra.mxu0 0.0
    %1603 = vmatprep.subr.mxu0 0.0
    %1604 = vmatpush1.msra.mxu0 0.0
    %1605 = vmatprep.subr.mxu0 0.0
    %1606 = vmatpush1.msra.mxu0 0.0
    %1607 = vmatprep.subr.mxu0 0.0
    %1608 = vmatpush1.msra.mxu0 0.0
    %1609 = vmatprep.subr.mxu0 0.0
    %1610 = vmatpush1.msra.mxu0 0.0
    %1611 = vmatprep.subr.mxu0 0.0
    %1612 = vmatpush1.msra.mxu0 0.0
    %1613 = vmatprep.subr.mxu0 0.0
    %1614 = vmatpush1.msra.mxu0 0.0
    %1615 = vmatprep.subr.mxu0 0.0
    %1616 = vmatpush1.msra.mxu0 0.0
    %1617 = vmatprep.subr.mxu0 0.0
    %1618 = vmatpush1.msra.mxu0 0.0
    %1619 = vmatprep.subr.mxu0 0.0
    %1620 = vmatpush1.msra.mxu0 0.0
    %1621 = vmatprep.subr.mxu0 0.0
    %1622 = vmatpush1.msra.mxu0 0.0
    %1623 = vmatprep.mubr.f32.mxu0 0.0
    %1624 = vmatmul.mubr.f32.gmra.mrb[0].mxu0 %v1557
    %v1625 = vpop.f32.mrb[0].mxu0
    %v1626 = vadd.f32 0.0, %v1625
    %v1627 = vpop.f32.mrb[0].mxu0
    %1628 = vdwg.mxu0
    %v1629 = vadd.f32 %v45, %v1626
    %v1630 = vxor.u32 %v1629, 2147483648
    %v1631 = vmul.f32 %v1630, 1.442695
    %v1632 = vpow.pop %v1631
    %v1633 = vadd.f32 %v1632, 1.0
    %v1634 = vrcp.pop %v1633
    %v1635 = vmul.f32 1.0, %v1634
    %v1636 = vmul.f32 %v1635, 2.0
    %v1637 = vsub.f32 %v1636, 1.0
    %v1638 = vmul.f32 %v1635, %v1434
    %1640 = vrot.lane.b32.xlu0 %v1637, 32
    %v1641 = vpop.permute.xlu0 %1640
    %v1643 = vmul.f32 %v1635, %v1641
    %1645 = vrot.lane.b32.xlu0 %v1643, 32
    %v1646 = vpop.permute.xlu0 %1645
    %v1648 = vadd.f32 %v1638, %v1646
    %v1649 = vtanh.pop %v1648
    %1651 = vrot.lane.b32.xlu0 %v1649, 32
    %v1652 = vpop.permute.xlu0 %1651
    %v1654 = vmul.f32 %v1635, %v1652
    %v1656 = vcombine.high %v1654, %v1654
    %v1658 = vunpack.c.l.s4 1966171168
    %v1659 = vunpack.c.0.s8 %v1658
    %v1660 = vlaneseq
    %v1661 = vshrl.u32 %v1660, 7
    %v1662 = vsub.s32 %v1659, %v1661
    %v1663 = vrot.slane %v1654, %v1662
    %v1665 = vunpack.c.l.s4 1966171168
    %v1666 = vunpack.c.0.s8 %v1665
    %v1667 = vlaneseq
    %v1668 = vshrl.u32 %v1667, 7
    %v1669 = vsub.s32 %v1666, %v1668
    %v1670 = vrot.slane %v1656, %v1669
    %v1671 = vcombine.high %v1663, %v1663
    %v1672 = vcombine.high %v1670, %v1670
    %v1674 = vunpack.c.l.s4 1966171168
    %v1675 = vunpack.c.0.s8 %v1674
    %v1676 = vlaneseq
    %v1677 = vshrl.u32 %v1676, 7
    %v1678 = vsub.s32 %v1675, %v1677
    %v1679 = vrot.slane %v1663, %v1678
    %v1681 = vunpack.c.l.s4 1966171168
    %v1682 = vunpack.c.0.s8 %v1681
    %v1683 = vlaneseq
    %v1684 = vshrl.u32 %v1683, 7
    %v1685 = vsub.s32 %v1682, %v1684
    %v1686 = vrot.slane %v1670, %v1685
    %v1688 = vunpack.c.l.s4 1966171168
    %v1689 = vunpack.c.0.s8 %v1688
    %v1690 = vlaneseq
    %v1691 = vshrl.u32 %v1690, 7
    %v1692 = vsub.s32 %v1689, %v1691
    %v1693 = vrot.slane %v1671, %v1692
    %v1695 = vunpack.c.l.s4 1966171168
    %v1696 = vunpack.c.0.s8 %v1695
    %v1697 = vlaneseq
    %v1698 = vshrl.u32 %v1697, 7
    %v1699 = vsub.s32 %v1696, %v1698
    %v1700 = vrot.slane %v1672, %v1699
    %v1701 = vcombine.high %v1679, %v1679
    %v1702 = vcombine.high %v1686, %v1686
    %v1703 = vcombine.high %v1693, %v1693
    %v1704 = vcombine.high %v1700, %v1700
    %v1705 = vlaneseq
    %v1706 = vshrl.u32 %v1705, 7
    %v1707 = vsub.s32 0, %v1706
    %v1708 = vrot.slane %v1679, %v1707
    %v1709 = vlaneseq
    %v1710 = vshrl.u32 %v1709, 7
    %v1711 = vsub.s32 0, %v1710
    %v1712 = vrot.slane %v1693, %v1711
    %v1713 = vlaneseq
    %v1714 = vshrl.u32 %v1713, 7
    %v1715 = vsub.s32 0, %v1714
    %v1716 = vrot.slane %v1701, %v1715
    %v1717 = vlaneseq
    %v1718 = vshrl.u32 %v1717, 7
    %v1719 = vsub.s32 0, %v1718
    %v1720 = vrot.slane %v1703, %v1719
    %v1721 = vlaneseq
    %v1722 = vshrl.u32 %v1721, 7
    %v1723 = vsub.s32 0, %v1722
    %v1724 = vrot.slane %v1686, %v1723
    %v1725 = vlaneseq
    %v1726 = vshrl.u32 %v1725, 7
    %v1727 = vsub.s32 0, %v1726
    %v1728 = vrot.slane %v1700, %v1727
    %v1729 = vlaneseq
    %v1730 = vshrl.u32 %v1729, 7
    %v1731 = vsub.s32 0, %v1730
    %v1732 = vrot.slane %v1702, %v1731
    %v1733 = vlaneseq
    %v1734 = vshrl.u32 %v1733, 7
    %v1735 = vsub.s32 0, %v1734
    %v1736 = vrot.slane %v1704, %v1735
    %1737 = vrot.lane.b32.xlu0 %v1708, 64
    %v1738 = vpop.permute.xlu0 %1737
    %1739 = vrot.lane.b32.xlu0 %v1712, 64
    %v1740 = vpop.permute.xlu0 %1739
    %1741 = vrot.lane.b32.xlu0 %v1716, 64
    %v1742 = vpop.permute.xlu0 %1741
    %1743 = vrot.lane.b32.xlu0 %v1720, 64
    %v1744 = vpop.permute.xlu0 %1743
    %1745 = vrot.lane.b32.xlu0 %v1724, 64
    %v1746 = vpop.permute.xlu0 %1745
    %1747 = vrot.lane.b32.xlu0 %v1728, 64
    %v1748 = vpop.permute.xlu0 %1747
    %1749 = vrot.lane.b32.xlu0 %v1732, 64
    %v1750 = vpop.permute.xlu0 %1749
    %1751 = vrot.lane.b32.xlu0 %v1736, 64
    %v1752 = vpop.permute.xlu0 %1751
    %1761 = vst.msk [vmem:[#allocation9 + $0x7] sm:$0x1] %vm262, %v1738
    %1762 = vst.msk [vmem:[#allocation9 + $0xf] sm:$0x1] %vm262, %v1740
    %1763 = vst.msk [vmem:[#allocation9 + $0x17] sm:$0x1] %vm262, %v1742
    %1764 = vst.msk [vmem:[#allocation9 + $0x1f] sm:$0x1] %vm262, %v1744
    %1765 = vst.msk [vmem:[#allocation9 + $0x27] sm:$0x1] %vm262, %v1746
    %1766 = vst.msk [vmem:[#allocation9 + $0x2f] sm:$0x1] %vm262, %v1748
    %1767 = vst.msk [vmem:[#allocation9 + $0x37] sm:$0x1] %vm262, %v1750
    %1768 = vst.msk [vmem:[#allocation9 + $0x3f] sm:$0x1] %vm262, %v1752
    %1769 = vrot.lane.b32.xlu0 %v1654, 64
    %v1770 = vpop.permute.xlu0 %1769
    %1772 = vst.msk [vmem:[#allocation2] sm:$0xff] %vm52, %v1770
    %1774 = vrot.lane.b32.xlu0 %v1648, 96
    %v1775 = vpop.permute.xlu0 %1774
    %1777 = vst.msk [vmem:[#allocation3] sm:$0xff] %vm52, %v1775
    // Predicated region
    $region22: #{tpu_custom_call.1} parent=1 // pred_check
      _
    $region23: #{tpu_custom_call.1} parent=1 // pred_check_branch
      %1779 = sbr.rel (0) target = $region25
    $region24: #{tpu_custom_call.1} parent=1 // pred_region
      %s1781 = ssub.s32 1024, 1024
      %1782 = vsyncadd [#allocation6], %s1781
      %s1783 = sshll.u32 [#allocation9], 4
      %s1784 = int_to_ptr.vmem [resolvable:$true] %s1783
      %1789 = dma.vmem_to_hbm [thread:$0]  %s1784, 1024, %s2, [#allocation6], 128, 128, 8
    $region25: #{tpu_custom_call.1} parent=1 // pred_fallthru
      _
    // Predicated region
    $region26: #{tpu_custom_call.1} parent=1 // pred_check
      _
    $region27: #{tpu_custom_call.1} parent=1 // pred_check_branch
      %1791 = sbr.rel (0) target = $region29
    $region28: #{tpu_custom_call.1} parent=1 // pred_region
      %1792 = dma.done [#allocation6], 1024
    $region29: #{tpu_custom_call.1} parent=1 // pred_fallthru
      _
    %1793 = vsyncpa [#allocation5], 1
    %1794 = vsyncpa [#allocation8], 1
    %1795 = vsyncpa [#allocation6], 1

</llo_original>
